<compile_context>
chip_gen: v5e
topology: v5e:2x2
jax: 0.10.0
libtpu: 0.0.40
codegen_flags: <defaults>
</compile_context>

<pallas_src>
import jax
import jax.numpy as jnp
from jax import lax
from jax.experimental import pallas as pl
from jax.experimental.pallas import tpu as pltpu

EPS = 1e-5
KSIZE = 3


def _make_resnet_block_kernel(C, H, W, Wp, Lin, Lout, bb):
    """Build the kernel body for a (bb, C, Lin) input block."""
    inv_hw = 1.0 / float(H * W)
    lpad = Wp + 1                      # shift that re-pads a conv output for the next conv
    rpad = Lin - Lout - lpad

    def conv3x3(src, wcols, bcol):
        # src:   (C, Lin)   row-major flattened, spatially padded image
        # wcols: list of C*9 weight columns, each (C_out, 1); index = ci*9 + ky*3 + kx
        # bcol:  (C_out, 1)
        # Returns (C_out, Lout) in "padded-output" layout: output pixel (y, x)
        # sits at lane y*Wp + x; lanes with x >= W are garbage (masked later).
        acc = jnp.broadcast_to(bcol, (C, Lout))
        for ky in range(KSIZE):
            for kx in range(KSIZE):
                k = ky * KSIZE + kx
                s = ky * Wp + kx
                win = src[:, s:s + Lout]            # one shifted window per tap,
                for ci in range(C):                 # reused by all output channels
                    acc = acc + wcols[ci * 9 + k] * win[ci:ci + 1, :]
        return acc

    def instance_norm(g, mask):
        # Fused single-pass statistics over the H*W valid lanes.
        gm = g * mask
        s1 = jnp.sum(gm, axis=1, keepdims=True)       # (C, 1)
        s2 = jnp.sum(gm * gm, axis=1, keepdims=True)  # (C, 1)
        m = s1 * inv_hw
        var = s2 * inv_hw - m * m
        return (g - m) * lax.rsqrt(var + EPS)

    def kernel(x_ref, w1_ref, b1_ref, w2_ref, b2_ref, mask_ref, o_ref):
        # x_ref : (bb, C, Lin)   flattened padded input samples, VMEM
        # w*_ref: (C, C*9)       conv weights as VMEM vector constants
        # b*_ref: (C, 1)         conv biases
        # mask  : (1, Lout)      1.0 on valid lanes (x < W), 0.0 on pad columns
        # o_ref : (bb, C, Lout)  lane-dense output (pad columns stripped in wrapper)
        mask = mask_ref[...]
        w1 = w1_ref[...]
        w2 = w2_ref[...]
        b1 = b1_ref[...]
        b2 = b2_ref[...]
        # Hoist weight-column extraction out of the tap/sample loops.
        w1cols = [w1[:, t:t + 1] for t in range(C * 9)]
        w2cols = [w2[:, t:t + 1] for t in range(C * 9)]
        zl = jnp.zeros((C, lpad), jnp.float32)
        zr = jnp.zeros((C, rpad), jnp.float32)

        for n in range(bb):                          # static unroll over samples in block
            xf = x_ref[n]                            # (C, Lin)
            # conv1 -> InstanceNorm -> ReLU, all kept in registers (no scratch).
            h = jnp.maximum(instance_norm(conv3x3(xf, w1cols, b1), mask), 0.0) * mask
            # Re-pad for conv2: shift right by one padded row + one column; borders
            # and the invalid lanes of h are already zero (mask above).
            hp = jnp.concatenate([zl, h, zr], axis=1)            # (C, Lin)
            # conv2 -> InstanceNorm -> residual add.
            z = instance_norm(conv3x3(hp, w2cols, b2), mask)
            res = xf[:, lpad:lpad + Lout]            # original (unpadded) input lanes
            o_ref[n] = res + z

    return kernel


@jax.jit
def resnet_block_pallas(x_nchw, w1, b1, w2, b2):
    """x_nchw: (N, C, H, W) float32. w*: (C, C, 3, 3) OIHW. b*: (C,)."""
    N, C, H, W = x_nchw.shape
    Hp, Wp = H + 2, W + 2
    Lout = H * Wp                                    # conv output lanes (padded-output layout)
    Lin = ((Hp * Wp + 2 + 127) // 128) * 128         # lane-dense; covers every tap window

    # Batch blocking per generation: v7x has 2 TensorCores/chip -> shard the batch
    # across the grid; v5e/v6e have a single TC, so a multi-step grid is pure
    # per-step overhead -> process the whole batch in one grid step.
    kind = jax.devices()[0].device_kind.lower()
    bb = 1 if ("v7" in kind and N > 1) else N

    xf = jnp.pad(x_nchw.astype(jnp.float32), ((0, 0), (0, 0), (1, 1), (1, 1)))
    xf = xf.reshape(N, C, Hp * Wp)
    xf = jnp.pad(xf, ((0, 0), (0, 0), (0, Lin - Hp * Wp)))       # (N, C, Lin)

    w1f = w1.astype(jnp.float32).reshape(C, C * 9)               # (C_out, C_in*9)
    w2f = w2.astype(jnp.float32).reshape(C, C * 9)
    b1c = b1.astype(jnp.float32).reshape(C, 1)
    b2c = b2.astype(jnp.float32).reshape(C, 1)
    mask = (jnp.arange(Lout) % Wp < W).astype(jnp.float32).reshape(1, Lout)

    kernel = _make_resnet_block_kernel(C, H, W, Wp, Lin, Lout, bb)

    out_flat = pl.pallas_call(
        kernel,
        out_shape=jax.ShapeDtypeStruct((N, C, Lout), jnp.float32),
        grid=(N // bb,),
        in_specs=[
            pl.BlockSpec((bb, C, Lin), lambda n: (n, 0, 0)),
            pl.BlockSpec((C, C * 9), lambda n: (0, 0)),
            pl.BlockSpec((C, 1), lambda n: (0, 0)),
            pl.BlockSpec((C, C * 9), lambda n: (0, 0)),
            pl.BlockSpec((C, 1), lambda n: (0, 0)),
            pl.BlockSpec((1, Lout), lambda n: (0, 0)),
        ],
        out_specs=pl.BlockSpec((bb, C, Lout), lambda n: (n, 0, 0)),
        compiler_params=pltpu.CompilerParams(
            dimension_semantics=("parallel",)),
    )(xf, w1f, b1c, w2f, b2c, mask)

    # Lanes are y*Wp + x: reshape and drop the 2 padding columns of each row.
    return out_flat.reshape(N, C, H, Wp)[:, :, :, :W]


def resnet_block_reference(x, w1, b1, w2, b2):
    """Plain-JAX reference matching the PyTorch module (for verification)."""
    def conv(h, w, b):
        y = lax.conv_general_dilated(
            h, w, window_strides=(1, 1), padding=((1, 1), (1, 1)),
            dimension_numbers=("NCHW", "OIHW", "NCHW"))
        return y + b.reshape(1, -1, 1, 1)

    def inorm(y):
        m = jnp.mean(y, axis=(2, 3), keepdims=True)
        v = jnp.mean((y - m) ** 2, axis=(2, 3), keepdims=True)
        return (y - m) / jnp.sqrt(v + EPS)

    h = jnp.maximum(inorm(conv(x, w1, b1)), 0.0)
    return x + inorm(conv(h, w2, b2))


if __name__ == "__main__":
    N, NF, H, W = 2, 4, 16, 16  # resnet_block(nf=4, kernel_size=3, stride=1, padding=1)

    key = jax.random.PRNGKey(0)
    kx, kw1, kw2 = jax.random.split(key, 3)
    x = jax.random.normal(kx, (N, NF, H, W), dtype=jnp.float32)
    # initialize_weights: Conv2d weight ~ N(0, 0.02), bias = 0
    w1 = 0.02 * jax.random.normal(kw1, (NF, NF, KSIZE, KSIZE), dtype=jnp.float32)
    w2 = 0.02 * jax.random.normal(kw2, (NF, NF, KSIZE, KSIZE), dtype=jnp.float32)
    b1 = jnp.zeros((NF,), dtype=jnp.float32)
    b2 = jnp.zeros((NF,), dtype=jnp.float32)

    out = jax.block_until_ready(resnet_block_pallas(x, w1, b1, w2, b2))
    ref = jax.block_until_ready(resnet_block_reference(x, w1, b1, w2, b2))

    assert out.shape == (N, NF, H, W) and out.dtype == jnp.float32
    max_err = float(jnp.max(jnp.abs(out - ref)))
    assert jnp.allclose(out, ref, atol=1e-4, rtol=1e-4), f"max abs err = {max_err}"

    print("KERNEL_OK")
</pallas_src>

<mosaic_0001>
module attributes {stable_mosaic.version = 11 : i64} {
  func.func @kernel(%arg0: i32, %arg1: memref<2x4x384xf32, #tpu.memory_space<vmem>>, %arg2: memref<4x36xf32, #tpu.memory_space<vmem>>, %arg3: memref<4x1xf32, #tpu.memory_space<vmem>>, %arg4: memref<4x36xf32, #tpu.memory_space<vmem>>, %arg5: memref<4x1xf32, #tpu.memory_space<vmem>>, %arg6: memref<1x288xf32, #tpu.memory_space<vmem>>, %arg7: memref<2x4x288xf32, #tpu.memory_space<vmem>>) attributes {dimension_semantics = [#tpu.dimension_semantics<parallel>], iteration_bounds = array<i64: 1>, scalar_prefetch = 0 : i64, scratch_operands = 0 : i64, tpu.core_type = #tpu.core_type<tc>, window_params = [{transform_indices = @transform_0, window_bounds = array<i64: 2, 4, 384>}, {pipeline_mode = #tpu.pipeline_mode<synchronous>, transform_indices = @transform_1, window_bounds = array<i64: 4, 36>}, {pipeline_mode = #tpu.pipeline_mode<synchronous>, transform_indices = @transform_2, window_bounds = array<i64: 4, 1>}, {pipeline_mode = #tpu.pipeline_mode<synchronous>, transform_indices = @transform_3, window_bounds = array<i64: 4, 36>}, {pipeline_mode = #tpu.pipeline_mode<synchronous>, transform_indices = @transform_4, window_bounds = array<i64: 4, 1>}, {pipeline_mode = #tpu.pipeline_mode<synchronous>, transform_indices = @transform_5, window_bounds = array<i64: 1, 288>}, {transform_indices = @transform_6, window_bounds = array<i64: 2, 4, 288>}]} {
    %c0 = arith.constant 0 : index
    %c0_0 = arith.constant 0 : index
    %0 = vector.load %arg6[%c0, %c0_0] : memref<1x288xf32, #tpu.memory_space<vmem>>, vector<1x288xf32>
    %c0_1 = arith.constant 0 : index
    %c0_2 = arith.constant 0 : index
    %1 = vector.load %arg2[%c0_1, %c0_2] : memref<4x36xf32, #tpu.memory_space<vmem>>, vector<4x36xf32>
    %c0_3 = arith.constant 0 : index
    %c0_4 = arith.constant 0 : index
    %2 = vector.load %arg4[%c0_3, %c0_4] : memref<4x36xf32, #tpu.memory_space<vmem>>, vector<4x36xf32>
    %c0_5 = arith.constant 0 : index
    %c0_6 = arith.constant 0 : index
    %3 = vector.load %arg3[%c0_5, %c0_6] : memref<4x1xf32, #tpu.memory_space<vmem>>, vector<4x1xf32>
    %c0_7 = arith.constant 0 : index
    %c0_8 = arith.constant 0 : index
    %4 = vector.load %arg5[%c0_7, %c0_8] : memref<4x1xf32, #tpu.memory_space<vmem>>, vector<4x1xf32>
    %5 = vector.extract_strided_slice %1 {offsets = [0, 0], sizes = [4, 1], strides = [1, 1]} : vector<4x36xf32> to vector<4x1xf32>
    %6 = vector.extract_strided_slice %1 {offsets = [0, 1], sizes = [4, 1], strides = [1, 1]} : vector<4x36xf32> to vector<4x1xf32>
    %7 = vector.extract_strided_slice %1 {offsets = [0, 2], sizes = [4, 1], strides = [1, 1]} : vector<4x36xf32> to vector<4x1xf32>
    %8 = vector.extract_strided_slice %1 {offsets = [0, 3], sizes = [4, 1], strides = [1, 1]} : vector<4x36xf32> to vector<4x1xf32>
    %9 = vector.extract_strided_slice %1 {offsets = [0, 4], sizes = [4, 1], strides = [1, 1]} : vector<4x36xf32> to vector<4x1xf32>
    %10 = vector.extract_strided_slice %1 {offsets = [0, 5], sizes = [4, 1], strides = [1, 1]} : vector<4x36xf32> to vector<4x1xf32>
    %11 = vector.extract_strided_slice %1 {offsets = [0, 6], sizes = [4, 1], strides = [1, 1]} : vector<4x36xf32> to vector<4x1xf32>
    %12 = vector.extract_strided_slice %1 {offsets = [0, 7], sizes = [4, 1], strides = [1, 1]} : vector<4x36xf32> to vector<4x1xf32>
    %13 = vector.extract_strided_slice %1 {offsets = [0, 8], sizes = [4, 1], strides = [1, 1]} : vector<4x36xf32> to vector<4x1xf32>
    %14 = vector.extract_strided_slice %1 {offsets = [0, 9], sizes = [4, 1], strides = [1, 1]} : vector<4x36xf32> to vector<4x1xf32>
    %15 = vector.extract_strided_slice %1 {offsets = [0, 10], sizes = [4, 1], strides = [1, 1]} : vector<4x36xf32> to vector<4x1xf32>
    %16 = vector.extract_strided_slice %1 {offsets = [0, 11], sizes = [4, 1], strides = [1, 1]} : vector<4x36xf32> to vector<4x1xf32>
    %17 = vector.extract_strided_slice %1 {offsets = [0, 12], sizes = [4, 1], strides = [1, 1]} : vector<4x36xf32> to vector<4x1xf32>
    %18 = vector.extract_strided_slice %1 {offsets = [0, 13], sizes = [4, 1], strides = [1, 1]} : vector<4x36xf32> to vector<4x1xf32>
    %19 = vector.extract_strided_slice %1 {offsets = [0, 14], sizes = [4, 1], strides = [1, 1]} : vector<4x36xf32> to vector<4x1xf32>
    %20 = vector.extract_strided_slice %1 {offsets = [0, 15], sizes = [4, 1], strides = [1, 1]} : vector<4x36xf32> to vector<4x1xf32>
    %21 = vector.extract_strided_slice %1 {offsets = [0, 16], sizes = [4, 1], strides = [1, 1]} : vector<4x36xf32> to vector<4x1xf32>
    %22 = vector.extract_strided_slice %1 {offsets = [0, 17], sizes = [4, 1], strides = [1, 1]} : vector<4x36xf32> to vector<4x1xf32>
    %23 = vector.extract_strided_slice %1 {offsets = [0, 18], sizes = [4, 1], strides = [1, 1]} : vector<4x36xf32> to vector<4x1xf32>
    %24 = vector.extract_strided_slice %1 {offsets = [0, 19], sizes = [4, 1], strides = [1, 1]} : vector<4x36xf32> to vector<4x1xf32>
    %25 = vector.extract_strided_slice %1 {offsets = [0, 20], sizes = [4, 1], strides = [1, 1]} : vector<4x36xf32> to vector<4x1xf32>
    %26 = vector.extract_strided_slice %1 {offsets = [0, 21], sizes = [4, 1], strides = [1, 1]} : vector<4x36xf32> to vector<4x1xf32>
    %27 = vector.extract_strided_slice %1 {offsets = [0, 22], sizes = [4, 1], strides = [1, 1]} : vector<4x36xf32> to vector<4x1xf32>
    %28 = vector.extract_strided_slice %1 {offsets = [0, 23], sizes = [4, 1], strides = [1, 1]} : vector<4x36xf32> to vector<4x1xf32>
    %29 = vector.extract_strided_slice %1 {offsets = [0, 24], sizes = [4, 1], strides = [1, 1]} : vector<4x36xf32> to vector<4x1xf32>
    %30 = vector.extract_strided_slice %1 {offsets = [0, 25], sizes = [4, 1], strides = [1, 1]} : vector<4x36xf32> to vector<4x1xf32>
    %31 = vector.extract_strided_slice %1 {offsets = [0, 26], sizes = [4, 1], strides = [1, 1]} : vector<4x36xf32> to vector<4x1xf32>
    %32 = vector.extract_strided_slice %1 {offsets = [0, 27], sizes = [4, 1], strides = [1, 1]} : vector<4x36xf32> to vector<4x1xf32>
    %33 = vector.extract_strided_slice %1 {offsets = [0, 28], sizes = [4, 1], strides = [1, 1]} : vector<4x36xf32> to vector<4x1xf32>
    %34 = vector.extract_strided_slice %1 {offsets = [0, 29], sizes = [4, 1], strides = [1, 1]} : vector<4x36xf32> to vector<4x1xf32>
    %35 = vector.extract_strided_slice %1 {offsets = [0, 30], sizes = [4, 1], strides = [1, 1]} : vector<4x36xf32> to vector<4x1xf32>
    %36 = vector.extract_strided_slice %1 {offsets = [0, 31], sizes = [4, 1], strides = [1, 1]} : vector<4x36xf32> to vector<4x1xf32>
    %37 = vector.extract_strided_slice %1 {offsets = [0, 32], sizes = [4, 1], strides = [1, 1]} : vector<4x36xf32> to vector<4x1xf32>
    %38 = vector.extract_strided_slice %1 {offsets = [0, 33], sizes = [4, 1], strides = [1, 1]} : vector<4x36xf32> to vector<4x1xf32>
    %39 = vector.extract_strided_slice %1 {offsets = [0, 34], sizes = [4, 1], strides = [1, 1]} : vector<4x36xf32> to vector<4x1xf32>
    %40 = vector.extract_strided_slice %1 {offsets = [0, 35], sizes = [4, 1], strides = [1, 1]} : vector<4x36xf32> to vector<4x1xf32>
    %41 = vector.extract_strided_slice %2 {offsets = [0, 0], sizes = [4, 1], strides = [1, 1]} : vector<4x36xf32> to vector<4x1xf32>
    %42 = vector.extract_strided_slice %2 {offsets = [0, 1], sizes = [4, 1], strides = [1, 1]} : vector<4x36xf32> to vector<4x1xf32>
    %43 = vector.extract_strided_slice %2 {offsets = [0, 2], sizes = [4, 1], strides = [1, 1]} : vector<4x36xf32> to vector<4x1xf32>
    %44 = vector.extract_strided_slice %2 {offsets = [0, 3], sizes = [4, 1], strides = [1, 1]} : vector<4x36xf32> to vector<4x1xf32>
    %45 = vector.extract_strided_slice %2 {offsets = [0, 4], sizes = [4, 1], strides = [1, 1]} : vector<4x36xf32> to vector<4x1xf32>
    %46 = vector.extract_strided_slice %2 {offsets = [0, 5], sizes = [4, 1], strides = [1, 1]} : vector<4x36xf32> to vector<4x1xf32>
    %47 = vector.extract_strided_slice %2 {offsets = [0, 6], sizes = [4, 1], strides = [1, 1]} : vector<4x36xf32> to vector<4x1xf32>
    %48 = vector.extract_strided_slice %2 {offsets = [0, 7], sizes = [4, 1], strides = [1, 1]} : vector<4x36xf32> to vector<4x1xf32>
    %49 = vector.extract_strided_slice %2 {offsets = [0, 8], sizes = [4, 1], strides = [1, 1]} : vector<4x36xf32> to vector<4x1xf32>
    %50 = vector.extract_strided_slice %2 {offsets = [0, 9], sizes = [4, 1], strides = [1, 1]} : vector<4x36xf32> to vector<4x1xf32>
    %51 = vector.extract_strided_slice %2 {offsets = [0, 10], sizes = [4, 1], strides = [1, 1]} : vector<4x36xf32> to vector<4x1xf32>
    %52 = vector.extract_strided_slice %2 {offsets = [0, 11], sizes = [4, 1], strides = [1, 1]} : vector<4x36xf32> to vector<4x1xf32>
    %53 = vector.extract_strided_slice %2 {offsets = [0, 12], sizes = [4, 1], strides = [1, 1]} : vector<4x36xf32> to vector<4x1xf32>
    %54 = vector.extract_strided_slice %2 {offsets = [0, 13], sizes = [4, 1], strides = [1, 1]} : vector<4x36xf32> to vector<4x1xf32>
    %55 = vector.extract_strided_slice %2 {offsets = [0, 14], sizes = [4, 1], strides = [1, 1]} : vector<4x36xf32> to vector<4x1xf32>
    %56 = vector.extract_strided_slice %2 {offsets = [0, 15], sizes = [4, 1], strides = [1, 1]} : vector<4x36xf32> to vector<4x1xf32>
    %57 = vector.extract_strided_slice %2 {offsets = [0, 16], sizes = [4, 1], strides = [1, 1]} : vector<4x36xf32> to vector<4x1xf32>
    %58 = vector.extract_strided_slice %2 {offsets = [0, 17], sizes = [4, 1], strides = [1, 1]} : vector<4x36xf32> to vector<4x1xf32>
    %59 = vector.extract_strided_slice %2 {offsets = [0, 18], sizes = [4, 1], strides = [1, 1]} : vector<4x36xf32> to vector<4x1xf32>
    %60 = vector.extract_strided_slice %2 {offsets = [0, 19], sizes = [4, 1], strides = [1, 1]} : vector<4x36xf32> to vector<4x1xf32>
    %61 = vector.extract_strided_slice %2 {offsets = [0, 20], sizes = [4, 1], strides = [1, 1]} : vector<4x36xf32> to vector<4x1xf32>
    %62 = vector.extract_strided_slice %2 {offsets = [0, 21], sizes = [4, 1], strides = [1, 1]} : vector<4x36xf32> to vector<4x1xf32>
    %63 = vector.extract_strided_slice %2 {offsets = [0, 22], sizes = [4, 1], strides = [1, 1]} : vector<4x36xf32> to vector<4x1xf32>
    %64 = vector.extract_strided_slice %2 {offsets = [0, 23], sizes = [4, 1], strides = [1, 1]} : vector<4x36xf32> to vector<4x1xf32>
    %65 = vector.extract_strided_slice %2 {offsets = [0, 24], sizes = [4, 1], strides = [1, 1]} : vector<4x36xf32> to vector<4x1xf32>
    %66 = vector.extract_strided_slice %2 {offsets = [0, 25], sizes = [4, 1], strides = [1, 1]} : vector<4x36xf32> to vector<4x1xf32>
    %67 = vector.extract_strided_slice %2 {offsets = [0, 26], sizes = [4, 1], strides = [1, 1]} : vector<4x36xf32> to vector<4x1xf32>
    %68 = vector.extract_strided_slice %2 {offsets = [0, 27], sizes = [4, 1], strides = [1, 1]} : vector<4x36xf32> to vector<4x1xf32>
    %69 = vector.extract_strided_slice %2 {offsets = [0, 28], sizes = [4, 1], strides = [1, 1]} : vector<4x36xf32> to vector<4x1xf32>
    %70 = vector.extract_strided_slice %2 {offsets = [0, 29], sizes = [4, 1], strides = [1, 1]} : vector<4x36xf32> to vector<4x1xf32>
    %71 = vector.extract_strided_slice %2 {offsets = [0, 30], sizes = [4, 1], strides = [1, 1]} : vector<4x36xf32> to vector<4x1xf32>
    %72 = vector.extract_strided_slice %2 {offsets = [0, 31], sizes = [4, 1], strides = [1, 1]} : vector<4x36xf32> to vector<4x1xf32>
    %73 = vector.extract_strided_slice %2 {offsets = [0, 32], sizes = [4, 1], strides = [1, 1]} : vector<4x36xf32> to vector<4x1xf32>
    %74 = vector.extract_strided_slice %2 {offsets = [0, 33], sizes = [4, 1], strides = [1, 1]} : vector<4x36xf32> to vector<4x1xf32>
    %75 = vector.extract_strided_slice %2 {offsets = [0, 34], sizes = [4, 1], strides = [1, 1]} : vector<4x36xf32> to vector<4x1xf32>
    %76 = vector.extract_strided_slice %2 {offsets = [0, 35], sizes = [4, 1], strides = [1, 1]} : vector<4x36xf32> to vector<4x1xf32>
    %cst = arith.constant 0.000000e+00 : f32
    %77 = vector.broadcast %cst : f32 to vector<4x19xf32>
    %cst_9 = arith.constant 0.000000e+00 : f32
    %78 = vector.broadcast %cst_9 : f32 to vector<4x77xf32>
    %c0_10 = arith.constant 0 : index
    %c0_11 = arith.constant 0 : index
    %c0_12 = arith.constant 0 : index
    %79 = vector.load %arg1[%c0_10, %c0_11, %c0_12] : memref<2x4x384xf32, #tpu.memory_space<vmem>>, vector<1x4x384xf32>
    %80 = vector.shape_cast %79 : vector<1x4x384xf32> to vector<4x384xf32>
    %81 = vector.shape_cast %3 : vector<4x1xf32> to vector<4x1xf32>
    %82 = vector.broadcast %81 : vector<4x1xf32> to vector<4x288xf32>
    %83 = vector.extract_strided_slice %80 {offsets = [0, 0], sizes = [4, 288], strides = [1, 1]} : vector<4x384xf32> to vector<4x288xf32>
    %84 = vector.extract_strided_slice %83 {offsets = [0, 0], sizes = [1, 288], strides = [1, 1]} : vector<4x288xf32> to vector<1x288xf32>
    %85 = vector.broadcast %5 : vector<4x1xf32> to vector<4x288xf32>
    %86 = vector.broadcast %84 : vector<1x288xf32> to vector<4x288xf32>
    %87 = arith.mulf %85, %86 : vector<4x288xf32>
    %88 = arith.addf %82, %87 : vector<4x288xf32>
    %89 = vector.extract_strided_slice %83 {offsets = [1, 0], sizes = [1, 288], strides = [1, 1]} : vector<4x288xf32> to vector<1x288xf32>
    %90 = vector.broadcast %14 : vector<4x1xf32> to vector<4x288xf32>
    %91 = vector.broadcast %89 : vector<1x288xf32> to vector<4x288xf32>
    %92 = arith.mulf %90, %91 : vector<4x288xf32>
    %93 = arith.addf %88, %92 : vector<4x288xf32>
    %94 = vector.extract_strided_slice %83 {offsets = [2, 0], sizes = [1, 288], strides = [1, 1]} : vector<4x288xf32> to vector<1x288xf32>
    %95 = vector.broadcast %23 : vector<4x1xf32> to vector<4x288xf32>
    %96 = vector.broadcast %94 : vector<1x288xf32> to vector<4x288xf32>
    %97 = arith.mulf %95, %96 : vector<4x288xf32>
    %98 = arith.addf %93, %97 : vector<4x288xf32>
    %99 = vector.extract_strided_slice %83 {offsets = [3, 0], sizes = [1, 288], strides = [1, 1]} : vector<4x288xf32> to vector<1x288xf32>
    %100 = vector.broadcast %32 : vector<4x1xf32> to vector<4x288xf32>
    %101 = vector.broadcast %99 : vector<1x288xf32> to vector<4x288xf32>
    %102 = arith.mulf %100, %101 : vector<4x288xf32>
    %103 = arith.addf %98, %102 : vector<4x288xf32>
    %104 = vector.extract_strided_slice %80 {offsets = [0, 1], sizes = [4, 288], strides = [1, 1]} : vector<4x384xf32> to vector<4x288xf32>
    %105 = vector.extract_strided_slice %104 {offsets = [0, 0], sizes = [1, 288], strides = [1, 1]} : vector<4x288xf32> to vector<1x288xf32>
    %106 = vector.broadcast %6 : vector<4x1xf32> to vector<4x288xf32>
    %107 = vector.broadcast %105 : vector<1x288xf32> to vector<4x288xf32>
    %108 = arith.mulf %106, %107 : vector<4x288xf32>
    %109 = arith.addf %103, %108 : vector<4x288xf32>
    %110 = vector.extract_strided_slice %104 {offsets = [1, 0], sizes = [1, 288], strides = [1, 1]} : vector<4x288xf32> to vector<1x288xf32>
    %111 = vector.broadcast %15 : vector<4x1xf32> to vector<4x288xf32>
    %112 = vector.broadcast %110 : vector<1x288xf32> to vector<4x288xf32>
    %113 = arith.mulf %111, %112 : vector<4x288xf32>
    %114 = arith.addf %109, %113 : vector<4x288xf32>
    %115 = vector.extract_strided_slice %104 {offsets = [2, 0], sizes = [1, 288], strides = [1, 1]} : vector<4x288xf32> to vector<1x288xf32>
    %116 = vector.broadcast %24 : vector<4x1xf32> to vector<4x288xf32>
    %117 = vector.broadcast %115 : vector<1x288xf32> to vector<4x288xf32>
    %118 = arith.mulf %116, %117 : vector<4x288xf32>
    %119 = arith.addf %114, %118 : vector<4x288xf32>
    %120 = vector.extract_strided_slice %104 {offsets = [3, 0], sizes = [1, 288], strides = [1, 1]} : vector<4x288xf32> to vector<1x288xf32>
    %121 = vector.broadcast %33 : vector<4x1xf32> to vector<4x288xf32>
    %122 = vector.broadcast %120 : vector<1x288xf32> to vector<4x288xf32>
    %123 = arith.mulf %121, %122 : vector<4x288xf32>
    %124 = arith.addf %119, %123 : vector<4x288xf32>
    %125 = vector.extract_strided_slice %80 {offsets = [0, 2], sizes = [4, 288], strides = [1, 1]} : vector<4x384xf32> to vector<4x288xf32>
    %126 = vector.extract_strided_slice %125 {offsets = [0, 0], sizes = [1, 288], strides = [1, 1]} : vector<4x288xf32> to vector<1x288xf32>
    %127 = vector.broadcast %7 : vector<4x1xf32> to vector<4x288xf32>
    %128 = vector.broadcast %126 : vector<1x288xf32> to vector<4x288xf32>
    %129 = arith.mulf %127, %128 : vector<4x288xf32>
    %130 = arith.addf %124, %129 : vector<4x288xf32>
    %131 = vector.extract_strided_slice %125 {offsets = [1, 0], sizes = [1, 288], strides = [1, 1]} : vector<4x288xf32> to vector<1x288xf32>
    %132 = vector.broadcast %16 : vector<4x1xf32> to vector<4x288xf32>
    %133 = vector.broadcast %131 : vector<1x288xf32> to vector<4x288xf32>
    %134 = arith.mulf %132, %133 : vector<4x288xf32>
    %135 = arith.addf %130, %134 : vector<4x288xf32>
    %136 = vector.extract_strided_slice %125 {offsets = [2, 0], sizes = [1, 288], strides = [1, 1]} : vector<4x288xf32> to vector<1x288xf32>
    %137 = vector.broadcast %25 : vector<4x1xf32> to vector<4x288xf32>
    %138 = vector.broadcast %136 : vector<1x288xf32> to vector<4x288xf32>
    %139 = arith.mulf %137, %138 : vector<4x288xf32>
    %140 = arith.addf %135, %139 : vector<4x288xf32>
    %141 = vector.extract_strided_slice %125 {offsets = [3, 0], sizes = [1, 288], strides = [1, 1]} : vector<4x288xf32> to vector<1x288xf32>
    %142 = vector.broadcast %34 : vector<4x1xf32> to vector<4x288xf32>
    %143 = vector.broadcast %141 : vector<1x288xf32> to vector<4x288xf32>
    %144 = arith.mulf %142, %143 : vector<4x288xf32>
    %145 = arith.addf %140, %144 : vector<4x288xf32>
    %146 = vector.extract_strided_slice %80 {offsets = [0, 18], sizes = [4, 288], strides = [1, 1]} : vector<4x384xf32> to vector<4x288xf32>
    %147 = vector.extract_strided_slice %146 {offsets = [0, 0], sizes = [1, 288], strides = [1, 1]} : vector<4x288xf32> to vector<1x288xf32>
    %148 = vector.broadcast %8 : vector<4x1xf32> to vector<4x288xf32>
    %149 = vector.broadcast %147 : vector<1x288xf32> to vector<4x288xf32>
    %150 = arith.mulf %148, %149 : vector<4x288xf32>
    %151 = arith.addf %145, %150 : vector<4x288xf32>
    %152 = vector.extract_strided_slice %146 {offsets = [1, 0], sizes = [1, 288], strides = [1, 1]} : vector<4x288xf32> to vector<1x288xf32>
    %153 = vector.broadcast %17 : vector<4x1xf32> to vector<4x288xf32>
    %154 = vector.broadcast %152 : vector<1x288xf32> to vector<4x288xf32>
    %155 = arith.mulf %153, %154 : vector<4x288xf32>
    %156 = arith.addf %151, %155 : vector<4x288xf32>
    %157 = vector.extract_strided_slice %146 {offsets = [2, 0], sizes = [1, 288], strides = [1, 1]} : vector<4x288xf32> to vector<1x288xf32>
    %158 = vector.broadcast %26 : vector<4x1xf32> to vector<4x288xf32>
    %159 = vector.broadcast %157 : vector<1x288xf32> to vector<4x288xf32>
    %160 = arith.mulf %158, %159 : vector<4x288xf32>
    %161 = arith.addf %156, %160 : vector<4x288xf32>
    %162 = vector.extract_strided_slice %146 {offsets = [3, 0], sizes = [1, 288], strides = [1, 1]} : vector<4x288xf32> to vector<1x288xf32>
    %163 = vector.broadcast %35 : vector<4x1xf32> to vector<4x288xf32>
    %164 = vector.broadcast %162 : vector<1x288xf32> to vector<4x288xf32>
    %165 = arith.mulf %163, %164 : vector<4x288xf32>
    %166 = arith.addf %161, %165 : vector<4x288xf32>
    %167 = vector.extract_strided_slice %80 {offsets = [0, 19], sizes = [4, 288], strides = [1, 1]} : vector<4x384xf32> to vector<4x288xf32>
    %168 = vector.extract_strided_slice %167 {offsets = [0, 0], sizes = [1, 288], strides = [1, 1]} : vector<4x288xf32> to vector<1x288xf32>
    %169 = vector.broadcast %9 : vector<4x1xf32> to vector<4x288xf32>
    %170 = vector.broadcast %168 : vector<1x288xf32> to vector<4x288xf32>
    %171 = arith.mulf %169, %170 : vector<4x288xf32>
    %172 = arith.addf %166, %171 : vector<4x288xf32>
    %173 = vector.extract_strided_slice %167 {offsets = [1, 0], sizes = [1, 288], strides = [1, 1]} : vector<4x288xf32> to vector<1x288xf32>
    %174 = vector.broadcast %18 : vector<4x1xf32> to vector<4x288xf32>
    %175 = vector.broadcast %173 : vector<1x288xf32> to vector<4x288xf32>
    %176 = arith.mulf %174, %175 : vector<4x288xf32>
    %177 = arith.addf %172, %176 : vector<4x288xf32>
    %178 = vector.extract_strided_slice %167 {offsets = [2, 0], sizes = [1, 288], strides = [1, 1]} : vector<4x288xf32> to vector<1x288xf32>
    %179 = vector.broadcast %27 : vector<4x1xf32> to vector<4x288xf32>
    %180 = vector.broadcast %178 : vector<1x288xf32> to vector<4x288xf32>
    %181 = arith.mulf %179, %180 : vector<4x288xf32>
    %182 = arith.addf %177, %181 : vector<4x288xf32>
    %183 = vector.extract_strided_slice %167 {offsets = [3, 0], sizes = [1, 288], strides = [1, 1]} : vector<4x288xf32> to vector<1x288xf32>
    %184 = vector.broadcast %36 : vector<4x1xf32> to vector<4x288xf32>
    %185 = vector.broadcast %183 : vector<1x288xf32> to vector<4x288xf32>
    %186 = arith.mulf %184, %185 : vector<4x288xf32>
    %187 = arith.addf %182, %186 : vector<4x288xf32>
    %188 = vector.extract_strided_slice %80 {offsets = [0, 20], sizes = [4, 288], strides = [1, 1]} : vector<4x384xf32> to vector<4x288xf32>
    %189 = vector.extract_strided_slice %188 {offsets = [0, 0], sizes = [1, 288], strides = [1, 1]} : vector<4x288xf32> to vector<1x288xf32>
    %190 = vector.broadcast %10 : vector<4x1xf32> to vector<4x288xf32>
    %191 = vector.broadcast %189 : vector<1x288xf32> to vector<4x288xf32>
    %192 = arith.mulf %190, %191 : vector<4x288xf32>
    %193 = arith.addf %187, %192 : vector<4x288xf32>
    %194 = vector.extract_strided_slice %188 {offsets = [1, 0], sizes = [1, 288], strides = [1, 1]} : vector<4x288xf32> to vector<1x288xf32>
    %195 = vector.broadcast %19 : vector<4x1xf32> to vector<4x288xf32>
    %196 = vector.broadcast %194 : vector<1x288xf32> to vector<4x288xf32>
    %197 = arith.mulf %195, %196 : vector<4x288xf32>
    %198 = arith.addf %193, %197 : vector<4x288xf32>
    %199 = vector.extract_strided_slice %188 {offsets = [2, 0], sizes = [1, 288], strides = [1, 1]} : vector<4x288xf32> to vector<1x288xf32>
    %200 = vector.broadcast %28 : vector<4x1xf32> to vector<4x288xf32>
    %201 = vector.broadcast %199 : vector<1x288xf32> to vector<4x288xf32>
    %202 = arith.mulf %200, %201 : vector<4x288xf32>
    %203 = arith.addf %198, %202 : vector<4x288xf32>
    %204 = vector.extract_strided_slice %188 {offsets = [3, 0], sizes = [1, 288], strides = [1, 1]} : vector<4x288xf32> to vector<1x288xf32>
    %205 = vector.broadcast %37 : vector<4x1xf32> to vector<4x288xf32>
    %206 = vector.broadcast %204 : vector<1x288xf32> to vector<4x288xf32>
    %207 = arith.mulf %205, %206 : vector<4x288xf32>
    %208 = arith.addf %203, %207 : vector<4x288xf32>
    %209 = vector.extract_strided_slice %80 {offsets = [0, 36], sizes = [4, 288], strides = [1, 1]} : vector<4x384xf32> to vector<4x288xf32>
    %210 = vector.extract_strided_slice %209 {offsets = [0, 0], sizes = [1, 288], strides = [1, 1]} : vector<4x288xf32> to vector<1x288xf32>
    %211 = vector.broadcast %11 : vector<4x1xf32> to vector<4x288xf32>
    %212 = vector.broadcast %210 : vector<1x288xf32> to vector<4x288xf32>
    %213 = arith.mulf %211, %212 : vector<4x288xf32>
    %214 = arith.addf %208, %213 : vector<4x288xf32>
    %215 = vector.extract_strided_slice %209 {offsets = [1, 0], sizes = [1, 288], strides = [1, 1]} : vector<4x288xf32> to vector<1x288xf32>
    %216 = vector.broadcast %20 : vector<4x1xf32> to vector<4x288xf32>
    %217 = vector.broadcast %215 : vector<1x288xf32> to vector<4x288xf32>
    %218 = arith.mulf %216, %217 : vector<4x288xf32>
    %219 = arith.addf %214, %218 : vector<4x288xf32>
    %220 = vector.extract_strided_slice %209 {offsets = [2, 0], sizes = [1, 288], strides = [1, 1]} : vector<4x288xf32> to vector<1x288xf32>
    %221 = vector.broadcast %29 : vector<4x1xf32> to vector<4x288xf32>
    %222 = vector.broadcast %220 : vector<1x288xf32> to vector<4x288xf32>
    %223 = arith.mulf %221, %222 : vector<4x288xf32>
    %224 = arith.addf %219, %223 : vector<4x288xf32>
    %225 = vector.extract_strided_slice %209 {offsets = [3, 0], sizes = [1, 288], strides = [1, 1]} : vector<4x288xf32> to vector<1x288xf32>
    %226 = vector.broadcast %38 : vector<4x1xf32> to vector<4x288xf32>
    %227 = vector.broadcast %225 : vector<1x288xf32> to vector<4x288xf32>
    %228 = arith.mulf %226, %227 : vector<4x288xf32>
    %229 = arith.addf %224, %228 : vector<4x288xf32>
    %230 = vector.extract_strided_slice %80 {offsets = [0, 37], sizes = [4, 288], strides = [1, 1]} : vector<4x384xf32> to vector<4x288xf32>
    %231 = vector.extract_strided_slice %230 {offsets = [0, 0], sizes = [1, 288], strides = [1, 1]} : vector<4x288xf32> to vector<1x288xf32>
    %232 = vector.broadcast %12 : vector<4x1xf32> to vector<4x288xf32>
    %233 = vector.broadcast %231 : vector<1x288xf32> to vector<4x288xf32>
    %234 = arith.mulf %232, %233 : vector<4x288xf32>
    %235 = arith.addf %229, %234 : vector<4x288xf32>
    %236 = vector.extract_strided_slice %230 {offsets = [1, 0], sizes = [1, 288], strides = [1, 1]} : vector<4x288xf32> to vector<1x288xf32>
    %237 = vector.broadcast %21 : vector<4x1xf32> to vector<4x288xf32>
    %238 = vector.broadcast %236 : vector<1x288xf32> to vector<4x288xf32>
    %239 = arith.mulf %237, %238 : vector<4x288xf32>
    %240 = arith.addf %235, %239 : vector<4x288xf32>
    %241 = vector.extract_strided_slice %230 {offsets = [2, 0], sizes = [1, 288], strides = [1, 1]} : vector<4x288xf32> to vector<1x288xf32>
    %242 = vector.broadcast %30 : vector<4x1xf32> to vector<4x288xf32>
    %243 = vector.broadcast %241 : vector<1x288xf32> to vector<4x288xf32>
    %244 = arith.mulf %242, %243 : vector<4x288xf32>
    %245 = arith.addf %240, %244 : vector<4x288xf32>
    %246 = vector.extract_strided_slice %230 {offsets = [3, 0], sizes = [1, 288], strides = [1, 1]} : vector<4x288xf32> to vector<1x288xf32>
    %247 = vector.broadcast %39 : vector<4x1xf32> to vector<4x288xf32>
    %248 = vector.broadcast %246 : vector<1x288xf32> to vector<4x288xf32>
    %249 = arith.mulf %247, %248 : vector<4x288xf32>
    %250 = arith.addf %245, %249 : vector<4x288xf32>
    %251 = vector.extract_strided_slice %80 {offsets = [0, 38], sizes = [4, 288], strides = [1, 1]} : vector<4x384xf32> to vector<4x288xf32>
    %252 = vector.extract_strided_slice %251 {offsets = [0, 0], sizes = [1, 288], strides = [1, 1]} : vector<4x288xf32> to vector<1x288xf32>
    %253 = vector.broadcast %13 : vector<4x1xf32> to vector<4x288xf32>
    %254 = vector.broadcast %252 : vector<1x288xf32> to vector<4x288xf32>
    %255 = arith.mulf %253, %254 : vector<4x288xf32>
    %256 = arith.addf %250, %255 : vector<4x288xf32>
    %257 = vector.extract_strided_slice %251 {offsets = [1, 0], sizes = [1, 288], strides = [1, 1]} : vector<4x288xf32> to vector<1x288xf32>
    %258 = vector.broadcast %22 : vector<4x1xf32> to vector<4x288xf32>
    %259 = vector.broadcast %257 : vector<1x288xf32> to vector<4x288xf32>
    %260 = arith.mulf %258, %259 : vector<4x288xf32>
    %261 = arith.addf %256, %260 : vector<4x288xf32>
    %262 = vector.extract_strided_slice %251 {offsets = [2, 0], sizes = [1, 288], strides = [1, 1]} : vector<4x288xf32> to vector<1x288xf32>
    %263 = vector.broadcast %31 : vector<4x1xf32> to vector<4x288xf32>
    %264 = vector.broadcast %262 : vector<1x288xf32> to vector<4x288xf32>
    %265 = arith.mulf %263, %264 : vector<4x288xf32>
    %266 = arith.addf %261, %265 : vector<4x288xf32>
    %267 = vector.extract_strided_slice %251 {offsets = [3, 0], sizes = [1, 288], strides = [1, 1]} : vector<4x288xf32> to vector<1x288xf32>
    %268 = vector.broadcast %40 : vector<4x1xf32> to vector<4x288xf32>
    %269 = vector.broadcast %267 : vector<1x288xf32> to vector<4x288xf32>
    %270 = arith.mulf %268, %269 : vector<4x288xf32>
    %271 = arith.addf %266, %270 : vector<4x288xf32>
    %272 = vector.broadcast %0 : vector<1x288xf32> to vector<4x288xf32>
    %273 = arith.mulf %271, %272 : vector<4x288xf32>
    %cst_13 = arith.constant dense<0.000000e+00> : vector<4xf32>
    %274 = vector.multi_reduction <add>, %273, %cst_13 [1] : vector<4x288xf32> to vector<4xf32>
    %275 = vector.shape_cast %274 : vector<4xf32> to vector<4x1xf32>
    %276 = arith.mulf %273, %273 : vector<4x288xf32>
    %cst_14 = arith.constant dense<0.000000e+00> : vector<4xf32>
    %277 = vector.multi_reduction <add>, %276, %cst_14 [1] : vector<4x288xf32> to vector<4xf32>
    %278 = vector.shape_cast %277 : vector<4xf32> to vector<4x1xf32>
    %cst_15 = arith.constant 3.906250e-03 : f32
    %279 = vector.broadcast %cst_15 : f32 to vector<4x1xf32>
    %280 = arith.mulf %275, %279 : vector<4x1xf32>
    %cst_16 = arith.constant 3.906250e-03 : f32
    %281 = vector.broadcast %cst_16 : f32 to vector<4x1xf32>
    %282 = arith.mulf %278, %281 : vector<4x1xf32>
    %283 = arith.mulf %280, %280 : vector<4x1xf32>
    %284 = arith.subf %282, %283 : vector<4x1xf32>
    %285 = vector.broadcast %280 : vector<4x1xf32> to vector<4x288xf32>
    %286 = arith.subf %271, %285 : vector<4x288xf32>
    %cst_17 = arith.constant 9.99999974E-6 : f32
    %287 = vector.broadcast %cst_17 : f32 to vector<4x1xf32>
    %288 = arith.addf %284, %287 : vector<4x1xf32>
    %289 = math.rsqrt %288 : vector<4x1xf32>
    %290 = vector.broadcast %289 : vector<4x1xf32> to vector<4x288xf32>
    %291 = arith.mulf %286, %290 : vector<4x288xf32>
    %cst_18 = arith.constant 0.000000e+00 : f32
    %292 = vector.broadcast %cst_18 : f32 to vector<4x288xf32>
    %293 = arith.maximumf %291, %292 : vector<4x288xf32>
    %294 = vector.broadcast %0 : vector<1x288xf32> to vector<4x288xf32>
    %295 = arith.mulf %293, %294 : vector<4x288xf32>
    %296 = tpu.concatenate %77, %295, %78 in 1 : vector<4x19xf32>, vector<4x288xf32>, vector<4x77xf32> -> vector<4x384xf32>
    %297 = vector.shape_cast %4 : vector<4x1xf32> to vector<4x1xf32>
    %298 = vector.broadcast %297 : vector<4x1xf32> to vector<4x288xf32>
    %299 = vector.extract_strided_slice %296 {offsets = [0, 0], sizes = [4, 288], strides = [1, 1]} : vector<4x384xf32> to vector<4x288xf32>
    %300 = vector.extract_strided_slice %299 {offsets = [0, 0], sizes = [1, 288], strides = [1, 1]} : vector<4x288xf32> to vector<1x288xf32>
    %301 = vector.broadcast %41 : vector<4x1xf32> to vector<4x288xf32>
    %302 = vector.broadcast %300 : vector<1x288xf32> to vector<4x288xf32>
    %303 = arith.mulf %301, %302 : vector<4x288xf32>
    %304 = arith.addf %298, %303 : vector<4x288xf32>
    %305 = vector.extract_strided_slice %299 {offsets = [1, 0], sizes = [1, 288], strides = [1, 1]} : vector<4x288xf32> to vector<1x288xf32>
    %306 = vector.broadcast %50 : vector<4x1xf32> to vector<4x288xf32>
    %307 = vector.broadcast %305 : vector<1x288xf32> to vector<4x288xf32>
    %308 = arith.mulf %306, %307 : vector<4x288xf32>
    %309 = arith.addf %304, %308 : vector<4x288xf32>
    %310 = vector.extract_strided_slice %299 {offsets = [2, 0], sizes = [1, 288], strides = [1, 1]} : vector<4x288xf32> to vector<1x288xf32>
    %311 = vector.broadcast %59 : vector<4x1xf32> to vector<4x288xf32>
    %312 = vector.broadcast %310 : vector<1x288xf32> to vector<4x288xf32>
    %313 = arith.mulf %311, %312 : vector<4x288xf32>
    %314 = arith.addf %309, %313 : vector<4x288xf32>
    %315 = vector.extract_strided_slice %299 {offsets = [3, 0], sizes = [1, 288], strides = [1, 1]} : vector<4x288xf32> to vector<1x288xf32>
    %316 = vector.broadcast %68 : vector<4x1xf32> to vector<4x288xf32>
    %317 = vector.broadcast %315 : vector<1x288xf32> to vector<4x288xf32>
    %318 = arith.mulf %316, %317 : vector<4x288xf32>
    %319 = arith.addf %314, %318 : vector<4x288xf32>
    %320 = vector.extract_strided_slice %296 {offsets = [0, 1], sizes = [4, 288], strides = [1, 1]} : vector<4x384xf32> to vector<4x288xf32>
    %321 = vector.extract_strided_slice %320 {offsets = [0, 0], sizes = [1, 288], strides = [1, 1]} : vector<4x288xf32> to vector<1x288xf32>
    %322 = vector.broadcast %42 : vector<4x1xf32> to vector<4x288xf32>
    %323 = vector.broadcast %321 : vector<1x288xf32> to vector<4x288xf32>
    %324 = arith.mulf %322, %323 : vector<4x288xf32>
    %325 = arith.addf %319, %324 : vector<4x288xf32>
    %326 = vector.extract_strided_slice %320 {offsets = [1, 0], sizes = [1, 288], strides = [1, 1]} : vector<4x288xf32> to vector<1x288xf32>
    %327 = vector.broadcast %51 : vector<4x1xf32> to vector<4x288xf32>
    %328 = vector.broadcast %326 : vector<1x288xf32> to vector<4x288xf32>
    %329 = arith.mulf %327, %328 : vector<4x288xf32>
    %330 = arith.addf %325, %329 : vector<4x288xf32>
    %331 = vector.extract_strided_slice %320 {offsets = [2, 0], sizes = [1, 288], strides = [1, 1]} : vector<4x288xf32> to vector<1x288xf32>
    %332 = vector.broadcast %60 : vector<4x1xf32> to vector<4x288xf32>
    %333 = vector.broadcast %331 : vector<1x288xf32> to vector<4x288xf32>
    %334 = arith.mulf %332, %333 : vector<4x288xf32>
    %335 = arith.addf %330, %334 : vector<4x288xf32>
    %336 = vector.extract_strided_slice %320 {offsets = [3, 0], sizes = [1, 288], strides = [1, 1]} : vector<4x288xf32> to vector<1x288xf32>
    %337 = vector.broadcast %69 : vector<4x1xf32> to vector<4x288xf32>
    %338 = vector.broadcast %336 : vector<1x288xf32> to vector<4x288xf32>
    %339 = arith.mulf %337, %338 : vector<4x288xf32>
    %340 = arith.addf %335, %339 : vector<4x288xf32>
    %341 = vector.extract_strided_slice %296 {offsets = [0, 2], sizes = [4, 288], strides = [1, 1]} : vector<4x384xf32> to vector<4x288xf32>
    %342 = vector.extract_strided_slice %341 {offsets = [0, 0], sizes = [1, 288], strides = [1, 1]} : vector<4x288xf32> to vector<1x288xf32>
    %343 = vector.broadcast %43 : vector<4x1xf32> to vector<4x288xf32>
    %344 = vector.broadcast %342 : vector<1x288xf32> to vector<4x288xf32>
    %345 = arith.mulf %343, %344 : vector<4x288xf32>
    %346 = arith.addf %340, %345 : vector<4x288xf32>
    %347 = vector.extract_strided_slice %341 {offsets = [1, 0], sizes = [1, 288], strides = [1, 1]} : vector<4x288xf32> to vector<1x288xf32>
    %348 = vector.broadcast %52 : vector<4x1xf32> to vector<4x288xf32>
    %349 = vector.broadcast %347 : vector<1x288xf32> to vector<4x288xf32>
    %350 = arith.mulf %348, %349 : vector<4x288xf32>
    %351 = arith.addf %346, %350 : vector<4x288xf32>
    %352 = vector.extract_strided_slice %341 {offsets = [2, 0], sizes = [1, 288], strides = [1, 1]} : vector<4x288xf32> to vector<1x288xf32>
    %353 = vector.broadcast %61 : vector<4x1xf32> to vector<4x288xf32>
    %354 = vector.broadcast %352 : vector<1x288xf32> to vector<4x288xf32>
    %355 = arith.mulf %353, %354 : vector<4x288xf32>
    %356 = arith.addf %351, %355 : vector<4x288xf32>
    %357 = vector.extract_strided_slice %341 {offsets = [3, 0], sizes = [1, 288], strides = [1, 1]} : vector<4x288xf32> to vector<1x288xf32>
    %358 = vector.broadcast %70 : vector<4x1xf32> to vector<4x288xf32>
    %359 = vector.broadcast %357 : vector<1x288xf32> to vector<4x288xf32>
    %360 = arith.mulf %358, %359 : vector<4x288xf32>
    %361 = arith.addf %356, %360 : vector<4x288xf32>
    %362 = vector.extract_strided_slice %296 {offsets = [0, 18], sizes = [4, 288], strides = [1, 1]} : vector<4x384xf32> to vector<4x288xf32>
    %363 = vector.extract_strided_slice %362 {offsets = [0, 0], sizes = [1, 288], strides = [1, 1]} : vector<4x288xf32> to vector<1x288xf32>
    %364 = vector.broadcast %44 : vector<4x1xf32> to vector<4x288xf32>
    %365 = vector.broadcast %363 : vector<1x288xf32> to vector<4x288xf32>
    %366 = arith.mulf %364, %365 : vector<4x288xf32>
    %367 = arith.addf %361, %366 : vector<4x288xf32>
    %368 = vector.extract_strided_slice %362 {offsets = [1, 0], sizes = [1, 288], strides = [1, 1]} : vector<4x288xf32> to vector<1x288xf32>
    %369 = vector.broadcast %53 : vector<4x1xf32> to vector<4x288xf32>
    %370 = vector.broadcast %368 : vector<1x288xf32> to vector<4x288xf32>
    %371 = arith.mulf %369, %370 : vector<4x288xf32>
    %372 = arith.addf %367, %371 : vector<4x288xf32>
    %373 = vector.extract_strided_slice %362 {offsets = [2, 0], sizes = [1, 288], strides = [1, 1]} : vector<4x288xf32> to vector<1x288xf32>
    %374 = vector.broadcast %62 : vector<4x1xf32> to vector<4x288xf32>
    %375 = vector.broadcast %373 : vector<1x288xf32> to vector<4x288xf32>
    %376 = arith.mulf %374, %375 : vector<4x288xf32>
    %377 = arith.addf %372, %376 : vector<4x288xf32>
    %378 = vector.extract_strided_slice %362 {offsets = [3, 0], sizes = [1, 288], strides = [1, 1]} : vector<4x288xf32> to vector<1x288xf32>
    %379 = vector.broadcast %71 : vector<4x1xf32> to vector<4x288xf32>
    %380 = vector.broadcast %378 : vector<1x288xf32> to vector<4x288xf32>
    %381 = arith.mulf %379, %380 : vector<4x288xf32>
    %382 = arith.addf %377, %381 : vector<4x288xf32>
    %383 = vector.extract_strided_slice %296 {offsets = [0, 19], sizes = [4, 288], strides = [1, 1]} : vector<4x384xf32> to vector<4x288xf32>
    %384 = vector.extract_strided_slice %383 {offsets = [0, 0], sizes = [1, 288], strides = [1, 1]} : vector<4x288xf32> to vector<1x288xf32>
    %385 = vector.broadcast %45 : vector<4x1xf32> to vector<4x288xf32>
    %386 = vector.broadcast %384 : vector<1x288xf32> to vector<4x288xf32>
    %387 = arith.mulf %385, %386 : vector<4x288xf32>
    %388 = arith.addf %382, %387 : vector<4x288xf32>
    %389 = vector.extract_strided_slice %383 {offsets = [1, 0], sizes = [1, 288], strides = [1, 1]} : vector<4x288xf32> to vector<1x288xf32>
    %390 = vector.broadcast %54 : vector<4x1xf32> to vector<4x288xf32>
    %391 = vector.broadcast %389 : vector<1x288xf32> to vector<4x288xf32>
    %392 = arith.mulf %390, %391 : vector<4x288xf32>
    %393 = arith.addf %388, %392 : vector<4x288xf32>
    %394 = vector.extract_strided_slice %383 {offsets = [2, 0], sizes = [1, 288], strides = [1, 1]} : vector<4x288xf32> to vector<1x288xf32>
    %395 = vector.broadcast %63 : vector<4x1xf32> to vector<4x288xf32>
    %396 = vector.broadcast %394 : vector<1x288xf32> to vector<4x288xf32>
    %397 = arith.mulf %395, %396 : vector<4x288xf32>
    %398 = arith.addf %393, %397 : vector<4x288xf32>
    %399 = vector.extract_strided_slice %383 {offsets = [3, 0], sizes = [1, 288], strides = [1, 1]} : vector<4x288xf32> to vector<1x288xf32>
    %400 = vector.broadcast %72 : vector<4x1xf32> to vector<4x288xf32>
    %401 = vector.broadcast %399 : vector<1x288xf32> to vector<4x288xf32>
    %402 = arith.mulf %400, %401 : vector<4x288xf32>
    %403 = arith.addf %398, %402 : vector<4x288xf32>
    %404 = vector.extract_strided_slice %296 {offsets = [0, 20], sizes = [4, 288], strides = [1, 1]} : vector<4x384xf32> to vector<4x288xf32>
    %405 = vector.extract_strided_slice %404 {offsets = [0, 0], sizes = [1, 288], strides = [1, 1]} : vector<4x288xf32> to vector<1x288xf32>
    %406 = vector.broadcast %46 : vector<4x1xf32> to vector<4x288xf32>
    %407 = vector.broadcast %405 : vector<1x288xf32> to vector<4x288xf32>
    %408 = arith.mulf %406, %407 : vector<4x288xf32>
    %409 = arith.addf %403, %408 : vector<4x288xf32>
    %410 = vector.extract_strided_slice %404 {offsets = [1, 0], sizes = [1, 288], strides = [1, 1]} : vector<4x288xf32> to vector<1x288xf32>
    %411 = vector.broadcast %55 : vector<4x1xf32> to vector<4x288xf32>
    %412 = vector.broadcast %410 : vector<1x288xf32> to vector<4x288xf32>
    %413 = arith.mulf %411, %412 : vector<4x288xf32>
    %414 = arith.addf %409, %413 : vector<4x288xf32>
    %415 = vector.extract_strided_slice %404 {offsets = [2, 0], sizes = [1, 288], strides = [1, 1]} : vector<4x288xf32> to vector<1x288xf32>
    %416 = vector.broadcast %64 : vector<4x1xf32> to vector<4x288xf32>
    %417 = vector.broadcast %415 : vector<1x288xf32> to vector<4x288xf32>
    %418 = arith.mulf %416, %417 : vector<4x288xf32>
    %419 = arith.addf %414, %418 : vector<4x288xf32>
    %420 = vector.extract_strided_slice %404 {offsets = [3, 0], sizes = [1, 288], strides = [1, 1]} : vector<4x288xf32> to vector<1x288xf32>
    %421 = vector.broadcast %73 : vector<4x1xf32> to vector<4x288xf32>
    %422 = vector.broadcast %420 : vector<1x288xf32> to vector<4x288xf32>
    %423 = arith.mulf %421, %422 : vector<4x288xf32>
    %424 = arith.addf %419, %423 : vector<4x288xf32>
    %425 = vector.extract_strided_slice %296 {offsets = [0, 36], sizes = [4, 288], strides = [1, 1]} : vector<4x384xf32> to vector<4x288xf32>
    %426 = vector.extract_strided_slice %425 {offsets = [0, 0], sizes = [1, 288], strides = [1, 1]} : vector<4x288xf32> to vector<1x288xf32>
    %427 = vector.broadcast %47 : vector<4x1xf32> to vector<4x288xf32>
    %428 = vector.broadcast %426 : vector<1x288xf32> to vector<4x288xf32>
    %429 = arith.mulf %427, %428 : vector<4x288xf32>
    %430 = arith.addf %424, %429 : vector<4x288xf32>
    %431 = vector.extract_strided_slice %425 {offsets = [1, 0], sizes = [1, 288], strides = [1, 1]} : vector<4x288xf32> to vector<1x288xf32>
    %432 = vector.broadcast %56 : vector<4x1xf32> to vector<4x288xf32>
    %433 = vector.broadcast %431 : vector<1x288xf32> to vector<4x288xf32>
    %434 = arith.mulf %432, %433 : vector<4x288xf32>
    %435 = arith.addf %430, %434 : vector<4x288xf32>
    %436 = vector.extract_strided_slice %425 {offsets = [2, 0], sizes = [1, 288], strides = [1, 1]} : vector<4x288xf32> to vector<1x288xf32>
    %437 = vector.broadcast %65 : vector<4x1xf32> to vector<4x288xf32>
    %438 = vector.broadcast %436 : vector<1x288xf32> to vector<4x288xf32>
    %439 = arith.mulf %437, %438 : vector<4x288xf32>
    %440 = arith.addf %435, %439 : vector<4x288xf32>
    %441 = vector.extract_strided_slice %425 {offsets = [3, 0], sizes = [1, 288], strides = [1, 1]} : vector<4x288xf32> to vector<1x288xf32>
    %442 = vector.broadcast %74 : vector<4x1xf32> to vector<4x288xf32>
    %443 = vector.broadcast %441 : vector<1x288xf32> to vector<4x288xf32>
    %444 = arith.mulf %442, %443 : vector<4x288xf32>
    %445 = arith.addf %440, %444 : vector<4x288xf32>
    %446 = vector.extract_strided_slice %296 {offsets = [0, 37], sizes = [4, 288], strides = [1, 1]} : vector<4x384xf32> to vector<4x288xf32>
    %447 = vector.extract_strided_slice %446 {offsets = [0, 0], sizes = [1, 288], strides = [1, 1]} : vector<4x288xf32> to vector<1x288xf32>
    %448 = vector.broadcast %48 : vector<4x1xf32> to vector<4x288xf32>
    %449 = vector.broadcast %447 : vector<1x288xf32> to vector<4x288xf32>
    %450 = arith.mulf %448, %449 : vector<4x288xf32>
    %451 = arith.addf %445, %450 : vector<4x288xf32>
    %452 = vector.extract_strided_slice %446 {offsets = [1, 0], sizes = [1, 288], strides = [1, 1]} : vector<4x288xf32> to vector<1x288xf32>
    %453 = vector.broadcast %57 : vector<4x1xf32> to vector<4x288xf32>
    %454 = vector.broadcast %452 : vector<1x288xf32> to vector<4x288xf32>
    %455 = arith.mulf %453, %454 : vector<4x288xf32>
    %456 = arith.addf %451, %455 : vector<4x288xf32>
    %457 = vector.extract_strided_slice %446 {offsets = [2, 0], sizes = [1, 288], strides = [1, 1]} : vector<4x288xf32> to vector<1x288xf32>
    %458 = vector.broadcast %66 : vector<4x1xf32> to vector<4x288xf32>
    %459 = vector.broadcast %457 : vector<1x288xf32> to vector<4x288xf32>
    %460 = arith.mulf %458, %459 : vector<4x288xf32>
    %461 = arith.addf %456, %460 : vector<4x288xf32>
    %462 = vector.extract_strided_slice %446 {offsets = [3, 0], sizes = [1, 288], strides = [1, 1]} : vector<4x288xf32> to vector<1x288xf32>
    %463 = vector.broadcast %75 : vector<4x1xf32> to vector<4x288xf32>
    %464 = vector.broadcast %462 : vector<1x288xf32> to vector<4x288xf32>
    %465 = arith.mulf %463, %464 : vector<4x288xf32>
    %466 = arith.addf %461, %465 : vector<4x288xf32>
    %467 = vector.extract_strided_slice %296 {offsets = [0, 38], sizes = [4, 288], strides = [1, 1]} : vector<4x384xf32> to vector<4x288xf32>
    %468 = vector.extract_strided_slice %467 {offsets = [0, 0], sizes = [1, 288], strides = [1, 1]} : vector<4x288xf32> to vector<1x288xf32>
    %469 = vector.broadcast %49 : vector<4x1xf32> to vector<4x288xf32>
    %470 = vector.broadcast %468 : vector<1x288xf32> to vector<4x288xf32>
    %471 = arith.mulf %469, %470 : vector<4x288xf32>
    %472 = arith.addf %466, %471 : vector<4x288xf32>
    %473 = vector.extract_strided_slice %467 {offsets = [1, 0], sizes = [1, 288], strides = [1, 1]} : vector<4x288xf32> to vector<1x288xf32>
    %474 = vector.broadcast %58 : vector<4x1xf32> to vector<4x288xf32>
    %475 = vector.broadcast %473 : vector<1x288xf32> to vector<4x288xf32>
    %476 = arith.mulf %474, %475 : vector<4x288xf32>
    %477 = arith.addf %472, %476 : vector<4x288xf32>
    %478 = vector.extract_strided_slice %467 {offsets = [2, 0], sizes = [1, 288], strides = [1, 1]} : vector<4x288xf32> to vector<1x288xf32>
    %479 = vector.broadcast %67 : vector<4x1xf32> to vector<4x288xf32>
    %480 = vector.broadcast %478 : vector<1x288xf32> to vector<4x288xf32>
    %481 = arith.mulf %479, %480 : vector<4x288xf32>
    %482 = arith.addf %477, %481 : vector<4x288xf32>
    %483 = vector.extract_strided_slice %467 {offsets = [3, 0], sizes = [1, 288], strides = [1, 1]} : vector<4x288xf32> to vector<1x288xf32>
    %484 = vector.broadcast %76 : vector<4x1xf32> to vector<4x288xf32>
    %485 = vector.broadcast %483 : vector<1x288xf32> to vector<4x288xf32>
    %486 = arith.mulf %484, %485 : vector<4x288xf32>
    %487 = arith.addf %482, %486 : vector<4x288xf32>
    %488 = vector.broadcast %0 : vector<1x288xf32> to vector<4x288xf32>
    %489 = arith.mulf %487, %488 : vector<4x288xf32>
    %cst_19 = arith.constant dense<0.000000e+00> : vector<4xf32>
    %490 = vector.multi_reduction <add>, %489, %cst_19 [1] : vector<4x288xf32> to vector<4xf32>
    %491 = vector.shape_cast %490 : vector<4xf32> to vector<4x1xf32>
    %492 = arith.mulf %489, %489 : vector<4x288xf32>
    %cst_20 = arith.constant dense<0.000000e+00> : vector<4xf32>
    %493 = vector.multi_reduction <add>, %492, %cst_20 [1] : vector<4x288xf32> to vector<4xf32>
    %494 = vector.shape_cast %493 : vector<4xf32> to vector<4x1xf32>
    %cst_21 = arith.constant 3.906250e-03 : f32
    %495 = vector.broadcast %cst_21 : f32 to vector<4x1xf32>
    %496 = arith.mulf %491, %495 : vector<4x1xf32>
    %cst_22 = arith.constant 3.906250e-03 : f32
    %497 = vector.broadcast %cst_22 : f32 to vector<4x1xf32>
    %498 = arith.mulf %494, %497 : vector<4x1xf32>
    %499 = arith.mulf %496, %496 : vector<4x1xf32>
    %500 = arith.subf %498, %499 : vector<4x1xf32>
    %501 = vector.broadcast %496 : vector<4x1xf32> to vector<4x288xf32>
    %502 = arith.subf %487, %501 : vector<4x288xf32>
    %cst_23 = arith.constant 9.99999974E-6 : f32
    %503 = vector.broadcast %cst_23 : f32 to vector<4x1xf32>
    %504 = arith.addf %500, %503 : vector<4x1xf32>
    %505 = math.rsqrt %504 : vector<4x1xf32>
    %506 = vector.broadcast %505 : vector<4x1xf32> to vector<4x288xf32>
    %507 = arith.mulf %502, %506 : vector<4x288xf32>
    %508 = vector.extract_strided_slice %80 {offsets = [0, 19], sizes = [4, 288], strides = [1, 1]} : vector<4x384xf32> to vector<4x288xf32>
    %509 = arith.addf %508, %507 : vector<4x288xf32>
    %c0_24 = arith.constant 0 : index
    %c0_25 = arith.constant 0 : index
    %c0_26 = arith.constant 0 : index
    %510 = vector.load %arg7[%c0_24, %c0_25, %c0_26] : memref<2x4x288xf32, #tpu.memory_space<vmem>>, vector<1x4x288xf32>
    %511 = vector.shape_cast %510 : vector<1x4x288xf32> to vector<4x288xf32>
    %512 = vector.shape_cast %509 : vector<4x288xf32> to vector<1x4x288xf32>
    tpu.vector_store %arg7[%c0_24, %c0_25, %c0_26], %512 {strides = array<i32>} : memref<2x4x288xf32, #tpu.memory_space<vmem>>, vector<1x4x288xf32>,
    %c1 = arith.constant 1 : index
    %c0_27 = arith.constant 0 : index
    %c0_28 = arith.constant 0 : index
    %513 = vector.load %arg1[%c1, %c0_27, %c0_28] : memref<2x4x384xf32, #tpu.memory_space<vmem>>, vector<1x4x384xf32>
    %514 = vector.shape_cast %513 : vector<1x4x384xf32> to vector<4x384xf32>
    %515 = vector.shape_cast %3 : vector<4x1xf32> to vector<4x1xf32>
    %516 = vector.broadcast %515 : vector<4x1xf32> to vector<4x288xf32>
    %517 = vector.extract_strided_slice %514 {offsets = [0, 0], sizes = [4, 288], strides = [1, 1]} : vector<4x384xf32> to vector<4x288xf32>
    %518 = vector.extract_strided_slice %517 {offsets = [0, 0], sizes = [1, 288], strides = [1, 1]} : vector<4x288xf32> to vector<1x288xf32>
    %519 = vector.broadcast %5 : vector<4x1xf32> to vector<4x288xf32>
    %520 = vector.broadcast %518 : vector<1x288xf32> to vector<4x288xf32>
    %521 = arith.mulf %519, %520 : vector<4x288xf32>
    %522 = arith.addf %516, %521 : vector<4x288xf32>
    %523 = vector.extract_strided_slice %517 {offsets = [1, 0], sizes = [1, 288], strides = [1, 1]} : vector<4x288xf32> to vector<1x288xf32>
    %524 = vector.broadcast %14 : vector<4x1xf32> to vector<4x288xf32>
    %525 = vector.broadcast %523 : vector<1x288xf32> to vector<4x288xf32>
    %526 = arith.mulf %524, %525 : vector<4x288xf32>
    %527 = arith.addf %522, %526 : vector<4x288xf32>
    %528 = vector.extract_strided_slice %517 {offsets = [2, 0], sizes = [1, 288], strides = [1, 1]} : vector<4x288xf32> to vector<1x288xf32>
    %529 = vector.broadcast %23 : vector<4x1xf32> to vector<4x288xf32>
    %530 = vector.broadcast %528 : vector<1x288xf32> to vector<4x288xf32>
    %531 = arith.mulf %529, %530 : vector<4x288xf32>
    %532 = arith.addf %527, %531 : vector<4x288xf32>
    %533 = vector.extract_strided_slice %517 {offsets = [3, 0], sizes = [1, 288], strides = [1, 1]} : vector<4x288xf32> to vector<1x288xf32>
    %534 = vector.broadcast %32 : vector<4x1xf32> to vector<4x288xf32>
    %535 = vector.broadcast %533 : vector<1x288xf32> to vector<4x288xf32>
    %536 = arith.mulf %534, %535 : vector<4x288xf32>
    %537 = arith.addf %532, %536 : vector<4x288xf32>
    %538 = vector.extract_strided_slice %514 {offsets = [0, 1], sizes = [4, 288], strides = [1, 1]} : vector<4x384xf32> to vector<4x288xf32>
    %539 = vector.extract_strided_slice %538 {offsets = [0, 0], sizes = [1, 288], strides = [1, 1]} : vector<4x288xf32> to vector<1x288xf32>
    %540 = vector.broadcast %6 : vector<4x1xf32> to vector<4x288xf32>
    %541 = vector.broadcast %539 : vector<1x288xf32> to vector<4x288xf32>
    %542 = arith.mulf %540, %541 : vector<4x288xf32>
    %543 = arith.addf %537, %542 : vector<4x288xf32>
    %544 = vector.extract_strided_slice %538 {offsets = [1, 0], sizes = [1, 288], strides = [1, 1]} : vector<4x288xf32> to vector<1x288xf32>
    %545 = vector.broadcast %15 : vector<4x1xf32> to vector<4x288xf32>
    %546 = vector.broadcast %544 : vector<1x288xf32> to vector<4x288xf32>
    %547 = arith.mulf %545, %546 : vector<4x288xf32>
    %548 = arith.addf %543, %547 : vector<4x288xf32>
    %549 = vector.extract_strided_slice %538 {offsets = [2, 0], sizes = [1, 288], strides = [1, 1]} : vector<4x288xf32> to vector<1x288xf32>
    %550 = vector.broadcast %24 : vector<4x1xf32> to vector<4x288xf32>
    %551 = vector.broadcast %549 : vector<1x288xf32> to vector<4x288xf32>
    %552 = arith.mulf %550, %551 : vector<4x288xf32>
    %553 = arith.addf %548, %552 : vector<4x288xf32>
    %554 = vector.extract_strided_slice %538 {offsets = [3, 0], sizes = [1, 288], strides = [1, 1]} : vector<4x288xf32> to vector<1x288xf32>
    %555 = vector.broadcast %33 : vector<4x1xf32> to vector<4x288xf32>
    %556 = vector.broadcast %554 : vector<1x288xf32> to vector<4x288xf32>
    %557 = arith.mulf %555, %556 : vector<4x288xf32>
    %558 = arith.addf %553, %557 : vector<4x288xf32>
    %559 = vector.extract_strided_slice %514 {offsets = [0, 2], sizes = [4, 288], strides = [1, 1]} : vector<4x384xf32> to vector<4x288xf32>
    %560 = vector.extract_strided_slice %559 {offsets = [0, 0], sizes = [1, 288], strides = [1, 1]} : vector<4x288xf32> to vector<1x288xf32>
    %561 = vector.broadcast %7 : vector<4x1xf32> to vector<4x288xf32>
    %562 = vector.broadcast %560 : vector<1x288xf32> to vector<4x288xf32>
    %563 = arith.mulf %561, %562 : vector<4x288xf32>
    %564 = arith.addf %558, %563 : vector<4x288xf32>
    %565 = vector.extract_strided_slice %559 {offsets = [1, 0], sizes = [1, 288], strides = [1, 1]} : vector<4x288xf32> to vector<1x288xf32>
    %566 = vector.broadcast %16 : vector<4x1xf32> to vector<4x288xf32>
    %567 = vector.broadcast %565 : vector<1x288xf32> to vector<4x288xf32>
    %568 = arith.mulf %566, %567 : vector<4x288xf32>
    %569 = arith.addf %564, %568 : vector<4x288xf32>
    %570 = vector.extract_strided_slice %559 {offsets = [2, 0], sizes = [1, 288], strides = [1, 1]} : vector<4x288xf32> to vector<1x288xf32>
    %571 = vector.broadcast %25 : vector<4x1xf32> to vector<4x288xf32>
    %572 = vector.broadcast %570 : vector<1x288xf32> to vector<4x288xf32>
    %573 = arith.mulf %571, %572 : vector<4x288xf32>
    %574 = arith.addf %569, %573 : vector<4x288xf32>
    %575 = vector.extract_strided_slice %559 {offsets = [3, 0], sizes = [1, 288], strides = [1, 1]} : vector<4x288xf32> to vector<1x288xf32>
    %576 = vector.broadcast %34 : vector<4x1xf32> to vector<4x288xf32>
    %577 = vector.broadcast %575 : vector<1x288xf32> to vector<4x288xf32>
    %578 = arith.mulf %576, %577 : vector<4x288xf32>
    %579 = arith.addf %574, %578 : vector<4x288xf32>
    %580 = vector.extract_strided_slice %514 {offsets = [0, 18], sizes = [4, 288], strides = [1, 1]} : vector<4x384xf32> to vector<4x288xf32>
    %581 = vector.extract_strided_slice %580 {offsets = [0, 0], sizes = [1, 288], strides = [1, 1]} : vector<4x288xf32> to vector<1x288xf32>
    %582 = vector.broadcast %8 : vector<4x1xf32> to vector<4x288xf32>
    %583 = vector.broadcast %581 : vector<1x288xf32> to vector<4x288xf32>
    %584 = arith.mulf %582, %583 : vector<4x288xf32>
    %585 = arith.addf %579, %584 : vector<4x288xf32>
    %586 = vector.extract_strided_slice %580 {offsets = [1, 0], sizes = [1, 288], strides = [1, 1]} : vector<4x288xf32> to vector<1x288xf32>
    %587 = vector.broadcast %17 : vector<4x1xf32> to vector<4x288xf32>
    %588 = vector.broadcast %586 : vector<1x288xf32> to vector<4x288xf32>
    %589 = arith.mulf %587, %588 : vector<4x288xf32>
    %590 = arith.addf %585, %589 : vector<4x288xf32>
    %591 = vector.extract_strided_slice %580 {offsets = [2, 0], sizes = [1, 288], strides = [1, 1]} : vector<4x288xf32> to vector<1x288xf32>
    %592 = vector.broadcast %26 : vector<4x1xf32> to vector<4x288xf32>
    %593 = vector.broadcast %591 : vector<1x288xf32> to vector<4x288xf32>
    %594 = arith.mulf %592, %593 : vector<4x288xf32>
    %595 = arith.addf %590, %594 : vector<4x288xf32>
    %596 = vector.extract_strided_slice %580 {offsets = [3, 0], sizes = [1, 288], strides = [1, 1]} : vector<4x288xf32> to vector<1x288xf32>
    %597 = vector.broadcast %35 : vector<4x1xf32> to vector<4x288xf32>
    %598 = vector.broadcast %596 : vector<1x288xf32> to vector<4x288xf32>
    %599 = arith.mulf %597, %598 : vector<4x288xf32>
    %600 = arith.addf %595, %599 : vector<4x288xf32>
    %601 = vector.extract_strided_slice %514 {offsets = [0, 19], sizes = [4, 288], strides = [1, 1]} : vector<4x384xf32> to vector<4x288xf32>
    %602 = vector.extract_strided_slice %601 {offsets = [0, 0], sizes = [1, 288], strides = [1, 1]} : vector<4x288xf32> to vector<1x288xf32>
    %603 = vector.broadcast %9 : vector<4x1xf32> to vector<4x288xf32>
    %604 = vector.broadcast %602 : vector<1x288xf32> to vector<4x288xf32>
    %605 = arith.mulf %603, %604 : vector<4x288xf32>
    %606 = arith.addf %600, %605 : vector<4x288xf32>
    %607 = vector.extract_strided_slice %601 {offsets = [1, 0], sizes = [1, 288], strides = [1, 1]} : vector<4x288xf32> to vector<1x288xf32>
    %608 = vector.broadcast %18 : vector<4x1xf32> to vector<4x288xf32>
    %609 = vector.broadcast %607 : vector<1x288xf32> to vector<4x288xf32>
    %610 = arith.mulf %608, %609 : vector<4x288xf32>
    %611 = arith.addf %606, %610 : vector<4x288xf32>
    %612 = vector.extract_strided_slice %601 {offsets = [2, 0], sizes = [1, 288], strides = [1, 1]} : vector<4x288xf32> to vector<1x288xf32>
    %613 = vector.broadcast %27 : vector<4x1xf32> to vector<4x288xf32>
    %614 = vector.broadcast %612 : vector<1x288xf32> to vector<4x288xf32>
    %615 = arith.mulf %613, %614 : vector<4x288xf32>
    %616 = arith.addf %611, %615 : vector<4x288xf32>
    %617 = vector.extract_strided_slice %601 {offsets = [3, 0], sizes = [1, 288], strides = [1, 1]} : vector<4x288xf32> to vector<1x288xf32>
    %618 = vector.broadcast %36 : vector<4x1xf32> to vector<4x288xf32>
    %619 = vector.broadcast %617 : vector<1x288xf32> to vector<4x288xf32>
    %620 = arith.mulf %618, %619 : vector<4x288xf32>
    %621 = arith.addf %616, %620 : vector<4x288xf32>
    %622 = vector.extract_strided_slice %514 {offsets = [0, 20], sizes = [4, 288], strides = [1, 1]} : vector<4x384xf32> to vector<4x288xf32>
    %623 = vector.extract_strided_slice %622 {offsets = [0, 0], sizes = [1, 288], strides = [1, 1]} : vector<4x288xf32> to vector<1x288xf32>
    %624 = vector.broadcast %10 : vector<4x1xf32> to vector<4x288xf32>
    %625 = vector.broadcast %623 : vector<1x288xf32> to vector<4x288xf32>
    %626 = arith.mulf %624, %625 : vector<4x288xf32>
    %627 = arith.addf %621, %626 : vector<4x288xf32>
    %628 = vector.extract_strided_slice %622 {offsets = [1, 0], sizes = [1, 288], strides = [1, 1]} : vector<4x288xf32> to vector<1x288xf32>
    %629 = vector.broadcast %19 : vector<4x1xf32> to vector<4x288xf32>
    %630 = vector.broadcast %628 : vector<1x288xf32> to vector<4x288xf32>
    %631 = arith.mulf %629, %630 : vector<4x288xf32>
    %632 = arith.addf %627, %631 : vector<4x288xf32>
    %633 = vector.extract_strided_slice %622 {offsets = [2, 0], sizes = [1, 288], strides = [1, 1]} : vector<4x288xf32> to vector<1x288xf32>
    %634 = vector.broadcast %28 : vector<4x1xf32> to vector<4x288xf32>
    %635 = vector.broadcast %633 : vector<1x288xf32> to vector<4x288xf32>
    %636 = arith.mulf %634, %635 : vector<4x288xf32>
    %637 = arith.addf %632, %636 : vector<4x288xf32>
    %638 = vector.extract_strided_slice %622 {offsets = [3, 0], sizes = [1, 288], strides = [1, 1]} : vector<4x288xf32> to vector<1x288xf32>
    %639 = vector.broadcast %37 : vector<4x1xf32> to vector<4x288xf32>
    %640 = vector.broadcast %638 : vector<1x288xf32> to vector<4x288xf32>
    %641 = arith.mulf %639, %640 : vector<4x288xf32>
    %642 = arith.addf %637, %641 : vector<4x288xf32>
    %643 = vector.extract_strided_slice %514 {offsets = [0, 36], sizes = [4, 288], strides = [1, 1]} : vector<4x384xf32> to vector<4x288xf32>
    %644 = vector.extract_strided_slice %643 {offsets = [0, 0], sizes = [1, 288], strides = [1, 1]} : vector<4x288xf32> to vector<1x288xf32>
    %645 = vector.broadcast %11 : vector<4x1xf32> to vector<4x288xf32>
    %646 = vector.broadcast %644 : vector<1x288xf32> to vector<4x288xf32>
    %647 = arith.mulf %645, %646 : vector<4x288xf32>
    %648 = arith.addf %642, %647 : vector<4x288xf32>
    %649 = vector.extract_strided_slice %643 {offsets = [1, 0], sizes = [1, 288], strides = [1, 1]} : vector<4x288xf32> to vector<1x288xf32>
    %650 = vector.broadcast %20 : vector<4x1xf32> to vector<4x288xf32>
    %651 = vector.broadcast %649 : vector<1x288xf32> to vector<4x288xf32>
    %652 = arith.mulf %650, %651 : vector<4x288xf32>
    %653 = arith.addf %648, %652 : vector<4x288xf32>
    %654 = vector.extract_strided_slice %643 {offsets = [2, 0], sizes = [1, 288], strides = [1, 1]} : vector<4x288xf32> to vector<1x288xf32>
    %655 = vector.broadcast %29 : vector<4x1xf32> to vector<4x288xf32>
    %656 = vector.broadcast %654 : vector<1x288xf32> to vector<4x288xf32>
    %657 = arith.mulf %655, %656 : vector<4x288xf32>
    %658 = arith.addf %653, %657 : vector<4x288xf32>
    %659 = vector.extract_strided_slice %643 {offsets = [3, 0], sizes = [1, 288], strides = [1, 1]} : vector<4x288xf32> to vector<1x288xf32>
    %660 = vector.broadcast %38 : vector<4x1xf32> to vector<4x288xf32>
    %661 = vector.broadcast %659 : vector<1x288xf32> to vector<4x288xf32>
    %662 = arith.mulf %660, %661 : vector<4x288xf32>
    %663 = arith.addf %658, %662 : vector<4x288xf32>
    %664 = vector.extract_strided_slice %514 {offsets = [0, 37], sizes = [4, 288], strides = [1, 1]} : vector<4x384xf32> to vector<4x288xf32>
    %665 = vector.extract_strided_slice %664 {offsets = [0, 0], sizes = [1, 288], strides = [1, 1]} : vector<4x288xf32> to vector<1x288xf32>
    %666 = vector.broadcast %12 : vector<4x1xf32> to vector<4x288xf32>
    %667 = vector.broadcast %665 : vector<1x288xf32> to vector<4x288xf32>
    %668 = arith.mulf %666, %667 : vector<4x288xf32>
    %669 = arith.addf %663, %668 : vector<4x288xf32>
    %670 = vector.extract_strided_slice %664 {offsets = [1, 0], sizes = [1, 288], strides = [1, 1]} : vector<4x288xf32> to vector<1x288xf32>
    %671 = vector.broadcast %21 : vector<4x1xf32> to vector<4x288xf32>
    %672 = vector.broadcast %670 : vector<1x288xf32> to vector<4x288xf32>
    %673 = arith.mulf %671, %672 : vector<4x288xf32>
    %674 = arith.addf %669, %673 : vector<4x288xf32>
    %675 = vector.extract_strided_slice %664 {offsets = [2, 0], sizes = [1, 288], strides = [1, 1]} : vector<4x288xf32> to vector<1x288xf32>
    %676 = vector.broadcast %30 : vector<4x1xf32> to vector<4x288xf32>
    %677 = vector.broadcast %675 : vector<1x288xf32> to vector<4x288xf32>
    %678 = arith.mulf %676, %677 : vector<4x288xf32>
    %679 = arith.addf %674, %678 : vector<4x288xf32>
    %680 = vector.extract_strided_slice %664 {offsets = [3, 0], sizes = [1, 288], strides = [1, 1]} : vector<4x288xf32> to vector<1x288xf32>
    %681 = vector.broadcast %39 : vector<4x1xf32> to vector<4x288xf32>
    %682 = vector.broadcast %680 : vector<1x288xf32> to vector<4x288xf32>
    %683 = arith.mulf %681, %682 : vector<4x288xf32>
    %684 = arith.addf %679, %683 : vector<4x288xf32>
    %685 = vector.extract_strided_slice %514 {offsets = [0, 38], sizes = [4, 288], strides = [1, 1]} : vector<4x384xf32> to vector<4x288xf32>
    %686 = vector.extract_strided_slice %685 {offsets = [0, 0], sizes = [1, 288], strides = [1, 1]} : vector<4x288xf32> to vector<1x288xf32>
    %687 = vector.broadcast %13 : vector<4x1xf32> to vector<4x288xf32>
    %688 = vector.broadcast %686 : vector<1x288xf32> to vector<4x288xf32>
    %689 = arith.mulf %687, %688 : vector<4x288xf32>
    %690 = arith.addf %684, %689 : vector<4x288xf32>
    %691 = vector.extract_strided_slice %685 {offsets = [1, 0], sizes = [1, 288], strides = [1, 1]} : vector<4x288xf32> to vector<1x288xf32>
    %692 = vector.broadcast %22 : vector<4x1xf32> to vector<4x288xf32>
    %693 = vector.broadcast %691 : vector<1x288xf32> to vector<4x288xf32>
    %694 = arith.mulf %692, %693 : vector<4x288xf32>
    %695 = arith.addf %690, %694 : vector<4x288xf32>
    %696 = vector.extract_strided_slice %685 {offsets = [2, 0], sizes = [1, 288], strides = [1, 1]} : vector<4x288xf32> to vector<1x288xf32>
    %697 = vector.broadcast %31 : vector<4x1xf32> to vector<4x288xf32>
    %698 = vector.broadcast %696 : vector<1x288xf32> to vector<4x288xf32>
    %699 = arith.mulf %697, %698 : vector<4x288xf32>
    %700 = arith.addf %695, %699 : vector<4x288xf32>
    %701 = vector.extract_strided_slice %685 {offsets = [3, 0], sizes = [1, 288], strides = [1, 1]} : vector<4x288xf32> to vector<1x288xf32>
    %702 = vector.broadcast %40 : vector<4x1xf32> to vector<4x288xf32>
    %703 = vector.broadcast %701 : vector<1x288xf32> to vector<4x288xf32>
    %704 = arith.mulf %702, %703 : vector<4x288xf32>
    %705 = arith.addf %700, %704 : vector<4x288xf32>
    %706 = vector.broadcast %0 : vector<1x288xf32> to vector<4x288xf32>
    %707 = arith.mulf %705, %706 : vector<4x288xf32>
    %cst_29 = arith.constant dense<0.000000e+00> : vector<4xf32>
    %708 = vector.multi_reduction <add>, %707, %cst_29 [1] : vector<4x288xf32> to vector<4xf32>
    %709 = vector.shape_cast %708 : vector<4xf32> to vector<4x1xf32>
    %710 = arith.mulf %707, %707 : vector<4x288xf32>
    %cst_30 = arith.constant dense<0.000000e+00> : vector<4xf32>
    %711 = vector.multi_reduction <add>, %710, %cst_30 [1] : vector<4x288xf32> to vector<4xf32>
    %712 = vector.shape_cast %711 : vector<4xf32> to vector<4x1xf32>
    %cst_31 = arith.constant 3.906250e-03 : f32
    %713 = vector.broadcast %cst_31 : f32 to vector<4x1xf32>
    %714 = arith.mulf %709, %713 : vector<4x1xf32>
    %cst_32 = arith.constant 3.906250e-03 : f32
    %715 = vector.broadcast %cst_32 : f32 to vector<4x1xf32>
    %716 = arith.mulf %712, %715 : vector<4x1xf32>
    %717 = arith.mulf %714, %714 : vector<4x1xf32>
    %718 = arith.subf %716, %717 : vector<4x1xf32>
    %719 = vector.broadcast %714 : vector<4x1xf32> to vector<4x288xf32>
    %720 = arith.subf %705, %719 : vector<4x288xf32>
    %cst_33 = arith.constant 9.99999974E-6 : f32
    %721 = vector.broadcast %cst_33 : f32 to vector<4x1xf32>
    %722 = arith.addf %718, %721 : vector<4x1xf32>
    %723 = math.rsqrt %722 : vector<4x1xf32>
    %724 = vector.broadcast %723 : vector<4x1xf32> to vector<4x288xf32>
    %725 = arith.mulf %720, %724 : vector<4x288xf32>
    %cst_34 = arith.constant 0.000000e+00 : f32
    %726 = vector.broadcast %cst_34 : f32 to vector<4x288xf32>
    %727 = arith.maximumf %725, %726 : vector<4x288xf32>
    %728 = vector.broadcast %0 : vector<1x288xf32> to vector<4x288xf32>
    %729 = arith.mulf %727, %728 : vector<4x288xf32>
    %730 = tpu.concatenate %77, %729, %78 in 1 : vector<4x19xf32>, vector<4x288xf32>, vector<4x77xf32> -> vector<4x384xf32>
    %731 = vector.shape_cast %4 : vector<4x1xf32> to vector<4x1xf32>
    %732 = vector.broadcast %731 : vector<4x1xf32> to vector<4x288xf32>
    %733 = vector.extract_strided_slice %730 {offsets = [0, 0], sizes = [4, 288], strides = [1, 1]} : vector<4x384xf32> to vector<4x288xf32>
    %734 = vector.extract_strided_slice %733 {offsets = [0, 0], sizes = [1, 288], strides = [1, 1]} : vector<4x288xf32> to vector<1x288xf32>
    %735 = vector.broadcast %41 : vector<4x1xf32> to vector<4x288xf32>
    %736 = vector.broadcast %734 : vector<1x288xf32> to vector<4x288xf32>
    %737 = arith.mulf %735, %736 : vector<4x288xf32>
    %738 = arith.addf %732, %737 : vector<4x288xf32>
    %739 = vector.extract_strided_slice %733 {offsets = [1, 0], sizes = [1, 288], strides = [1, 1]} : vector<4x288xf32> to vector<1x288xf32>
    %740 = vector.broadcast %50 : vector<4x1xf32> to vector<4x288xf32>
    %741 = vector.broadcast %739 : vector<1x288xf32> to vector<4x288xf32>
    %742 = arith.mulf %740, %741 : vector<4x288xf32>
    %743 = arith.addf %738, %742 : vector<4x288xf32>
    %744 = vector.extract_strided_slice %733 {offsets = [2, 0], sizes = [1, 288], strides = [1, 1]} : vector<4x288xf32> to vector<1x288xf32>
    %745 = vector.broadcast %59 : vector<4x1xf32> to vector<4x288xf32>
    %746 = vector.broadcast %744 : vector<1x288xf32> to vector<4x288xf32>
    %747 = arith.mulf %745, %746 : vector<4x288xf32>
    %748 = arith.addf %743, %747 : vector<4x288xf32>
    %749 = vector.extract_strided_slice %733 {offsets = [3, 0], sizes = [1, 288], strides = [1, 1]} : vector<4x288xf32> to vector<1x288xf32>
    %750 = vector.broadcast %68 : vector<4x1xf32> to vector<4x288xf32>
    %751 = vector.broadcast %749 : vector<1x288xf32> to vector<4x288xf32>
    %752 = arith.mulf %750, %751 : vector<4x288xf32>
    %753 = arith.addf %748, %752 : vector<4x288xf32>
    %754 = vector.extract_strided_slice %730 {offsets = [0, 1], sizes = [4, 288], strides = [1, 1]} : vector<4x384xf32> to vector<4x288xf32>
    %755 = vector.extract_strided_slice %754 {offsets = [0, 0], sizes = [1, 288], strides = [1, 1]} : vector<4x288xf32> to vector<1x288xf32>
    %756 = vector.broadcast %42 : vector<4x1xf32> to vector<4x288xf32>
    %757 = vector.broadcast %755 : vector<1x288xf32> to vector<4x288xf32>
    %758 = arith.mulf %756, %757 : vector<4x288xf32>
    %759 = arith.addf %753, %758 : vector<4x288xf32>
    %760 = vector.extract_strided_slice %754 {offsets = [1, 0], sizes = [1, 288], strides = [1, 1]} : vector<4x288xf32> to vector<1x288xf32>
    %761 = vector.broadcast %51 : vector<4x1xf32> to vector<4x288xf32>
    %762 = vector.broadcast %760 : vector<1x288xf32> to vector<4x288xf32>
    %763 = arith.mulf %761, %762 : vector<4x288xf32>
    %764 = arith.addf %759, %763 : vector<4x288xf32>
    %765 = vector.extract_strided_slice %754 {offsets = [2, 0], sizes = [1, 288], strides = [1, 1]} : vector<4x288xf32> to vector<1x288xf32>
    %766 = vector.broadcast %60 : vector<4x1xf32> to vector<4x288xf32>
    %767 = vector.broadcast %765 : vector<1x288xf32> to vector<4x288xf32>
    %768 = arith.mulf %766, %767 : vector<4x288xf32>
    %769 = arith.addf %764, %768 : vector<4x288xf32>
    %770 = vector.extract_strided_slice %754 {offsets = [3, 0], sizes = [1, 288], strides = [1, 1]} : vector<4x288xf32> to vector<1x288xf32>
    %771 = vector.broadcast %69 : vector<4x1xf32> to vector<4x288xf32>
    %772 = vector.broadcast %770 : vector<1x288xf32> to vector<4x288xf32>
    %773 = arith.mulf %771, %772 : vector<4x288xf32>
    %774 = arith.addf %769, %773 : vector<4x288xf32>
    %775 = vector.extract_strided_slice %730 {offsets = [0, 2], sizes = [4, 288], strides = [1, 1]} : vector<4x384xf32> to vector<4x288xf32>
    %776 = vector.extract_strided_slice %775 {offsets = [0, 0], sizes = [1, 288], strides = [1, 1]} : vector<4x288xf32> to vector<1x288xf32>
    %777 = vector.broadcast %43 : vector<4x1xf32> to vector<4x288xf32>
    %778 = vector.broadcast %776 : vector<1x288xf32> to vector<4x288xf32>
    %779 = arith.mulf %777, %778 : vector<4x288xf32>
    %780 = arith.addf %774, %779 : vector<4x288xf32>
    %781 = vector.extract_strided_slice %775 {offsets = [1, 0], sizes = [1, 288], strides = [1, 1]} : vector<4x288xf32> to vector<1x288xf32>
    %782 = vector.broadcast %52 : vector<4x1xf32> to vector<4x288xf32>
    %783 = vector.broadcast %781 : vector<1x288xf32> to vector<4x288xf32>
    %784 = arith.mulf %782, %783 : vector<4x288xf32>
    %785 = arith.addf %780, %784 : vector<4x288xf32>
    %786 = vector.extract_strided_slice %775 {offsets = [2, 0], sizes = [1, 288], strides = [1, 1]} : vector<4x288xf32> to vector<1x288xf32>
    %787 = vector.broadcast %61 : vector<4x1xf32> to vector<4x288xf32>
    %788 = vector.broadcast %786 : vector<1x288xf32> to vector<4x288xf32>
    %789 = arith.mulf %787, %788 : vector<4x288xf32>
    %790 = arith.addf %785, %789 : vector<4x288xf32>
    %791 = vector.extract_strided_slice %775 {offsets = [3, 0], sizes = [1, 288], strides = [1, 1]} : vector<4x288xf32> to vector<1x288xf32>
    %792 = vector.broadcast %70 : vector<4x1xf32> to vector<4x288xf32>
    %793 = vector.broadcast %791 : vector<1x288xf32> to vector<4x288xf32>
    %794 = arith.mulf %792, %793 : vector<4x288xf32>
    %795 = arith.addf %790, %794 : vector<4x288xf32>
    %796 = vector.extract_strided_slice %730 {offsets = [0, 18], sizes = [4, 288], strides = [1, 1]} : vector<4x384xf32> to vector<4x288xf32>
    %797 = vector.extract_strided_slice %796 {offsets = [0, 0], sizes = [1, 288], strides = [1, 1]} : vector<4x288xf32> to vector<1x288xf32>
    %798 = vector.broadcast %44 : vector<4x1xf32> to vector<4x288xf32>
    %799 = vector.broadcast %797 : vector<1x288xf32> to vector<4x288xf32>
    %800 = arith.mulf %798, %799 : vector<4x288xf32>
    %801 = arith.addf %795, %800 : vector<4x288xf32>
    %802 = vector.extract_strided_slice %796 {offsets = [1, 0], sizes = [1, 288], strides = [1, 1]} : vector<4x288xf32> to vector<1x288xf32>
    %803 = vector.broadcast %53 : vector<4x1xf32> to vector<4x288xf32>
    %804 = vector.broadcast %802 : vector<1x288xf32> to vector<4x288xf32>
    %805 = arith.mulf %803, %804 : vector<4x288xf32>
    %806 = arith.addf %801, %805 : vector<4x288xf32>
    %807 = vector.extract_strided_slice %796 {offsets = [2, 0], sizes = [1, 288], strides = [1, 1]} : vector<4x288xf32> to vector<1x288xf32>
    %808 = vector.broadcast %62 : vector<4x1xf32> to vector<4x288xf32>
    %809 = vector.broadcast %807 : vector<1x288xf32> to vector<4x288xf32>
    %810 = arith.mulf %808, %809 : vector<4x288xf32>
    %811 = arith.addf %806, %810 : vector<4x288xf32>
    %812 = vector.extract_strided_slice %796 {offsets = [3, 0], sizes = [1, 288], strides = [1, 1]} : vector<4x288xf32> to vector<1x288xf32>
    %813 = vector.broadcast %71 : vector<4x1xf32> to vector<4x288xf32>
    %814 = vector.broadcast %812 : vector<1x288xf32> to vector<4x288xf32>
    %815 = arith.mulf %813, %814 : vector<4x288xf32>
    %816 = arith.addf %811, %815 : vector<4x288xf32>
    %817 = vector.extract_strided_slice %730 {offsets = [0, 19], sizes = [4, 288], strides = [1, 1]} : vector<4x384xf32> to vector<4x288xf32>
    %818 = vector.extract_strided_slice %817 {offsets = [0, 0], sizes = [1, 288], strides = [1, 1]} : vector<4x288xf32> to vector<1x288xf32>
    %819 = vector.broadcast %45 : vector<4x1xf32> to vector<4x288xf32>
    %820 = vector.broadcast %818 : vector<1x288xf32> to vector<4x288xf32>
    %821 = arith.mulf %819, %820 : vector<4x288xf32>
    %822 = arith.addf %816, %821 : vector<4x288xf32>
    %823 = vector.extract_strided_slice %817 {offsets = [1, 0], sizes = [1, 288], strides = [1, 1]} : vector<4x288xf32> to vector<1x288xf32>
    %824 = vector.broadcast %54 : vector<4x1xf32> to vector<4x288xf32>
    %825 = vector.broadcast %823 : vector<1x288xf32> to vector<4x288xf32>
    %826 = arith.mulf %824, %825 : vector<4x288xf32>
    %827 = arith.addf %822, %826 : vector<4x288xf32>
    %828 = vector.extract_strided_slice %817 {offsets = [2, 0], sizes = [1, 288], strides = [1, 1]} : vector<4x288xf32> to vector<1x288xf32>
    %829 = vector.broadcast %63 : vector<4x1xf32> to vector<4x288xf32>
    %830 = vector.broadcast %828 : vector<1x288xf32> to vector<4x288xf32>
    %831 = arith.mulf %829, %830 : vector<4x288xf32>
    %832 = arith.addf %827, %831 : vector<4x288xf32>
    %833 = vector.extract_strided_slice %817 {offsets = [3, 0], sizes = [1, 288], strides = [1, 1]} : vector<4x288xf32> to vector<1x288xf32>
    %834 = vector.broadcast %72 : vector<4x1xf32> to vector<4x288xf32>
    %835 = vector.broadcast %833 : vector<1x288xf32> to vector<4x288xf32>
    %836 = arith.mulf %834, %835 : vector<4x288xf32>
    %837 = arith.addf %832, %836 : vector<4x288xf32>
    %838 = vector.extract_strided_slice %730 {offsets = [0, 20], sizes = [4, 288], strides = [1, 1]} : vector<4x384xf32> to vector<4x288xf32>
    %839 = vector.extract_strided_slice %838 {offsets = [0, 0], sizes = [1, 288], strides = [1, 1]} : vector<4x288xf32> to vector<1x288xf32>
    %840 = vector.broadcast %46 : vector<4x1xf32> to vector<4x288xf32>
    %841 = vector.broadcast %839 : vector<1x288xf32> to vector<4x288xf32>
    %842 = arith.mulf %840, %841 : vector<4x288xf32>
    %843 = arith.addf %837, %842 : vector<4x288xf32>
    %844 = vector.extract_strided_slice %838 {offsets = [1, 0], sizes = [1, 288], strides = [1, 1]} : vector<4x288xf32> to vector<1x288xf32>
    %845 = vector.broadcast %55 : vector<4x1xf32> to vector<4x288xf32>
    %846 = vector.broadcast %844 : vector<1x288xf32> to vector<4x288xf32>
    %847 = arith.mulf %845, %846 : vector<4x288xf32>
    %848 = arith.addf %843, %847 : vector<4x288xf32>
    %849 = vector.extract_strided_slice %838 {offsets = [2, 0], sizes = [1, 288], strides = [1, 1]} : vector<4x288xf32> to vector<1x288xf32>
    %850 = vector.broadcast %64 : vector<4x1xf32> to vector<4x288xf32>
    %851 = vector.broadcast %849 : vector<1x288xf32> to vector<4x288xf32>
    %852 = arith.mulf %850, %851 : vector<4x288xf32>
    %853 = arith.addf %848, %852 : vector<4x288xf32>
    %854 = vector.extract_strided_slice %838 {offsets = [3, 0], sizes = [1, 288], strides = [1, 1]} : vector<4x288xf32> to vector<1x288xf32>
    %855 = vector.broadcast %73 : vector<4x1xf32> to vector<4x288xf32>
    %856 = vector.broadcast %854 : vector<1x288xf32> to vector<4x288xf32>
    %857 = arith.mulf %855, %856 : vector<4x288xf32>
    %858 = arith.addf %853, %857 : vector<4x288xf32>
    %859 = vector.extract_strided_slice %730 {offsets = [0, 36], sizes = [4, 288], strides = [1, 1]} : vector<4x384xf32> to vector<4x288xf32>
    %860 = vector.extract_strided_slice %859 {offsets = [0, 0], sizes = [1, 288], strides = [1, 1]} : vector<4x288xf32> to vector<1x288xf32>
    %861 = vector.broadcast %47 : vector<4x1xf32> to vector<4x288xf32>
    %862 = vector.broadcast %860 : vector<1x288xf32> to vector<4x288xf32>
    %863 = arith.mulf %861, %862 : vector<4x288xf32>
    %864 = arith.addf %858, %863 : vector<4x288xf32>
    %865 = vector.extract_strided_slice %859 {offsets = [1, 0], sizes = [1, 288], strides = [1, 1]} : vector<4x288xf32> to vector<1x288xf32>
    %866 = vector.broadcast %56 : vector<4x1xf32> to vector<4x288xf32>
    %867 = vector.broadcast %865 : vector<1x288xf32> to vector<4x288xf32>
    %868 = arith.mulf %866, %867 : vector<4x288xf32>
    %869 = arith.addf %864, %868 : vector<4x288xf32>
    %870 = vector.extract_strided_slice %859 {offsets = [2, 0], sizes = [1, 288], strides = [1, 1]} : vector<4x288xf32> to vector<1x288xf32>
    %871 = vector.broadcast %65 : vector<4x1xf32> to vector<4x288xf32>
    %872 = vector.broadcast %870 : vector<1x288xf32> to vector<4x288xf32>
    %873 = arith.mulf %871, %872 : vector<4x288xf32>
    %874 = arith.addf %869, %873 : vector<4x288xf32>
    %875 = vector.extract_strided_slice %859 {offsets = [3, 0], sizes = [1, 288], strides = [1, 1]} : vector<4x288xf32> to vector<1x288xf32>
    %876 = vector.broadcast %74 : vector<4x1xf32> to vector<4x288xf32>
    %877 = vector.broadcast %875 : vector<1x288xf32> to vector<4x288xf32>
    %878 = arith.mulf %876, %877 : vector<4x288xf32>
    %879 = arith.addf %874, %878 : vector<4x288xf32>
    %880 = vector.extract_strided_slice %730 {offsets = [0, 37], sizes = [4, 288], strides = [1, 1]} : vector<4x384xf32> to vector<4x288xf32>
    %881 = vector.extract_strided_slice %880 {offsets = [0, 0], sizes = [1, 288], strides = [1, 1]} : vector<4x288xf32> to vector<1x288xf32>
    %882 = vector.broadcast %48 : vector<4x1xf32> to vector<4x288xf32>
    %883 = vector.broadcast %881 : vector<1x288xf32> to vector<4x288xf32>
    %884 = arith.mulf %882, %883 : vector<4x288xf32>
    %885 = arith.addf %879, %884 : vector<4x288xf32>
    %886 = vector.extract_strided_slice %880 {offsets = [1, 0], sizes = [1, 288], strides = [1, 1]} : vector<4x288xf32> to vector<1x288xf32>
    %887 = vector.broadcast %57 : vector<4x1xf32> to vector<4x288xf32>
    %888 = vector.broadcast %886 : vector<1x288xf32> to vector<4x288xf32>
    %889 = arith.mulf %887, %888 : vector<4x288xf32>
    %890 = arith.addf %885, %889 : vector<4x288xf32>
    %891 = vector.extract_strided_slice %880 {offsets = [2, 0], sizes = [1, 288], strides = [1, 1]} : vector<4x288xf32> to vector<1x288xf32>
    %892 = vector.broadcast %66 : vector<4x1xf32> to vector<4x288xf32>
    %893 = vector.broadcast %891 : vector<1x288xf32> to vector<4x288xf32>
    %894 = arith.mulf %892, %893 : vector<4x288xf32>
    %895 = arith.addf %890, %894 : vector<4x288xf32>
    %896 = vector.extract_strided_slice %880 {offsets = [3, 0], sizes = [1, 288], strides = [1, 1]} : vector<4x288xf32> to vector<1x288xf32>
    %897 = vector.broadcast %75 : vector<4x1xf32> to vector<4x288xf32>
    %898 = vector.broadcast %896 : vector<1x288xf32> to vector<4x288xf32>
    %899 = arith.mulf %897, %898 : vector<4x288xf32>
    %900 = arith.addf %895, %899 : vector<4x288xf32>
    %901 = vector.extract_strided_slice %730 {offsets = [0, 38], sizes = [4, 288], strides = [1, 1]} : vector<4x384xf32> to vector<4x288xf32>
    %902 = vector.extract_strided_slice %901 {offsets = [0, 0], sizes = [1, 288], strides = [1, 1]} : vector<4x288xf32> to vector<1x288xf32>
    %903 = vector.broadcast %49 : vector<4x1xf32> to vector<4x288xf32>
    %904 = vector.broadcast %902 : vector<1x288xf32> to vector<4x288xf32>
    %905 = arith.mulf %903, %904 : vector<4x288xf32>
    %906 = arith.addf %900, %905 : vector<4x288xf32>
    %907 = vector.extract_strided_slice %901 {offsets = [1, 0], sizes = [1, 288], strides = [1, 1]} : vector<4x288xf32> to vector<1x288xf32>
    %908 = vector.broadcast %58 : vector<4x1xf32> to vector<4x288xf32>
    %909 = vector.broadcast %907 : vector<1x288xf32> to vector<4x288xf32>
    %910 = arith.mulf %908, %909 : vector<4x288xf32>
    %911 = arith.addf %906, %910 : vector<4x288xf32>
    %912 = vector.extract_strided_slice %901 {offsets = [2, 0], sizes = [1, 288], strides = [1, 1]} : vector<4x288xf32> to vector<1x288xf32>
    %913 = vector.broadcast %67 : vector<4x1xf32> to vector<4x288xf32>
    %914 = vector.broadcast %912 : vector<1x288xf32> to vector<4x288xf32>
    %915 = arith.mulf %913, %914 : vector<4x288xf32>
    %916 = arith.addf %911, %915 : vector<4x288xf32>
    %917 = vector.extract_strided_slice %901 {offsets = [3, 0], sizes = [1, 288], strides = [1, 1]} : vector<4x288xf32> to vector<1x288xf32>
    %918 = vector.broadcast %76 : vector<4x1xf32> to vector<4x288xf32>
    %919 = vector.broadcast %917 : vector<1x288xf32> to vector<4x288xf32>
    %920 = arith.mulf %918, %919 : vector<4x288xf32>
    %921 = arith.addf %916, %920 : vector<4x288xf32>
    %922 = vector.broadcast %0 : vector<1x288xf32> to vector<4x288xf32>
    %923 = arith.mulf %921, %922 : vector<4x288xf32>
    %cst_35 = arith.constant dense<0.000000e+00> : vector<4xf32>
    %924 = vector.multi_reduction <add>, %923, %cst_35 [1] : vector<4x288xf32> to vector<4xf32>
    %925 = vector.shape_cast %924 : vector<4xf32> to vector<4x1xf32>
    %926 = arith.mulf %923, %923 : vector<4x288xf32>
    %cst_36 = arith.constant dense<0.000000e+00> : vector<4xf32>
    %927 = vector.multi_reduction <add>, %926, %cst_36 [1] : vector<4x288xf32> to vector<4xf32>
    %928 = vector.shape_cast %927 : vector<4xf32> to vector<4x1xf32>
    %cst_37 = arith.constant 3.906250e-03 : f32
    %929 = vector.broadcast %cst_37 : f32 to vector<4x1xf32>
    %930 = arith.mulf %925, %929 : vector<4x1xf32>
    %cst_38 = arith.constant 3.906250e-03 : f32
    %931 = vector.broadcast %cst_38 : f32 to vector<4x1xf32>
    %932 = arith.mulf %928, %931 : vector<4x1xf32>
    %933 = arith.mulf %930, %930 : vector<4x1xf32>
    %934 = arith.subf %932, %933 : vector<4x1xf32>
    %935 = vector.broadcast %930 : vector<4x1xf32> to vector<4x288xf32>
    %936 = arith.subf %921, %935 : vector<4x288xf32>
    %cst_39 = arith.constant 9.99999974E-6 : f32
    %937 = vector.broadcast %cst_39 : f32 to vector<4x1xf32>
    %938 = arith.addf %934, %937 : vector<4x1xf32>
    %939 = math.rsqrt %938 : vector<4x1xf32>
    %940 = vector.broadcast %939 : vector<4x1xf32> to vector<4x288xf32>
    %941 = arith.mulf %936, %940 : vector<4x288xf32>
    %942 = vector.extract_strided_slice %514 {offsets = [0, 19], sizes = [4, 288], strides = [1, 1]} : vector<4x384xf32> to vector<4x288xf32>
    %943 = arith.addf %942, %941 : vector<4x288xf32>
    %c1_40 = arith.constant 1 : index
    %c0_41 = arith.constant 0 : index
    %c0_42 = arith.constant 0 : index
    %944 = vector.load %arg7[%c1_40, %c0_41, %c0_42] : memref<2x4x288xf32, #tpu.memory_space<vmem>>, vector<1x4x288xf32>
    %945 = vector.shape_cast %944 : vector<1x4x288xf32> to vector<4x288xf32>
    %946 = vector.shape_cast %943 : vector<4x288xf32> to vector<1x4x288xf32>
    tpu.vector_store %arg7[%c1_40, %c0_41, %c0_42], %946 {strides = array<i32>} : memref<2x4x288xf32, #tpu.memory_space<vmem>>, vector<1x4x288xf32>,
    return
  }
  func.func @transform_0(%arg0: i32) -> (i32, i32, i32) {
    %c0_i32 = arith.constant 0 : i32
    %c0_i32_0 = arith.constant 0 : i32
    %c0_i32_1 = arith.constant 0 : i32
    return %arg0, %c0_i32, %c0_i32_0 : i32, i32, i32
  }
  func.func @transform_1(%arg0: i32) -> (i32, i32) {
    %c0_i32 = arith.constant 0 : i32
    %c0_i32_0 = arith.constant 0 : i32
    %c0_i32_1 = arith.constant 0 : i32
    return %c0_i32, %c0_i32_0 : i32, i32
  }
  func.func @transform_2(%arg0: i32) -> (i32, i32) {
    %c0_i32 = arith.constant 0 : i32
    %c0_i32_0 = arith.constant 0 : i32
    %c0_i32_1 = arith.constant 0 : i32
    return %c0_i32, %c0_i32_0 : i32, i32
  }
  func.func @transform_3(%arg0: i32) -> (i32, i32) {
    %c0_i32 = arith.constant 0 : i32
    %c0_i32_0 = arith.constant 0 : i32
    %c0_i32_1 = arith.constant 0 : i32
    return %c0_i32, %c0_i32_0 : i32, i32
  }
  func.func @transform_4(%arg0: i32) -> (i32, i32) {
    %c0_i32 = arith.constant 0 : i32
    %c0_i32_0 = arith.constant 0 : i32
    %c0_i32_1 = arith.constant 0 : i32
    return %c0_i32, %c0_i32_0 : i32, i32
  }
  func.func @transform_5(%arg0: i32) -> (i32, i32) {
    %c0_i32 = arith.constant 0 : i32
    %c0_i32_0 = arith.constant 0 : i32
    %c0_i32_1 = arith.constant 0 : i32
    return %c0_i32, %c0_i32_0 : i32, i32
  }
  func.func @transform_6(%arg0: i32) -> (i32, i32, i32) {
    %c0_i32 = arith.constant 0 : i32
    %c0_i32_0 = arith.constant 0 : i32
    %c0_i32_1 = arith.constant 0 : i32
    return %arg0, %c0_i32, %c0_i32_0 : i32, i32, i32
  }
}

</mosaic_0001>

<llo_original>
// kernel: resnet_block_pallas.1
$region0: #{resnet_block_pallas.1}
  #allocation0 [shape = 'u32[]', space=smem, size = 0x4, offset = 0x4, fixed_abs, tag = 'smem constant byte address 0x4 - core index']
  #allocation1 [shape = 'u32[72,128]{1,0:T(1,128)}', space=vmem, size = 0x9000, scoped, tag = 'internal scratch']
  %s0 = inlined_call_operand.vmem [shape: f32[2,4,384], index: 0, kind: input, shape index: {}]
  %s1 = inlined_call_operand.vmem [shape: f32[4,36], index: 1, kind: input, shape index: {}]
  %s2 = inlined_call_operand.vmem [shape: f32[4,1], index: 2, kind: input, shape index: {}]
  %s3 = inlined_call_operand.vmem [shape: f32[4,36], index: 3, kind: input, shape index: {}]
  %s4 = inlined_call_operand.vmem [shape: f32[4,1], index: 4, kind: input, shape index: {}]
  %s5 = inlined_call_operand.vmem [shape: f32[1,288], index: 5, kind: input, shape index: {}]
  %s6 = inlined_call_operand.vmem [shape: f32[2,4,288], index: 6, kind: output, shape index: {}]
  %s7 = sld [smem:[#allocation0]]
  $region34: #{resnet_block_pallas.1} parent=0
    _
  %s9 = ssub.s32 1, %s7
  %s10 = scalar_select 0, %s9, %s7
  // Predicated region
  $region2: #{resnet_block_pallas.1} parent=0 // pred_check
    _
  $region3: #{resnet_block_pallas.1} parent=0 // pred_check_branch
    %12 = sbr.rel (0) target = $region5
  $region4: #{resnet_block_pallas.1} parent=0 // pred_region
    _
  $region5: #{resnet_block_pallas.1} parent=0 // pred_fallthru
    _
  // Predicated region
  $region6: #{resnet_block_pallas.1} parent=0 // pred_check
    _
  $region7: #{resnet_block_pallas.1} parent=0 // pred_check_branch
    %14 = sbr.rel (0) target = $region9
  $region8: #{resnet_block_pallas.1} parent=0 // pred_region
    _
  $region9: #{resnet_block_pallas.1} parent=0 // pred_fallthru
    _
  // Predicated region
  $region10: #{resnet_block_pallas.1} parent=0 // pred_check
    _
  $region11: #{resnet_block_pallas.1} parent=0 // pred_check_branch
    %16 = sbr.rel (0) target = $region13
  $region12: #{resnet_block_pallas.1} parent=0 // pred_region
    _
  $region13: #{resnet_block_pallas.1} parent=0 // pred_fallthru
    _
  // Predicated region
  $region14: #{resnet_block_pallas.1} parent=0 // pred_check
    _
  $region15: #{resnet_block_pallas.1} parent=0 // pred_check_branch
    %18 = sbr.rel (0) target = $region17
  $region16: #{resnet_block_pallas.1} parent=0 // pred_region
    _
  $region17: #{resnet_block_pallas.1} parent=0 // pred_fallthru
    _
  // Predicated region
  $region18: #{resnet_block_pallas.1} parent=0 // pred_check
    _
  $region19: #{resnet_block_pallas.1} parent=0 // pred_check_branch
    %20 = sbr.rel (0) target = $region21
  $region20: #{resnet_block_pallas.1} parent=0 // pred_region
    _
  $region21: #{resnet_block_pallas.1} parent=0 // pred_fallthru
    _
  // Predicated region
  $region22: #{resnet_block_pallas.1} parent=0 // pred_check
    _
  $region23: #{resnet_block_pallas.1} parent=0 // pred_check_branch
    %22 = sbr.rel (0) target = $region25
  $region24: #{resnet_block_pallas.1} parent=0 // pred_region
    _
  $region25: #{resnet_block_pallas.1} parent=0 // pred_fallthru
    _
  %v23 = vld [vmem:[%s5] sm:$0x7]
  %v24 = vld [vmem:[%s1] sm:$0xf]
  %v25 = vld [vmem:[%s3] sm:$0xf]
  %v26 = vld [vmem:[%s2] sm:$0xf]
  %v27 = vld [vmem:[%s4] sm:$0xf]
  %v28 = vld [vmem:[%s0] sm:$0xff]
  %v29 = vld [vmem:[%s0 + $0x8] sm:$0xf]
  %31 = vset.pattern.permute.xlu0 0
  %32 = vperm.xlu0 %31, %v26
  %v33 = vpop.permute.xlu0 %32
  %36 = vset.pattern.permute.xlu0 0
  %37 = vperm.xlu0 %36, %v24
  %v38 = vpop.permute.xlu0 %37
  %v42 = vperm.slane %v28, 0
  %v43 = vperm.slane %v28, 4
  %v44 = vperm.slane %v29, 0
  %v48 = vperm.slane %v42, 0
  %v49 = vperm.slane %v43, 0
  %v50 = vperm.slane %v44, 0
  %v51 = vmul.f32 %v38, %v48
  %v52 = vmul.f32 %v38, %v49
  %v53 = vmul.f32 %v38, %v50
  %v54 = vadd.f32 %v33, %v51
  %v55 = vadd.f32 %v33, %v52
  %v56 = vadd.f32 %v33, %v53
  %57 = vset.pattern.permute.xlu0 9
  %58 = vperm.xlu0 %57, %v24
  %v59 = vpop.permute.xlu0 %58
  %v61 = vperm.slane %v28, 1
  %v62 = vperm.slane %v28, 5
  %v63 = vperm.slane %v29, 1
  %v67 = vperm.slane %v61, 1
  %v68 = vperm.slane %v62, 1
  %v69 = vperm.slane %v63, 1
  %v70 = vmul.f32 %v59, %v67
  %v71 = vmul.f32 %v59, %v68
  %v72 = vmul.f32 %v59, %v69
  %v73 = vadd.f32 %v54, %v70
  %v74 = vadd.f32 %v55, %v71
  %v75 = vadd.f32 %v56, %v72
  %76 = vset.pattern.permute.xlu0 18
  %77 = vperm.xlu0 %76, %v24
  %v78 = vpop.permute.xlu0 %77
  %v80 = vperm.slane %v28, 2
  %v81 = vperm.slane %v28, 6
  %v82 = vperm.slane %v29, 2
  %v86 = vperm.slane %v80, 2
  %v87 = vperm.slane %v81, 2
  %v88 = vperm.slane %v82, 2
  %v89 = vmul.f32 %v78, %v86
  %v90 = vmul.f32 %v78, %v87
  %v91 = vmul.f32 %v78, %v88
  %v92 = vadd.f32 %v73, %v89
  %v93 = vadd.f32 %v74, %v90
  %v94 = vadd.f32 %v75, %v91
  %95 = vset.pattern.permute.xlu0 27
  %96 = vperm.xlu0 %95, %v24
  %v97 = vpop.permute.xlu0 %96
  %v99 = vperm.slane %v28, 3
  %v100 = vperm.slane %v28, 7
  %v101 = vperm.slane %v29, 3
  %v105 = vperm.slane %v99, 3
  %v106 = vperm.slane %v100, 3
  %v107 = vperm.slane %v101, 3
  %v108 = vmul.f32 %v97, %v105
  %v109 = vmul.f32 %v97, %v106
  %v110 = vmul.f32 %v97, %v107
  %v111 = vadd.f32 %v92, %v108
  %v112 = vadd.f32 %v93, %v109
  %v113 = vadd.f32 %v94, %v110
  %114 = vset.pattern.permute.xlu0 1
  %115 = vperm.xlu0 %114, %v24
  %v116 = vpop.permute.xlu0 %115
  %v118 = vmul.f32 %v116, %v48
  %v119 = vmul.f32 %v116, %v49
  %v120 = vmul.f32 %v116, %v50
  %124 = vrot.lane.b32.xlu0 %v118, 127
  %v125 = vpop.permute.xlu0 %124
  %126 = vrot.lane.b32.xlu0 %v119, 127
  %v127 = vpop.permute.xlu0 %126
  %128 = vrot.lane.b32.xlu0 %v120, 127
  %v129 = vpop.permute.xlu0 %128
  %vm130 = vcmask 1039360
  %v131 = vsel %vm130, %v125, %v127
  %v132 = vsel %vm130, %v127, %v129
  %v136 = vadd.f32 %v111, %v131
  %v137 = vadd.f32 %v112, %v132
  %v138 = vadd.f32 %v113, %v129
  %139 = vset.pattern.permute.xlu0 10
  %140 = vperm.xlu0 %139, %v24
  %v141 = vpop.permute.xlu0 %140
  %v143 = vmul.f32 %v141, %v67
  %v144 = vmul.f32 %v141, %v68
  %v145 = vmul.f32 %v141, %v69
  %149 = vrot.lane.b32.xlu0 %v143, 127
  %v150 = vpop.permute.xlu0 %149
  %151 = vrot.lane.b32.xlu0 %v144, 127
  %v152 = vpop.permute.xlu0 %151
  %153 = vrot.lane.b32.xlu0 %v145, 127
  %v154 = vpop.permute.xlu0 %153
  %v155 = vsel %vm130, %v150, %v152
  %v156 = vsel %vm130, %v152, %v154
  %v160 = vadd.f32 %v136, %v155
  %v161 = vadd.f32 %v137, %v156
  %v162 = vadd.f32 %v138, %v154
  %163 = vset.pattern.permute.xlu0 19
  %164 = vperm.xlu0 %163, %v24
  %v165 = vpop.permute.xlu0 %164
  %v167 = vmul.f32 %v165, %v86
  %v168 = vmul.f32 %v165, %v87
  %v169 = vmul.f32 %v165, %v88
  %173 = vrot.lane.b32.xlu0 %v167, 127
  %v174 = vpop.permute.xlu0 %173
  %175 = vrot.lane.b32.xlu0 %v168, 127
  %v176 = vpop.permute.xlu0 %175
  %177 = vrot.lane.b32.xlu0 %v169, 127
  %v178 = vpop.permute.xlu0 %177
  %v179 = vsel %vm130, %v174, %v176
  %v180 = vsel %vm130, %v176, %v178
  %v184 = vadd.f32 %v160, %v179
  %v185 = vadd.f32 %v161, %v180
  %v186 = vadd.f32 %v162, %v178
  %187 = vset.pattern.permute.xlu0 28
  %188 = vperm.xlu0 %187, %v24
  %v189 = vpop.permute.xlu0 %188
  %v191 = vmul.f32 %v189, %v105
  %v192 = vmul.f32 %v189, %v106
  %v193 = vmul.f32 %v189, %v107
  %197 = vrot.lane.b32.xlu0 %v191, 127
  %v198 = vpop.permute.xlu0 %197
  %199 = vrot.lane.b32.xlu0 %v192, 127
  %v200 = vpop.permute.xlu0 %199
  %201 = vrot.lane.b32.xlu0 %v193, 127
  %v202 = vpop.permute.xlu0 %201
  %v203 = vsel %vm130, %v198, %v200
  %v204 = vsel %vm130, %v200, %v202
  %v208 = vadd.f32 %v184, %v203
  %v209 = vadd.f32 %v185, %v204
  %v210 = vadd.f32 %v186, %v202
  %211 = vset.pattern.permute.xlu0 2
  %212 = vperm.xlu0 %211, %v24
  %v213 = vpop.permute.xlu0 %212
  %v215 = vmul.f32 %v213, %v48
  %v216 = vmul.f32 %v213, %v49
  %v217 = vmul.f32 %v213, %v50
  %221 = vrot.lane.b32.xlu0 %v215, 126
  %v222 = vpop.permute.xlu0 %221
  %223 = vrot.lane.b32.xlu0 %v216, 126
  %v224 = vpop.permute.xlu0 %223
  %225 = vrot.lane.b32.xlu0 %v217, 126
  %v226 = vpop.permute.xlu0 %225
  %vm227 = vcmask 1031168
  %v228 = vsel %vm227, %v222, %v224
  %v229 = vsel %vm227, %v224, %v226
  %v233 = vadd.f32 %v208, %v228
  %v234 = vadd.f32 %v209, %v229
  %v235 = vadd.f32 %v210, %v226
  %236 = vset.pattern.permute.xlu0 11
  %237 = vperm.xlu0 %236, %v24
  %v238 = vpop.permute.xlu0 %237
  %v240 = vmul.f32 %v238, %v67
  %v241 = vmul.f32 %v238, %v68
  %v242 = vmul.f32 %v238, %v69
  %246 = vrot.lane.b32.xlu0 %v240, 126
  %v247 = vpop.permute.xlu0 %246
  %248 = vrot.lane.b32.xlu0 %v241, 126
  %v249 = vpop.permute.xlu0 %248
  %250 = vrot.lane.b32.xlu0 %v242, 126
  %v251 = vpop.permute.xlu0 %250
  %v252 = vsel %vm227, %v247, %v249
  %v253 = vsel %vm227, %v249, %v251
  %v257 = vadd.f32 %v233, %v252
  %v258 = vadd.f32 %v234, %v253
  %v259 = vadd.f32 %v235, %v251
  %260 = vset.pattern.permute.xlu0 20
  %261 = vperm.xlu0 %260, %v24
  %v262 = vpop.permute.xlu0 %261
  %v264 = vmul.f32 %v262, %v86
  %v265 = vmul.f32 %v262, %v87
  %v266 = vmul.f32 %v262, %v88
  %270 = vrot.lane.b32.xlu0 %v264, 126
  %v271 = vpop.permute.xlu0 %270
  %272 = vrot.lane.b32.xlu0 %v265, 126
  %v273 = vpop.permute.xlu0 %272
  %274 = vrot.lane.b32.xlu0 %v266, 126
  %v275 = vpop.permute.xlu0 %274
  %v276 = vsel %vm227, %v271, %v273
  %v277 = vsel %vm227, %v273, %v275
  %v281 = vadd.f32 %v257, %v276
  %v282 = vadd.f32 %v258, %v277
  %v283 = vadd.f32 %v259, %v275
  %284 = vset.pattern.permute.xlu0 29
  %285 = vperm.xlu0 %284, %v24
  %v286 = vpop.permute.xlu0 %285
  %v288 = vmul.f32 %v286, %v105
  %v289 = vmul.f32 %v286, %v106
  %v290 = vmul.f32 %v286, %v107
  %294 = vrot.lane.b32.xlu0 %v288, 126
  %v295 = vpop.permute.xlu0 %294
  %296 = vrot.lane.b32.xlu0 %v289, 126
  %v297 = vpop.permute.xlu0 %296
  %298 = vrot.lane.b32.xlu0 %v290, 126
  %v299 = vpop.permute.xlu0 %298
  %v300 = vsel %vm227, %v295, %v297
  %v301 = vsel %vm227, %v297, %v299
  %v305 = vadd.f32 %v281, %v300
  %v306 = vadd.f32 %v282, %v301
  %v307 = vadd.f32 %v283, %v299
  %308 = vset.pattern.permute.xlu0 3
  %309 = vperm.xlu0 %308, %v24
  %v310 = vpop.permute.xlu0 %309
  %v312 = vmul.f32 %v310, %v48
  %v313 = vmul.f32 %v310, %v49
  %v314 = vmul.f32 %v310, %v50
  %318 = vrot.lane.b32.xlu0 %v312, 110
  %v319 = vpop.permute.xlu0 %318
  %320 = vrot.lane.b32.xlu0 %v313, 110
  %v321 = vpop.permute.xlu0 %320
  %322 = vrot.lane.b32.xlu0 %v314, 110
  %v323 = vpop.permute.xlu0 %322
  %vm324 = vcmask 900096
  %v325 = vsel %vm324, %v319, %v321
  %v326 = vsel %vm324, %v321, %v323
  %v330 = vadd.f32 %v305, %v325
  %v331 = vadd.f32 %v306, %v326
  %v332 = vadd.f32 %v307, %v323
  %333 = vset.pattern.permute.xlu0 12
  %334 = vperm.xlu0 %333, %v24
  %v335 = vpop.permute.xlu0 %334
  %v337 = vmul.f32 %v335, %v67
  %v338 = vmul.f32 %v335, %v68
  %v339 = vmul.f32 %v335, %v69
  %343 = vrot.lane.b32.xlu0 %v337, 110
  %v344 = vpop.permute.xlu0 %343
  %345 = vrot.lane.b32.xlu0 %v338, 110
  %v346 = vpop.permute.xlu0 %345
  %347 = vrot.lane.b32.xlu0 %v339, 110
  %v348 = vpop.permute.xlu0 %347
  %v349 = vsel %vm324, %v344, %v346
  %v350 = vsel %vm324, %v346, %v348
  %v354 = vadd.f32 %v330, %v349
  %v355 = vadd.f32 %v331, %v350
  %v356 = vadd.f32 %v332, %v348
  %357 = vset.pattern.permute.xlu0 21
  %358 = vperm.xlu0 %357, %v24
  %v359 = vpop.permute.xlu0 %358
  %v361 = vmul.f32 %v359, %v86
  %v362 = vmul.f32 %v359, %v87
  %v363 = vmul.f32 %v359, %v88
  %367 = vrot.lane.b32.xlu0 %v361, 110
  %v368 = vpop.permute.xlu0 %367
  %369 = vrot.lane.b32.xlu0 %v362, 110
  %v370 = vpop.permute.xlu0 %369
  %371 = vrot.lane.b32.xlu0 %v363, 110
  %v372 = vpop.permute.xlu0 %371
  %v373 = vsel %vm324, %v368, %v370
  %v374 = vsel %vm324, %v370, %v372
  %v378 = vadd.f32 %v354, %v373
  %v379 = vadd.f32 %v355, %v374
  %v380 = vadd.f32 %v356, %v372
  %381 = vset.pattern.permute.xlu0 30
  %382 = vperm.xlu0 %381, %v24
  %v383 = vpop.permute.xlu0 %382
  %v385 = vmul.f32 %v383, %v105
  %v386 = vmul.f32 %v383, %v106
  %v387 = vmul.f32 %v383, %v107
  %391 = vrot.lane.b32.xlu0 %v385, 110
  %v392 = vpop.permute.xlu0 %391
  %393 = vrot.lane.b32.xlu0 %v386, 110
  %v394 = vpop.permute.xlu0 %393
  %395 = vrot.lane.b32.xlu0 %v387, 110
  %v396 = vpop.permute.xlu0 %395
  %v397 = vsel %vm324, %v392, %v394
  %v398 = vsel %vm324, %v394, %v396
  %v402 = vadd.f32 %v378, %v397
  %v403 = vadd.f32 %v379, %v398
  %v404 = vadd.f32 %v380, %v396
  %405 = vset.pattern.permute.xlu0 4
  %406 = vperm.xlu0 %405, %v24
  %v407 = vpop.permute.xlu0 %406
  %v409 = vmul.f32 %v407, %v48
  %v410 = vmul.f32 %v407, %v49
  %v411 = vmul.f32 %v407, %v50
  %415 = vrot.lane.b32.xlu0 %v409, 109
  %v416 = vpop.permute.xlu0 %415
  %417 = vrot.lane.b32.xlu0 %v410, 109
  %v418 = vpop.permute.xlu0 %417
  %419 = vrot.lane.b32.xlu0 %v411, 109
  %v420 = vpop.permute.xlu0 %419
  %vm421 = vcmask 891904
  %v422 = vsel %vm421, %v416, %v418
  %v423 = vsel %vm421, %v418, %v420
  %v427 = vadd.f32 %v402, %v422
  %v428 = vadd.f32 %v403, %v423
  %v429 = vadd.f32 %v404, %v420
  %430 = vset.pattern.permute.xlu0 13
  %431 = vperm.xlu0 %430, %v24
  %v432 = vpop.permute.xlu0 %431
  %v434 = vmul.f32 %v432, %v67
  %v435 = vmul.f32 %v432, %v68
  %v436 = vmul.f32 %v432, %v69
  %440 = vrot.lane.b32.xlu0 %v434, 109
  %v441 = vpop.permute.xlu0 %440
  %442 = vrot.lane.b32.xlu0 %v435, 109
  %v443 = vpop.permute.xlu0 %442
  %444 = vrot.lane.b32.xlu0 %v436, 109
  %v445 = vpop.permute.xlu0 %444
  %v446 = vsel %vm421, %v441, %v443
  %v447 = vsel %vm421, %v443, %v445
  %v451 = vadd.f32 %v427, %v446
  %v452 = vadd.f32 %v428, %v447
  %v453 = vadd.f32 %v429, %v445
  %454 = vset.pattern.permute.xlu0 22
  %455 = vperm.xlu0 %454, %v24
  %v456 = vpop.permute.xlu0 %455
  %v458 = vmul.f32 %v456, %v86
  %v459 = vmul.f32 %v456, %v87
  %v460 = vmul.f32 %v456, %v88
  %464 = vrot.lane.b32.xlu0 %v458, 109
  %v465 = vpop.permute.xlu0 %464
  %466 = vrot.lane.b32.xlu0 %v459, 109
  %v467 = vpop.permute.xlu0 %466
  %468 = vrot.lane.b32.xlu0 %v460, 109
  %v469 = vpop.permute.xlu0 %468
  %v470 = vsel %vm421, %v465, %v467
  %v471 = vsel %vm421, %v467, %v469
  %v475 = vadd.f32 %v451, %v470
  %v476 = vadd.f32 %v452, %v471
  %v477 = vadd.f32 %v453, %v469
  %478 = vset.pattern.permute.xlu0 31
  %479 = vperm.xlu0 %478, %v24
  %v480 = vpop.permute.xlu0 %479
  %v482 = vmul.f32 %v480, %v105
  %v483 = vmul.f32 %v480, %v106
  %v484 = vmul.f32 %v480, %v107
  %488 = vrot.lane.b32.xlu0 %v482, 109
  %v489 = vpop.permute.xlu0 %488
  %490 = vrot.lane.b32.xlu0 %v483, 109
  %v491 = vpop.permute.xlu0 %490
  %492 = vrot.lane.b32.xlu0 %v484, 109
  %v493 = vpop.permute.xlu0 %492
  %v494 = vsel %vm421, %v489, %v491
  %v495 = vsel %vm421, %v491, %v493
  %v499 = vadd.f32 %v475, %v494
  %v500 = vadd.f32 %v476, %v495
  %v501 = vadd.f32 %v477, %v493
  %502 = vset.pattern.permute.xlu0 5
  %503 = vperm.xlu0 %502, %v24
  %v504 = vpop.permute.xlu0 %503
  %v506 = vmul.f32 %v504, %v48
  %v507 = vmul.f32 %v504, %v49
  %v508 = vmul.f32 %v504, %v50
  %512 = vrot.lane.b32.xlu0 %v506, 108
  %v513 = vpop.permute.xlu0 %512
  %514 = vrot.lane.b32.xlu0 %v507, 108
  %v515 = vpop.permute.xlu0 %514
  %516 = vrot.lane.b32.xlu0 %v508, 108
  %v517 = vpop.permute.xlu0 %516
  %vm518 = vcmask 883712
  %v519 = vsel %vm518, %v513, %v515
  %v520 = vsel %vm518, %v515, %v517
  %v524 = vadd.f32 %v499, %v519
  %v525 = vadd.f32 %v500, %v520
  %v526 = vadd.f32 %v501, %v517
  %527 = vset.pattern.permute.xlu0 14
  %528 = vperm.xlu0 %527, %v24
  %v529 = vpop.permute.xlu0 %528
  %v531 = vmul.f32 %v529, %v67
  %v532 = vmul.f32 %v529, %v68
  %v533 = vmul.f32 %v529, %v69
  %537 = vrot.lane.b32.xlu0 %v531, 108
  %v538 = vpop.permute.xlu0 %537
  %539 = vrot.lane.b32.xlu0 %v532, 108
  %v540 = vpop.permute.xlu0 %539
  %541 = vrot.lane.b32.xlu0 %v533, 108
  %v542 = vpop.permute.xlu0 %541
  %v543 = vsel %vm518, %v538, %v540
  %v544 = vsel %vm518, %v540, %v542
  %v548 = vadd.f32 %v524, %v543
  %v549 = vadd.f32 %v525, %v544
  %v550 = vadd.f32 %v526, %v542
  %551 = vset.pattern.permute.xlu0 23
  %552 = vperm.xlu0 %551, %v24
  %v553 = vpop.permute.xlu0 %552
  %v555 = vmul.f32 %v553, %v86
  %v556 = vmul.f32 %v553, %v87
  %v557 = vmul.f32 %v553, %v88
  %561 = vrot.lane.b32.xlu0 %v555, 108
  %v562 = vpop.permute.xlu0 %561
  %563 = vrot.lane.b32.xlu0 %v556, 108
  %v564 = vpop.permute.xlu0 %563
  %565 = vrot.lane.b32.xlu0 %v557, 108
  %v566 = vpop.permute.xlu0 %565
  %v567 = vsel %vm518, %v562, %v564
  %v568 = vsel %vm518, %v564, %v566
  %v572 = vadd.f32 %v548, %v567
  %v573 = vadd.f32 %v549, %v568
  %v574 = vadd.f32 %v550, %v566
  %575 = vset.pattern.permute.xlu0 32
  %576 = vperm.xlu0 %575, %v24
  %v577 = vpop.permute.xlu0 %576
  %v579 = vmul.f32 %v577, %v105
  %v580 = vmul.f32 %v577, %v106
  %v581 = vmul.f32 %v577, %v107
  %585 = vrot.lane.b32.xlu0 %v579, 108
  %v586 = vpop.permute.xlu0 %585
  %587 = vrot.lane.b32.xlu0 %v580, 108
  %v588 = vpop.permute.xlu0 %587
  %589 = vrot.lane.b32.xlu0 %v581, 108
  %v590 = vpop.permute.xlu0 %589
  %v591 = vsel %vm518, %v586, %v588
  %v592 = vsel %vm518, %v588, %v590
  %v596 = vadd.f32 %v572, %v591
  %v597 = vadd.f32 %v573, %v592
  %v598 = vadd.f32 %v574, %v590
  %599 = vset.pattern.permute.xlu0 6
  %600 = vperm.xlu0 %599, %v24
  %v601 = vpop.permute.xlu0 %600
  %v603 = vmul.f32 %v601, %v48
  %v604 = vmul.f32 %v601, %v49
  %v605 = vmul.f32 %v601, %v50
  %609 = vrot.lane.b32.xlu0 %v603, 92
  %v610 = vpop.permute.xlu0 %609
  %611 = vrot.lane.b32.xlu0 %v604, 92
  %v612 = vpop.permute.xlu0 %611
  %613 = vrot.lane.b32.xlu0 %v605, 92
  %v614 = vpop.permute.xlu0 %613
  %vm615 = vcmask 752640
  %v616 = vsel %vm615, %v610, %v612
  %v617 = vsel %vm615, %v612, %v614
  %v621 = vadd.f32 %v596, %v616
  %v622 = vadd.f32 %v597, %v617
  %v623 = vadd.f32 %v598, %v614
  %624 = vset.pattern.permute.xlu0 15
  %625 = vperm.xlu0 %624, %v24
  %v626 = vpop.permute.xlu0 %625
  %v628 = vmul.f32 %v626, %v67
  %v629 = vmul.f32 %v626, %v68
  %v630 = vmul.f32 %v626, %v69
  %634 = vrot.lane.b32.xlu0 %v628, 92
  %v635 = vpop.permute.xlu0 %634
  %636 = vrot.lane.b32.xlu0 %v629, 92
  %v637 = vpop.permute.xlu0 %636
  %638 = vrot.lane.b32.xlu0 %v630, 92
  %v639 = vpop.permute.xlu0 %638
  %v640 = vsel %vm615, %v635, %v637
  %v641 = vsel %vm615, %v637, %v639
  %v645 = vadd.f32 %v621, %v640
  %v646 = vadd.f32 %v622, %v641
  %v647 = vadd.f32 %v623, %v639
  %648 = vset.pattern.permute.xlu0 24
  %649 = vperm.xlu0 %648, %v24
  %v650 = vpop.permute.xlu0 %649
  %v652 = vmul.f32 %v650, %v86
  %v653 = vmul.f32 %v650, %v87
  %v654 = vmul.f32 %v650, %v88
  %658 = vrot.lane.b32.xlu0 %v652, 92
  %v659 = vpop.permute.xlu0 %658
  %660 = vrot.lane.b32.xlu0 %v653, 92
  %v661 = vpop.permute.xlu0 %660
  %662 = vrot.lane.b32.xlu0 %v654, 92
  %v663 = vpop.permute.xlu0 %662
  %v664 = vsel %vm615, %v659, %v661
  %v665 = vsel %vm615, %v661, %v663
  %v669 = vadd.f32 %v645, %v664
  %v670 = vadd.f32 %v646, %v665
  %v671 = vadd.f32 %v647, %v663
  %672 = vset.pattern.permute.xlu0 33
  %673 = vperm.xlu0 %672, %v24
  %v674 = vpop.permute.xlu0 %673
  %v676 = vmul.f32 %v674, %v105
  %v677 = vmul.f32 %v674, %v106
  %v678 = vmul.f32 %v674, %v107
  %682 = vrot.lane.b32.xlu0 %v676, 92
  %v683 = vpop.permute.xlu0 %682
  %684 = vrot.lane.b32.xlu0 %v677, 92
  %v685 = vpop.permute.xlu0 %684
  %686 = vrot.lane.b32.xlu0 %v678, 92
  %v687 = vpop.permute.xlu0 %686
  %v688 = vsel %vm615, %v683, %v685
  %v689 = vsel %vm615, %v685, %v687
  %v693 = vadd.f32 %v669, %v688
  %v694 = vadd.f32 %v670, %v689
  %v695 = vadd.f32 %v671, %v687
  %696 = vset.pattern.permute.xlu0 7
  %697 = vperm.xlu0 %696, %v24
  %v698 = vpop.permute.xlu0 %697
  %v700 = vmul.f32 %v698, %v48
  %v701 = vmul.f32 %v698, %v49
  %v702 = vmul.f32 %v698, %v50
  %706 = vrot.lane.b32.xlu0 %v700, 91
  %v707 = vpop.permute.xlu0 %706
  %708 = vrot.lane.b32.xlu0 %v701, 91
  %v709 = vpop.permute.xlu0 %708
  %710 = vrot.lane.b32.xlu0 %v702, 91
  %v711 = vpop.permute.xlu0 %710
  %vm712 = vcmask 744448
  %v713 = vsel %vm712, %v707, %v709
  %v714 = vsel %vm712, %v709, %v711
  %v718 = vadd.f32 %v693, %v713
  %v719 = vadd.f32 %v694, %v714
  %v720 = vadd.f32 %v695, %v711
  %721 = vset.pattern.permute.xlu0 16
  %722 = vperm.xlu0 %721, %v24
  %v723 = vpop.permute.xlu0 %722
  %v725 = vmul.f32 %v723, %v67
  %v726 = vmul.f32 %v723, %v68
  %v727 = vmul.f32 %v723, %v69
  %731 = vrot.lane.b32.xlu0 %v725, 91
  %v732 = vpop.permute.xlu0 %731
  %733 = vrot.lane.b32.xlu0 %v726, 91
  %v734 = vpop.permute.xlu0 %733
  %735 = vrot.lane.b32.xlu0 %v727, 91
  %v736 = vpop.permute.xlu0 %735
  %v737 = vsel %vm712, %v732, %v734
  %v738 = vsel %vm712, %v734, %v736
  %v742 = vadd.f32 %v718, %v737
  %v743 = vadd.f32 %v719, %v738
  %v744 = vadd.f32 %v720, %v736
  %745 = vset.pattern.permute.xlu0 25
  %746 = vperm.xlu0 %745, %v24
  %v747 = vpop.permute.xlu0 %746
  %v749 = vmul.f32 %v747, %v86
  %v750 = vmul.f32 %v747, %v87
  %v751 = vmul.f32 %v747, %v88
  %755 = vrot.lane.b32.xlu0 %v749, 91
  %v756 = vpop.permute.xlu0 %755
  %757 = vrot.lane.b32.xlu0 %v750, 91
  %v758 = vpop.permute.xlu0 %757
  %759 = vrot.lane.b32.xlu0 %v751, 91
  %v760 = vpop.permute.xlu0 %759
  %v761 = vsel %vm712, %v756, %v758
  %v762 = vsel %vm712, %v758, %v760
  %v766 = vadd.f32 %v742, %v761
  %v767 = vadd.f32 %v743, %v762
  %v768 = vadd.f32 %v744, %v760
  %769 = vset.pattern.permute.xlu0 34
  %770 = vperm.xlu0 %769, %v24
  %v771 = vpop.permute.xlu0 %770
  %v773 = vmul.f32 %v771, %v105
  %v774 = vmul.f32 %v771, %v106
  %v775 = vmul.f32 %v771, %v107
  %779 = vrot.lane.b32.xlu0 %v773, 91
  %v780 = vpop.permute.xlu0 %779
  %781 = vrot.lane.b32.xlu0 %v774, 91
  %v782 = vpop.permute.xlu0 %781
  %783 = vrot.lane.b32.xlu0 %v775, 91
  %v784 = vpop.permute.xlu0 %783
  %v785 = vsel %vm712, %v780, %v782
  %v786 = vsel %vm712, %v782, %v784
  %v790 = vadd.f32 %v766, %v785
  %v791 = vadd.f32 %v767, %v786
  %v792 = vadd.f32 %v768, %v784
  %793 = vset.pattern.permute.xlu0 8
  %794 = vperm.xlu0 %793, %v24
  %v795 = vpop.permute.xlu0 %794
  %v797 = vmul.f32 %v795, %v48
  %v798 = vmul.f32 %v795, %v49
  %v799 = vmul.f32 %v795, %v50
  %803 = vrot.lane.b32.xlu0 %v797, 90
  %v804 = vpop.permute.xlu0 %803
  %805 = vrot.lane.b32.xlu0 %v798, 90
  %v806 = vpop.permute.xlu0 %805
  %807 = vrot.lane.b32.xlu0 %v799, 90
  %v808 = vpop.permute.xlu0 %807
  %vm809 = vcmask 736256
  %v810 = vsel %vm809, %v804, %v806
  %v811 = vsel %vm809, %v806, %v808
  %v815 = vadd.f32 %v790, %v810
  %v816 = vadd.f32 %v791, %v811
  %v817 = vadd.f32 %v792, %v808
  %818 = vset.pattern.permute.xlu0 17
  %819 = vperm.xlu0 %818, %v24
  %v820 = vpop.permute.xlu0 %819
  %v822 = vmul.f32 %v820, %v67
  %v823 = vmul.f32 %v820, %v68
  %v824 = vmul.f32 %v820, %v69
  %828 = vrot.lane.b32.xlu0 %v822, 90
  %v829 = vpop.permute.xlu0 %828
  %830 = vrot.lane.b32.xlu0 %v823, 90
  %v831 = vpop.permute.xlu0 %830
  %832 = vrot.lane.b32.xlu0 %v824, 90
  %v833 = vpop.permute.xlu0 %832
  %v834 = vsel %vm809, %v829, %v831
  %v835 = vsel %vm809, %v831, %v833
  %v839 = vadd.f32 %v815, %v834
  %v840 = vadd.f32 %v816, %v835
  %v841 = vadd.f32 %v817, %v833
  %842 = vset.pattern.permute.xlu0 26
  %843 = vperm.xlu0 %842, %v24
  %v844 = vpop.permute.xlu0 %843
  %v846 = vmul.f32 %v844, %v86
  %v847 = vmul.f32 %v844, %v87
  %v848 = vmul.f32 %v844, %v88
  %852 = vrot.lane.b32.xlu0 %v846, 90
  %v853 = vpop.permute.xlu0 %852
  %854 = vrot.lane.b32.xlu0 %v847, 90
  %v855 = vpop.permute.xlu0 %854
  %856 = vrot.lane.b32.xlu0 %v848, 90
  %v857 = vpop.permute.xlu0 %856
  %v858 = vsel %vm809, %v853, %v855
  %v859 = vsel %vm809, %v855, %v857
  %v863 = vadd.f32 %v839, %v858
  %v864 = vadd.f32 %v840, %v859
  %v865 = vadd.f32 %v841, %v857
  %866 = vset.pattern.permute.xlu0 35
  %867 = vperm.xlu0 %866, %v24
  %v868 = vpop.permute.xlu0 %867
  %v870 = vmul.f32 %v868, %v105
  %v871 = vmul.f32 %v868, %v106
  %v872 = vmul.f32 %v868, %v107
  %876 = vrot.lane.b32.xlu0 %v870, 90
  %v877 = vpop.permute.xlu0 %876
  %878 = vrot.lane.b32.xlu0 %v871, 90
  %v879 = vpop.permute.xlu0 %878
  %880 = vrot.lane.b32.xlu0 %v872, 90
  %v881 = vpop.permute.xlu0 %880
  %v882 = vsel %vm809, %v877, %v879
  %v883 = vsel %vm809, %v879, %v881
  %v887 = vadd.f32 %v863, %v882
  %v888 = vadd.f32 %v864, %v883
  %v889 = vadd.f32 %v865, %v881
  %v891 = vperm.slane %v23, 0
  %v892 = vperm.slane %v23, 1
  %v893 = vperm.slane %v23, 2
  %v897 = vmul.f32 %v887, %v891
  %v898 = vmul.f32 %v888, %v892
  %v899 = vmul.f32 %v889, %v893
  %vm900 = vcmask 1043456
  %v901 = vsel %vm900, %v897, 0.0
  %v902 = vsel %vm900, %v898, 0.0
  %v903 = vadd.f32 %v901, %v902
  %vm904 = vcmask 257024
  %v905 = vsel %vm904, %v899, 0.0
  %v906 = vadd.f32 %v903, %v905
  %907 = vadd.xlane.f32.xlu0 %v906
  %v908 = vpop.xlane.xlu0 %907
  %v909 = vmul.f32 %v897, %v897
  %v910 = vmul.f32 %v898, %v898
  %v911 = vmul.f32 %v899, %v899
  %v912 = vsel %vm900, %v909, 0.0
  %v913 = vsel %vm900, %v910, 0.0
  %v914 = vadd.f32 %v912, %v913
  %v915 = vsel %vm904, %v911, 0.0
  %v916 = vadd.f32 %v914, %v915
  %917 = vadd.xlane.f32.xlu0 %v916
  %v918 = vpop.xlane.xlu0 %917
  %v919 = vmul.f32 %v908, 0.00390625
  %v920 = vmul.f32 %v918, 0.00390625
  %v921 = vmul.f32 %v919, %v919
  %v922 = vsub.f32 %v920, %v921
  %v923 = vsub.f32 %v887, %v919
  %v924 = vsub.f32 %v888, %v919
  %v925 = vsub.f32 %v889, %v919
  %v926 = vadd.f32 %v922, 1e-05
  %v927 = vrsqrt.pop %v926
  %v928 = vmul.f32 %v927, %v926
  %v929 = vmul.f32 %v928, %v927
  %v930 = vmul.f32 0.5, %v929
  %v931 = vsub.f32 1.5, %v930
  %v932 = vmul.f32 %v927, %v931
  %vm933 = vweird.f32 %v926
  %vm934 = vweird.f32 %v927
  %vm935 = vmor %vm933, %vm934
  %v936 = vsel %vm935, %v927, %v932
  %v937 = vmul.f32 %v923, %v936
  %v938 = vmul.f32 %v924, %v936
  %v939 = vmul.f32 %v925, %v936
  %v940 = vmax.f32 %v937, 0.0
  %v941 = vmax.f32 %v938, 0.0
  %v942 = vmax.f32 %v939, 0.0
  %v943 = vmul.f32 %v940, %v891
  %v944 = vmul.f32 %v941, %v892
  %v945 = vmul.f32 %v942, %v893
  %949 = vrot.lane.b32.xlu0 %v943, 19
  %v950 = vpop.permute.xlu0 %949
  %951 = vrot.lane.b32.xlu0 %v944, 19
  %v952 = vpop.permute.xlu0 %951
  %953 = vrot.lane.b32.xlu0 %v945, 19
  %v954 = vpop.permute.xlu0 %953
  %vm955 = vcmask 154624
  %v956 = vsel %vm955, %v950, %v952
  %v957 = vsel %vm955, %v952, %v954
  %v961 = vsel %vm955, 0.0, %v950
  %vm962 = vcmask 416768
  %v963 = vsel %vm962, %v957, 0.0
  %965 = vset.pattern.permute.xlu0 0
  %966 = vperm.xlu0 %965, %v27
  %v967 = vpop.permute.xlu0 %966
  %970 = vset.pattern.permute.xlu0 0
  %971 = vperm.xlu0 %970, %v25
  %v972 = vpop.permute.xlu0 %971
  %v974 = vperm.slane %v961, 0
  %v975 = vperm.slane %v956, 0
  %v976 = vperm.slane %v963, 0
  %v977 = vmul.f32 %v972, %v974
  %v978 = vmul.f32 %v972, %v975
  %v979 = vmul.f32 %v972, %v976
  %v980 = vadd.f32 %v967, %v977
  %v981 = vadd.f32 %v967, %v978
  %v982 = vadd.f32 %v967, %v979
  %983 = vset.pattern.permute.xlu0 9
  %984 = vperm.xlu0 %983, %v25
  %v985 = vpop.permute.xlu0 %984
  %v987 = vperm.slane %v961, 1
  %v988 = vperm.slane %v956, 1
  %v989 = vperm.slane %v963, 1
  %v990 = vmul.f32 %v985, %v987
  %v991 = vmul.f32 %v985, %v988
  %v992 = vmul.f32 %v985, %v989
  %v993 = vadd.f32 %v980, %v990
  %v994 = vadd.f32 %v981, %v991
  %v995 = vadd.f32 %v982, %v992
  %996 = vset.pattern.permute.xlu0 18
  %997 = vperm.xlu0 %996, %v25
  %v998 = vpop.permute.xlu0 %997
  %v1000 = vperm.slane %v961, 2
  %v1001 = vperm.slane %v956, 2
  %v1002 = vperm.slane %v963, 2
  %v1003 = vmul.f32 %v998, %v1000
  %v1004 = vmul.f32 %v998, %v1001
  %v1005 = vmul.f32 %v998, %v1002
  %v1006 = vadd.f32 %v993, %v1003
  %v1007 = vadd.f32 %v994, %v1004
  %v1008 = vadd.f32 %v995, %v1005
  %1009 = vset.pattern.permute.xlu0 27
  %1010 = vperm.xlu0 %1009, %v25
  %v1011 = vpop.permute.xlu0 %1010
  %v1013 = vperm.slane %v961, 3
  %v1014 = vperm.slane %v956, 3
  %v1015 = vperm.slane %v963, 3
  %v1016 = vmul.f32 %v1011, %v1013
  %v1017 = vmul.f32 %v1011, %v1014
  %v1018 = vmul.f32 %v1011, %v1015
  %v1019 = vadd.f32 %v1006, %v1016
  %v1020 = vadd.f32 %v1007, %v1017
  %v1021 = vadd.f32 %v1008, %v1018
  %1022 = vset.pattern.permute.xlu0 1
  %1023 = vperm.xlu0 %1022, %v25
  %v1024 = vpop.permute.xlu0 %1023
  %v1026 = vmul.f32 %v1024, %v974
  %v1027 = vmul.f32 %v1024, %v975
  %v1028 = vmul.f32 %v1024, %v976
  %1032 = vrot.lane.b32.xlu0 %v1026, 127
  %v1033 = vpop.permute.xlu0 %1032
  %1034 = vrot.lane.b32.xlu0 %v1027, 127
  %v1035 = vpop.permute.xlu0 %1034
  %1036 = vrot.lane.b32.xlu0 %v1028, 127
  %v1037 = vpop.permute.xlu0 %1036
  %v1038 = vsel %vm130, %v1033, %v1035
  %v1039 = vsel %vm130, %v1035, %v1037
  %v1043 = vadd.f32 %v1019, %v1038
  %v1044 = vadd.f32 %v1020, %v1039
  %v1045 = vadd.f32 %v1021, %v1037
  %1046 = vset.pattern.permute.xlu0 10
  %1047 = vperm.xlu0 %1046, %v25
  %v1048 = vpop.permute.xlu0 %1047
  %v1050 = vmul.f32 %v1048, %v987
  %v1051 = vmul.f32 %v1048, %v988
  %v1052 = vmul.f32 %v1048, %v989
  %1056 = vrot.lane.b32.xlu0 %v1050, 127
  %v1057 = vpop.permute.xlu0 %1056
  %1058 = vrot.lane.b32.xlu0 %v1051, 127
  %v1059 = vpop.permute.xlu0 %1058
  %1060 = vrot.lane.b32.xlu0 %v1052, 127
  %v1061 = vpop.permute.xlu0 %1060
  %v1062 = vsel %vm130, %v1057, %v1059
  %v1063 = vsel %vm130, %v1059, %v1061
  %v1067 = vadd.f32 %v1043, %v1062
  %v1068 = vadd.f32 %v1044, %v1063
  %v1069 = vadd.f32 %v1045, %v1061
  %1070 = vset.pattern.permute.xlu0 19
  %1071 = vperm.xlu0 %1070, %v25
  %v1072 = vpop.permute.xlu0 %1071
  %v1074 = vmul.f32 %v1072, %v1000
  %v1075 = vmul.f32 %v1072, %v1001
  %v1076 = vmul.f32 %v1072, %v1002
  %1080 = vrot.lane.b32.xlu0 %v1074, 127
  %v1081 = vpop.permute.xlu0 %1080
  %1082 = vrot.lane.b32.xlu0 %v1075, 127
  %v1083 = vpop.permute.xlu0 %1082
  %1084 = vrot.lane.b32.xlu0 %v1076, 127
  %v1085 = vpop.permute.xlu0 %1084
  %v1086 = vsel %vm130, %v1081, %v1083
  %v1087 = vsel %vm130, %v1083, %v1085
  %v1091 = vadd.f32 %v1067, %v1086
  %v1092 = vadd.f32 %v1068, %v1087
  %v1093 = vadd.f32 %v1069, %v1085
  %1094 = vset.pattern.permute.xlu0 28
  %1095 = vperm.xlu0 %1094, %v25
  %v1096 = vpop.permute.xlu0 %1095
  %v1098 = vmul.f32 %v1096, %v1013
  %v1099 = vmul.f32 %v1096, %v1014
  %v1100 = vmul.f32 %v1096, %v1015
  %1104 = vrot.lane.b32.xlu0 %v1098, 127
  %v1105 = vpop.permute.xlu0 %1104
  %1106 = vrot.lane.b32.xlu0 %v1099, 127
  %v1107 = vpop.permute.xlu0 %1106
  %1108 = vrot.lane.b32.xlu0 %v1100, 127
  %v1109 = vpop.permute.xlu0 %1108
  %v1110 = vsel %vm130, %v1105, %v1107
  %v1111 = vsel %vm130, %v1107, %v1109
  %v1115 = vadd.f32 %v1091, %v1110
  %v1116 = vadd.f32 %v1092, %v1111
  %v1117 = vadd.f32 %v1093, %v1109
  %1118 = vset.pattern.permute.xlu0 2
  %1119 = vperm.xlu0 %1118, %v25
  %v1120 = vpop.permute.xlu0 %1119
  %v1122 = vmul.f32 %v1120, %v974
  %v1123 = vmul.f32 %v1120, %v975
  %v1124 = vmul.f32 %v1120, %v976
  %1128 = vrot.lane.b32.xlu0 %v1122, 126
  %v1129 = vpop.permute.xlu0 %1128
  %1130 = vrot.lane.b32.xlu0 %v1123, 126
  %v1131 = vpop.permute.xlu0 %1130
  %1132 = vrot.lane.b32.xlu0 %v1124, 126
  %v1133 = vpop.permute.xlu0 %1132
  %v1134 = vsel %vm227, %v1129, %v1131
  %v1135 = vsel %vm227, %v1131, %v1133
  %v1139 = vadd.f32 %v1115, %v1134
  %v1140 = vadd.f32 %v1116, %v1135
  %v1141 = vadd.f32 %v1117, %v1133
  %1142 = vset.pattern.permute.xlu0 11
  %1143 = vperm.xlu0 %1142, %v25
  %v1144 = vpop.permute.xlu0 %1143
  %v1146 = vmul.f32 %v1144, %v987
  %v1147 = vmul.f32 %v1144, %v988
  %v1148 = vmul.f32 %v1144, %v989
  %1152 = vrot.lane.b32.xlu0 %v1146, 126
  %v1153 = vpop.permute.xlu0 %1152
  %1154 = vrot.lane.b32.xlu0 %v1147, 126
  %v1155 = vpop.permute.xlu0 %1154
  %1156 = vrot.lane.b32.xlu0 %v1148, 126
  %v1157 = vpop.permute.xlu0 %1156
  %v1158 = vsel %vm227, %v1153, %v1155
  %v1159 = vsel %vm227, %v1155, %v1157
  %v1163 = vadd.f32 %v1139, %v1158
  %v1164 = vadd.f32 %v1140, %v1159
  %v1165 = vadd.f32 %v1141, %v1157
  %1166 = vset.pattern.permute.xlu0 20
  %1167 = vperm.xlu0 %1166, %v25
  %v1168 = vpop.permute.xlu0 %1167
  %v1170 = vmul.f32 %v1168, %v1000
  %v1171 = vmul.f32 %v1168, %v1001
  %v1172 = vmul.f32 %v1168, %v1002
  %1176 = vrot.lane.b32.xlu0 %v1170, 126
  %v1177 = vpop.permute.xlu0 %1176
  %1178 = vrot.lane.b32.xlu0 %v1171, 126
  %v1179 = vpop.permute.xlu0 %1178
  %1180 = vrot.lane.b32.xlu0 %v1172, 126
  %v1181 = vpop.permute.xlu0 %1180
  %v1182 = vsel %vm227, %v1177, %v1179
  %v1183 = vsel %vm227, %v1179, %v1181
  %v1187 = vadd.f32 %v1163, %v1182
  %v1188 = vadd.f32 %v1164, %v1183
  %v1189 = vadd.f32 %v1165, %v1181
  %1190 = vset.pattern.permute.xlu0 29
  %1191 = vperm.xlu0 %1190, %v25
  %v1192 = vpop.permute.xlu0 %1191
  %v1194 = vmul.f32 %v1192, %v1013
  %v1195 = vmul.f32 %v1192, %v1014
  %v1196 = vmul.f32 %v1192, %v1015
  %1200 = vrot.lane.b32.xlu0 %v1194, 126
  %v1201 = vpop.permute.xlu0 %1200
  %1202 = vrot.lane.b32.xlu0 %v1195, 126
  %v1203 = vpop.permute.xlu0 %1202
  %1204 = vrot.lane.b32.xlu0 %v1196, 126
  %v1205 = vpop.permute.xlu0 %1204
  %v1206 = vsel %vm227, %v1201, %v1203
  %v1207 = vsel %vm227, %v1203, %v1205
  %v1211 = vadd.f32 %v1187, %v1206
  %v1212 = vadd.f32 %v1188, %v1207
  %v1213 = vadd.f32 %v1189, %v1205
  %1214 = vset.pattern.permute.xlu0 3
  %1215 = vperm.xlu0 %1214, %v25
  %v1216 = vpop.permute.xlu0 %1215
  %v1218 = vmul.f32 %v1216, %v974
  %v1219 = vmul.f32 %v1216, %v975
  %v1220 = vmul.f32 %v1216, %v976
  %1224 = vrot.lane.b32.xlu0 %v1218, 110
  %v1225 = vpop.permute.xlu0 %1224
  %1226 = vrot.lane.b32.xlu0 %v1219, 110
  %v1227 = vpop.permute.xlu0 %1226
  %1228 = vrot.lane.b32.xlu0 %v1220, 110
  %v1229 = vpop.permute.xlu0 %1228
  %v1230 = vsel %vm324, %v1225, %v1227
  %v1231 = vsel %vm324, %v1227, %v1229
  %v1235 = vadd.f32 %v1211, %v1230
  %v1236 = vadd.f32 %v1212, %v1231
  %v1237 = vadd.f32 %v1213, %v1229
  %1238 = vset.pattern.permute.xlu0 12
  %1239 = vperm.xlu0 %1238, %v25
  %v1240 = vpop.permute.xlu0 %1239
  %v1242 = vmul.f32 %v1240, %v987
  %v1243 = vmul.f32 %v1240, %v988
  %v1244 = vmul.f32 %v1240, %v989
  %1248 = vrot.lane.b32.xlu0 %v1242, 110
  %v1249 = vpop.permute.xlu0 %1248
  %1250 = vrot.lane.b32.xlu0 %v1243, 110
  %v1251 = vpop.permute.xlu0 %1250
  %1252 = vrot.lane.b32.xlu0 %v1244, 110
  %v1253 = vpop.permute.xlu0 %1252
  %v1254 = vsel %vm324, %v1249, %v1251
  %v1255 = vsel %vm324, %v1251, %v1253
  %v1259 = vadd.f32 %v1235, %v1254
  %v1260 = vadd.f32 %v1236, %v1255
  %v1261 = vadd.f32 %v1237, %v1253
  %1262 = vset.pattern.permute.xlu0 21
  %1263 = vperm.xlu0 %1262, %v25
  %v1264 = vpop.permute.xlu0 %1263
  %v1266 = vmul.f32 %v1264, %v1000
  %v1267 = vmul.f32 %v1264, %v1001
  %v1268 = vmul.f32 %v1264, %v1002
  %1272 = vrot.lane.b32.xlu0 %v1266, 110
  %v1273 = vpop.permute.xlu0 %1272
  %1274 = vrot.lane.b32.xlu0 %v1267, 110
  %v1275 = vpop.permute.xlu0 %1274
  %1276 = vrot.lane.b32.xlu0 %v1268, 110
  %v1277 = vpop.permute.xlu0 %1276
  %v1278 = vsel %vm324, %v1273, %v1275
  %v1279 = vsel %vm324, %v1275, %v1277
  %v1283 = vadd.f32 %v1259, %v1278
  %v1284 = vadd.f32 %v1260, %v1279
  %v1285 = vadd.f32 %v1261, %v1277
  %1286 = vset.pattern.permute.xlu0 30
  %1287 = vperm.xlu0 %1286, %v25
  %v1288 = vpop.permute.xlu0 %1287
  %v1290 = vmul.f32 %v1288, %v1013
  %v1291 = vmul.f32 %v1288, %v1014
  %v1292 = vmul.f32 %v1288, %v1015
  %1296 = vrot.lane.b32.xlu0 %v1290, 110
  %v1297 = vpop.permute.xlu0 %1296
  %1298 = vrot.lane.b32.xlu0 %v1291, 110
  %v1299 = vpop.permute.xlu0 %1298
  %1300 = vrot.lane.b32.xlu0 %v1292, 110
  %v1301 = vpop.permute.xlu0 %1300
  %v1302 = vsel %vm324, %v1297, %v1299
  %v1303 = vsel %vm324, %v1299, %v1301
  %v1307 = vadd.f32 %v1283, %v1302
  %v1308 = vadd.f32 %v1284, %v1303
  %v1309 = vadd.f32 %v1285, %v1301
  %1310 = vset.pattern.permute.xlu0 4
  %1311 = vperm.xlu0 %1310, %v25
  %v1312 = vpop.permute.xlu0 %1311
  %v1314 = vmul.f32 %v1312, %v974
  %v1315 = vmul.f32 %v1312, %v975
  %v1316 = vmul.f32 %v1312, %v976
  %1320 = vrot.lane.b32.xlu0 %v1314, 109
  %v1321 = vpop.permute.xlu0 %1320
  %1322 = vrot.lane.b32.xlu0 %v1315, 109
  %v1323 = vpop.permute.xlu0 %1322
  %1324 = vrot.lane.b32.xlu0 %v1316, 109
  %v1325 = vpop.permute.xlu0 %1324
  %v1326 = vsel %vm421, %v1321, %v1323
  %v1327 = vsel %vm421, %v1323, %v1325
  %v1331 = vadd.f32 %v1307, %v1326
  %v1332 = vadd.f32 %v1308, %v1327
  %v1333 = vadd.f32 %v1309, %v1325
  %1334 = vset.pattern.permute.xlu0 13
  %1335 = vperm.xlu0 %1334, %v25
  %v1336 = vpop.permute.xlu0 %1335
  %v1338 = vmul.f32 %v1336, %v987
  %v1339 = vmul.f32 %v1336, %v988
  %v1340 = vmul.f32 %v1336, %v989
  %1344 = vrot.lane.b32.xlu0 %v1338, 109
  %v1345 = vpop.permute.xlu0 %1344
  %1346 = vrot.lane.b32.xlu0 %v1339, 109
  %v1347 = vpop.permute.xlu0 %1346
  %1348 = vrot.lane.b32.xlu0 %v1340, 109
  %v1349 = vpop.permute.xlu0 %1348
  %v1350 = vsel %vm421, %v1345, %v1347
  %v1351 = vsel %vm421, %v1347, %v1349
  %v1355 = vadd.f32 %v1331, %v1350
  %v1356 = vadd.f32 %v1332, %v1351
  %v1357 = vadd.f32 %v1333, %v1349
  %1358 = vset.pattern.permute.xlu0 22
  %1359 = vperm.xlu0 %1358, %v25
  %v1360 = vpop.permute.xlu0 %1359
  %v1362 = vmul.f32 %v1360, %v1000
  %v1363 = vmul.f32 %v1360, %v1001
  %v1364 = vmul.f32 %v1360, %v1002
  %1368 = vrot.lane.b32.xlu0 %v1362, 109
  %v1369 = vpop.permute.xlu0 %1368
  %1370 = vrot.lane.b32.xlu0 %v1363, 109
  %v1371 = vpop.permute.xlu0 %1370
  %1372 = vrot.lane.b32.xlu0 %v1364, 109
  %v1373 = vpop.permute.xlu0 %1372
  %v1374 = vsel %vm421, %v1369, %v1371
  %v1375 = vsel %vm421, %v1371, %v1373
  %v1379 = vadd.f32 %v1355, %v1374
  %v1380 = vadd.f32 %v1356, %v1375
  %v1381 = vadd.f32 %v1357, %v1373
  %1382 = vset.pattern.permute.xlu0 31
  %1383 = vperm.xlu0 %1382, %v25
  %v1384 = vpop.permute.xlu0 %1383
  %v1386 = vmul.f32 %v1384, %v1013
  %v1387 = vmul.f32 %v1384, %v1014
  %v1388 = vmul.f32 %v1384, %v1015
  %1392 = vrot.lane.b32.xlu0 %v1386, 109
  %v1393 = vpop.permute.xlu0 %1392
  %1394 = vrot.lane.b32.xlu0 %v1387, 109
  %v1395 = vpop.permute.xlu0 %1394
  %1396 = vrot.lane.b32.xlu0 %v1388, 109
  %v1397 = vpop.permute.xlu0 %1396
  %v1398 = vsel %vm421, %v1393, %v1395
  %v1399 = vsel %vm421, %v1395, %v1397
  %v1403 = vadd.f32 %v1379, %v1398
  %v1404 = vadd.f32 %v1380, %v1399
  %v1405 = vadd.f32 %v1381, %v1397
  %1406 = vset.pattern.permute.xlu0 5
  %1407 = vperm.xlu0 %1406, %v25
  %v1408 = vpop.permute.xlu0 %1407
  %v1410 = vmul.f32 %v1408, %v974
  %v1411 = vmul.f32 %v1408, %v975
  %v1412 = vmul.f32 %v1408, %v976
  %1416 = vrot.lane.b32.xlu0 %v1410, 108
  %v1417 = vpop.permute.xlu0 %1416
  %1418 = vrot.lane.b32.xlu0 %v1411, 108
  %v1419 = vpop.permute.xlu0 %1418
  %1420 = vrot.lane.b32.xlu0 %v1412, 108
  %v1421 = vpop.permute.xlu0 %1420
  %v1422 = vsel %vm518, %v1417, %v1419
  %v1423 = vsel %vm518, %v1419, %v1421
  %v1427 = vadd.f32 %v1403, %v1422
  %v1428 = vadd.f32 %v1404, %v1423
  %v1429 = vadd.f32 %v1405, %v1421
  %1430 = vset.pattern.permute.xlu0 14
  %1431 = vperm.xlu0 %1430, %v25
  %v1432 = vpop.permute.xlu0 %1431
  %v1434 = vmul.f32 %v1432, %v987
  %v1435 = vmul.f32 %v1432, %v988
  %v1436 = vmul.f32 %v1432, %v989
  %1440 = vrot.lane.b32.xlu0 %v1434, 108
  %v1441 = vpop.permute.xlu0 %1440
  %1442 = vrot.lane.b32.xlu0 %v1435, 108
  %v1443 = vpop.permute.xlu0 %1442
  %1444 = vrot.lane.b32.xlu0 %v1436, 108
  %v1445 = vpop.permute.xlu0 %1444
  %v1446 = vsel %vm518, %v1441, %v1443
  %v1447 = vsel %vm518, %v1443, %v1445
  %v1451 = vadd.f32 %v1427, %v1446
  %v1452 = vadd.f32 %v1428, %v1447
  %v1453 = vadd.f32 %v1429, %v1445
  %1454 = vset.pattern.permute.xlu0 23
  %1455 = vperm.xlu0 %1454, %v25
  %v1456 = vpop.permute.xlu0 %1455
  %v1458 = vmul.f32 %v1456, %v1000
  %v1459 = vmul.f32 %v1456, %v1001
  %v1460 = vmul.f32 %v1456, %v1002
  %1464 = vrot.lane.b32.xlu0 %v1458, 108
  %v1465 = vpop.permute.xlu0 %1464
  %1466 = vrot.lane.b32.xlu0 %v1459, 108
  %v1467 = vpop.permute.xlu0 %1466
  %1468 = vrot.lane.b32.xlu0 %v1460, 108
  %v1469 = vpop.permute.xlu0 %1468
  %v1470 = vsel %vm518, %v1465, %v1467
  %v1471 = vsel %vm518, %v1467, %v1469
  %v1475 = vadd.f32 %v1451, %v1470
  %v1476 = vadd.f32 %v1452, %v1471
  %v1477 = vadd.f32 %v1453, %v1469
  %1478 = vset.pattern.permute.xlu0 32
  %1479 = vperm.xlu0 %1478, %v25
  %v1480 = vpop.permute.xlu0 %1479
  %v1482 = vmul.f32 %v1480, %v1013
  %v1483 = vmul.f32 %v1480, %v1014
  %v1484 = vmul.f32 %v1480, %v1015
  %1488 = vrot.lane.b32.xlu0 %v1482, 108
  %v1489 = vpop.permute.xlu0 %1488
  %1490 = vrot.lane.b32.xlu0 %v1483, 108
  %v1491 = vpop.permute.xlu0 %1490
  %1492 = vrot.lane.b32.xlu0 %v1484, 108
  %v1493 = vpop.permute.xlu0 %1492
  %v1494 = vsel %vm518, %v1489, %v1491
  %v1495 = vsel %vm518, %v1491, %v1493
  %v1499 = vadd.f32 %v1475, %v1494
  %v1500 = vadd.f32 %v1476, %v1495
  %v1501 = vadd.f32 %v1477, %v1493
  %1502 = vset.pattern.permute.xlu0 6
  %1503 = vperm.xlu0 %1502, %v25
  %v1504 = vpop.permute.xlu0 %1503
  %v1506 = vmul.f32 %v1504, %v974
  %v1507 = vmul.f32 %v1504, %v975
  %v1508 = vmul.f32 %v1504, %v976
  %1512 = vrot.lane.b32.xlu0 %v1506, 92
  %v1513 = vpop.permute.xlu0 %1512
  %1514 = vrot.lane.b32.xlu0 %v1507, 92
  %v1515 = vpop.permute.xlu0 %1514
  %1516 = vrot.lane.b32.xlu0 %v1508, 92
  %v1517 = vpop.permute.xlu0 %1516
  %v1518 = vsel %vm615, %v1513, %v1515
  %v1519 = vsel %vm615, %v1515, %v1517
  %v1523 = vadd.f32 %v1499, %v1518
  %v1524 = vadd.f32 %v1500, %v1519
  %v1525 = vadd.f32 %v1501, %v1517
  %1526 = vset.pattern.permute.xlu0 15
  %1527 = vperm.xlu0 %1526, %v25
  %v1528 = vpop.permute.xlu0 %1527
  %v1530 = vmul.f32 %v1528, %v987
  %v1531 = vmul.f32 %v1528, %v988
  %v1532 = vmul.f32 %v1528, %v989
  %1536 = vrot.lane.b32.xlu0 %v1530, 92
  %v1537 = vpop.permute.xlu0 %1536
  %1538 = vrot.lane.b32.xlu0 %v1531, 92
  %v1539 = vpop.permute.xlu0 %1538
  %1540 = vrot.lane.b32.xlu0 %v1532, 92
  %v1541 = vpop.permute.xlu0 %1540
  %v1542 = vsel %vm615, %v1537, %v1539
  %v1543 = vsel %vm615, %v1539, %v1541
  %v1547 = vadd.f32 %v1523, %v1542
  %v1548 = vadd.f32 %v1524, %v1543
  %v1549 = vadd.f32 %v1525, %v1541
  %1550 = vset.pattern.permute.xlu0 24
  %1551 = vperm.xlu0 %1550, %v25
  %v1552 = vpop.permute.xlu0 %1551
  %v1554 = vmul.f32 %v1552, %v1000
  %v1555 = vmul.f32 %v1552, %v1001
  %v1556 = vmul.f32 %v1552, %v1002
  %1560 = vrot.lane.b32.xlu0 %v1554, 92
  %v1561 = vpop.permute.xlu0 %1560
  %1562 = vrot.lane.b32.xlu0 %v1555, 92
  %v1563 = vpop.permute.xlu0 %1562
  %1564 = vrot.lane.b32.xlu0 %v1556, 92
  %v1565 = vpop.permute.xlu0 %1564
  %v1566 = vsel %vm615, %v1561, %v1563
  %v1567 = vsel %vm615, %v1563, %v1565
  %v1571 = vadd.f32 %v1547, %v1566
  %v1572 = vadd.f32 %v1548, %v1567
  %v1573 = vadd.f32 %v1549, %v1565
  %1574 = vset.pattern.permute.xlu0 33
  %1575 = vperm.xlu0 %1574, %v25
  %v1576 = vpop.permute.xlu0 %1575
  %v1578 = vmul.f32 %v1576, %v1013
  %v1579 = vmul.f32 %v1576, %v1014
  %v1580 = vmul.f32 %v1576, %v1015
  %1584 = vrot.lane.b32.xlu0 %v1578, 92
  %v1585 = vpop.permute.xlu0 %1584
  %1586 = vrot.lane.b32.xlu0 %v1579, 92
  %v1587 = vpop.permute.xlu0 %1586
  %1588 = vrot.lane.b32.xlu0 %v1580, 92
  %v1589 = vpop.permute.xlu0 %1588
  %v1590 = vsel %vm615, %v1585, %v1587
  %v1591 = vsel %vm615, %v1587, %v1589
  %v1595 = vadd.f32 %v1571, %v1590
  %v1596 = vadd.f32 %v1572, %v1591
  %v1597 = vadd.f32 %v1573, %v1589
  %1598 = vset.pattern.permute.xlu0 7
  %1599 = vperm.xlu0 %1598, %v25
  %v1600 = vpop.permute.xlu0 %1599
  %v1602 = vmul.f32 %v1600, %v974
  %v1603 = vmul.f32 %v1600, %v975
  %v1604 = vmul.f32 %v1600, %v976
  %1608 = vrot.lane.b32.xlu0 %v1602, 91
  %v1609 = vpop.permute.xlu0 %1608
  %1610 = vrot.lane.b32.xlu0 %v1603, 91
  %v1611 = vpop.permute.xlu0 %1610
  %1612 = vrot.lane.b32.xlu0 %v1604, 91
  %v1613 = vpop.permute.xlu0 %1612
  %v1614 = vsel %vm712, %v1609, %v1611
  %v1615 = vsel %vm712, %v1611, %v1613
  %v1619 = vadd.f32 %v1595, %v1614
  %v1620 = vadd.f32 %v1596, %v1615
  %v1621 = vadd.f32 %v1597, %v1613
  %1622 = vset.pattern.permute.xlu0 16
  %1623 = vperm.xlu0 %1622, %v25
  %v1624 = vpop.permute.xlu0 %1623
  %v1626 = vmul.f32 %v1624, %v987
  %v1627 = vmul.f32 %v1624, %v988
  %v1628 = vmul.f32 %v1624, %v989
  %1632 = vrot.lane.b32.xlu0 %v1626, 91
  %v1633 = vpop.permute.xlu0 %1632
  %1634 = vrot.lane.b32.xlu0 %v1627, 91
  %v1635 = vpop.permute.xlu0 %1634
  %1636 = vrot.lane.b32.xlu0 %v1628, 91
  %v1637 = vpop.permute.xlu0 %1636
  %v1638 = vsel %vm712, %v1633, %v1635
  %v1639 = vsel %vm712, %v1635, %v1637
  %v1643 = vadd.f32 %v1619, %v1638
  %v1644 = vadd.f32 %v1620, %v1639
  %v1645 = vadd.f32 %v1621, %v1637
  %1646 = vset.pattern.permute.xlu0 25
  %1647 = vperm.xlu0 %1646, %v25
  %v1648 = vpop.permute.xlu0 %1647
  %v1650 = vmul.f32 %v1648, %v1000
  %v1651 = vmul.f32 %v1648, %v1001
  %v1652 = vmul.f32 %v1648, %v1002
  %1656 = vrot.lane.b32.xlu0 %v1650, 91
  %v1657 = vpop.permute.xlu0 %1656
  %1658 = vrot.lane.b32.xlu0 %v1651, 91
  %v1659 = vpop.permute.xlu0 %1658
  %1660 = vrot.lane.b32.xlu0 %v1652, 91
  %v1661 = vpop.permute.xlu0 %1660
  %v1662 = vsel %vm712, %v1657, %v1659
  %v1663 = vsel %vm712, %v1659, %v1661
  %v1667 = vadd.f32 %v1643, %v1662
  %v1668 = vadd.f32 %v1644, %v1663
  %v1669 = vadd.f32 %v1645, %v1661
  %1670 = vset.pattern.permute.xlu0 34
  %1671 = vperm.xlu0 %1670, %v25
  %v1672 = vpop.permute.xlu0 %1671
  %v1674 = vmul.f32 %v1672, %v1013
  %v1675 = vmul.f32 %v1672, %v1014
  %v1676 = vmul.f32 %v1672, %v1015
  %1680 = vrot.lane.b32.xlu0 %v1674, 91
  %v1681 = vpop.permute.xlu0 %1680
  %1682 = vrot.lane.b32.xlu0 %v1675, 91
  %v1683 = vpop.permute.xlu0 %1682
  %1684 = vrot.lane.b32.xlu0 %v1676, 91
  %v1685 = vpop.permute.xlu0 %1684
  %v1686 = vsel %vm712, %v1681, %v1683
  %v1687 = vsel %vm712, %v1683, %v1685
  %v1691 = vadd.f32 %v1667, %v1686
  %v1692 = vadd.f32 %v1668, %v1687
  %v1693 = vadd.f32 %v1669, %v1685
  %1694 = vset.pattern.permute.xlu0 8
  %1695 = vperm.xlu0 %1694, %v25
  %v1696 = vpop.permute.xlu0 %1695
  %v1698 = vmul.f32 %v1696, %v974
  %v1699 = vmul.f32 %v1696, %v975
  %v1700 = vmul.f32 %v1696, %v976
  %1704 = vrot.lane.b32.xlu0 %v1698, 90
  %v1705 = vpop.permute.xlu0 %1704
  %1706 = vrot.lane.b32.xlu0 %v1699, 90
  %v1707 = vpop.permute.xlu0 %1706
  %1708 = vrot.lane.b32.xlu0 %v1700, 90
  %v1709 = vpop.permute.xlu0 %1708
  %v1710 = vsel %vm809, %v1705, %v1707
  %v1711 = vsel %vm809, %v1707, %v1709
  %v1715 = vadd.f32 %v1691, %v1710
  %v1716 = vadd.f32 %v1692, %v1711
  %v1717 = vadd.f32 %v1693, %v1709
  %1718 = vset.pattern.permute.xlu0 17
  %1719 = vperm.xlu0 %1718, %v25
  %v1720 = vpop.permute.xlu0 %1719
  %v1722 = vmul.f32 %v1720, %v987
  %v1723 = vmul.f32 %v1720, %v988
  %v1724 = vmul.f32 %v1720, %v989
  %1728 = vrot.lane.b32.xlu0 %v1722, 90
  %v1729 = vpop.permute.xlu0 %1728
  %1730 = vrot.lane.b32.xlu0 %v1723, 90
  %v1731 = vpop.permute.xlu0 %1730
  %1732 = vrot.lane.b32.xlu0 %v1724, 90
  %v1733 = vpop.permute.xlu0 %1732
  %v1734 = vsel %vm809, %v1729, %v1731
  %v1735 = vsel %vm809, %v1731, %v1733
  %v1739 = vadd.f32 %v1715, %v1734
  %v1740 = vadd.f32 %v1716, %v1735
  %v1741 = vadd.f32 %v1717, %v1733
  %1742 = vset.pattern.permute.xlu0 26
  %1743 = vperm.xlu0 %1742, %v25
  %v1744 = vpop.permute.xlu0 %1743
  %v1746 = vmul.f32 %v1744, %v1000
  %v1747 = vmul.f32 %v1744, %v1001
  %v1748 = vmul.f32 %v1744, %v1002
  %1752 = vrot.lane.b32.xlu0 %v1746, 90
  %v1753 = vpop.permute.xlu0 %1752
  %1754 = vrot.lane.b32.xlu0 %v1747, 90
  %v1755 = vpop.permute.xlu0 %1754
  %1756 = vrot.lane.b32.xlu0 %v1748, 90
  %v1757 = vpop.permute.xlu0 %1756
  %v1758 = vsel %vm809, %v1753, %v1755
  %v1759 = vsel %vm809, %v1755, %v1757
  %v1763 = vadd.f32 %v1739, %v1758
  %v1764 = vadd.f32 %v1740, %v1759
  %v1765 = vadd.f32 %v1741, %v1757
  %1766 = vset.pattern.permute.xlu0 35
  %1767 = vperm.xlu0 %1766, %v25
  %v1768 = vpop.permute.xlu0 %1767
  %v1770 = vmul.f32 %v1768, %v1013
  %v1771 = vmul.f32 %v1768, %v1014
  %v1772 = vmul.f32 %v1768, %v1015
  %1776 = vrot.lane.b32.xlu0 %v1770, 90
  %v1777 = vpop.permute.xlu0 %1776
  %1778 = vrot.lane.b32.xlu0 %v1771, 90
  %v1779 = vpop.permute.xlu0 %1778
  %1780 = vrot.lane.b32.xlu0 %v1772, 90
  %v1781 = vpop.permute.xlu0 %1780
  %v1782 = vsel %vm809, %v1777, %v1779
  %v1783 = vsel %vm809, %v1779, %v1781
  %v1787 = vadd.f32 %v1763, %v1782
  %v1788 = vadd.f32 %v1764, %v1783
  %v1789 = vadd.f32 %v1765, %v1781
  %v1790 = vmul.f32 %v1787, %v891
  %v1791 = vmul.f32 %v1788, %v892
  %v1792 = vmul.f32 %v1789, %v893
  %v1793 = vsel %vm900, %v1790, 0.0
  %v1794 = vsel %vm900, %v1791, 0.0
  %v1795 = vadd.f32 %v1793, %v1794
  %v1796 = vsel %vm904, %v1792, 0.0
  %v1797 = vadd.f32 %v1795, %v1796
  %1798 = vadd.xlane.f32.xlu0 %v1797
  %v1799 = vpop.xlane.xlu0 %1798
  %v1800 = vmul.f32 %v1790, %v1790
  %v1801 = vmul.f32 %v1791, %v1791
  %v1802 = vmul.f32 %v1792, %v1792
  %v1803 = vsel %vm900, %v1800, 0.0
  %v1804 = vsel %vm900, %v1801, 0.0
  %v1805 = vadd.f32 %v1803, %v1804
  %v1806 = vsel %vm904, %v1802, 0.0
  %v1807 = vadd.f32 %v1805, %v1806
  %1808 = vadd.xlane.f32.xlu0 %v1807
  %v1809 = vpop.xlane.xlu0 %1808
  %v1810 = vmul.f32 %v1799, 0.00390625
  %v1811 = vmul.f32 %v1809, 0.00390625
  %v1812 = vmul.f32 %v1810, %v1810
  %v1813 = vsub.f32 %v1811, %v1812
  %v1814 = vsub.f32 %v1787, %v1810
  %v1815 = vsub.f32 %v1788, %v1810
  %v1816 = vsub.f32 %v1789, %v1810
  %v1817 = vadd.f32 %v1813, 1e-05
  %v1818 = vrsqrt.pop %v1817
  %v1819 = vmul.f32 %v1818, %v1817
  %v1820 = vmul.f32 %v1819, %v1818
  %v1821 = vmul.f32 0.5, %v1820
  %v1822 = vsub.f32 1.5, %v1821
  %v1823 = vmul.f32 %v1818, %v1822
  %vm1824 = vweird.f32 %v1817
  %vm1825 = vweird.f32 %v1818
  %vm1826 = vmor %vm1824, %vm1825
  %v1827 = vsel %vm1826, %v1818, %v1823
  %v1828 = vmul.f32 %v1814, %v1827
  %v1829 = vmul.f32 %v1815, %v1827
  %v1830 = vmul.f32 %v1816, %v1827
  %v1834 = vrot.slane %v1829, 4
  %v1835 = vsel %vm900, %v1828, %v1834
  %1836 = vrot.lane.b32.xlu0 %v1835, 19
  %v1837 = vpop.permute.xlu0 %1836
  %1838 = vrot.lane.b32.xlu0 %v1830, 19
  %v1839 = vpop.permute.xlu0 %1838
  %v1840 = vrot.slane %v1837, 4
  %v1841 = vsel %vm955, %v1840, %v1837
  %v1842 = vsel %vm955, %v1840, %v1839
  %v1845 = vadd.f32 %v28, %v1841
  %v1846 = vadd.f32 %v29, %v1842
  %1849 = vrot.lane.b32.xlu0 %v1845, 109
  %v1850 = vpop.permute.xlu0 %1849
  %1851 = vrot.lane.b32.xlu0 %v1846, 109
  %v1852 = vpop.permute.xlu0 %1851
  %v1853 = vrot.slane %v1850, 4
  %v1854 = vrot.slane %v1852, 4
  %v1855 = vsel %vm900, %v1853, %v1854
  %v1856 = vsel %vm421, %v1850, %v1855
  %1859 = vst [vmem:[%s6] sm:$0xff] %v1856
  %1860 = vst.msk [vmem:[%s6 + $0x8] sm:$0xf] %vm904, %v1852
  %s1861 = scalar_lea.vmem %s0, 12
  %v1862 = vld [vmem:[%s1861] sm:$0xff]
  %v1863 = vld [vmem:[%s1861 + $0x8] sm:$0xf]
  %v1866 = vperm.slane %v1862, 0
  %v1867 = vperm.slane %v1862, 4
  %v1868 = vperm.slane %v1863, 0
  %v1872 = vperm.slane %v1866, 0
  %v1873 = vperm.slane %v1867, 0
  %v1874 = vperm.slane %v1868, 0
  %v1875 = vmul.f32 %v38, %v1872
  %v1876 = vmul.f32 %v38, %v1873
  %v1877 = vmul.f32 %v38, %v1874
  %v1878 = vadd.f32 %v33, %v1875
  %v1879 = vadd.f32 %v33, %v1876
  %v1880 = vadd.f32 %v33, %v1877
  %v1881 = vperm.slane %v1862, 1
  %v1882 = vperm.slane %v1862, 5
  %v1883 = vperm.slane %v1863, 1
  %v1887 = vperm.slane %v1881, 1
  %v1888 = vperm.slane %v1882, 1
  %v1889 = vperm.slane %v1883, 1
  %v1890 = vmul.f32 %v59, %v1887
  %v1891 = vmul.f32 %v59, %v1888
  %v1892 = vmul.f32 %v59, %v1889
  %v1893 = vadd.f32 %v1878, %v1890
  %v1894 = vadd.f32 %v1879, %v1891
  %v1895 = vadd.f32 %v1880, %v1892
  %v1896 = vperm.slane %v1862, 2
  %v1897 = vperm.slane %v1862, 6
  %v1898 = vperm.slane %v1863, 2
  %v1902 = vperm.slane %v1896, 2
  %v1903 = vperm.slane %v1897, 2
  %v1904 = vperm.slane %v1898, 2
  %v1905 = vmul.f32 %v78, %v1902
  %v1906 = vmul.f32 %v78, %v1903
  %v1907 = vmul.f32 %v78, %v1904
  %v1908 = vadd.f32 %v1893, %v1905
  %v1909 = vadd.f32 %v1894, %v1906
  %v1910 = vadd.f32 %v1895, %v1907
  %v1911 = vperm.slane %v1862, 3
  %v1912 = vperm.slane %v1862, 7
  %v1913 = vperm.slane %v1863, 3
  %v1917 = vperm.slane %v1911, 3
  %v1918 = vperm.slane %v1912, 3
  %v1919 = vperm.slane %v1913, 3
  %v1920 = vmul.f32 %v97, %v1917
  %v1921 = vmul.f32 %v97, %v1918
  %v1922 = vmul.f32 %v97, %v1919
  %v1923 = vadd.f32 %v1908, %v1920
  %v1924 = vadd.f32 %v1909, %v1921
  %v1925 = vadd.f32 %v1910, %v1922
  %v1926 = vmul.f32 %v116, %v1872
  %v1927 = vmul.f32 %v116, %v1873
  %v1928 = vmul.f32 %v116, %v1874
  %1932 = vrot.lane.b32.xlu0 %v1926, 127
  %v1933 = vpop.permute.xlu0 %1932
  %1934 = vrot.lane.b32.xlu0 %v1927, 127
  %v1935 = vpop.permute.xlu0 %1934
  %1936 = vrot.lane.b32.xlu0 %v1928, 127
  %v1937 = vpop.permute.xlu0 %1936
  %v1938 = vsel %vm130, %v1933, %v1935
  %v1939 = vsel %vm130, %v1935, %v1937
  %v1943 = vadd.f32 %v1923, %v1938
  %v1944 = vadd.f32 %v1924, %v1939
  %v1945 = vadd.f32 %v1925, %v1937
  %v1946 = vmul.f32 %v141, %v1887
  %v1947 = vmul.f32 %v141, %v1888
  %v1948 = vmul.f32 %v141, %v1889
  %1952 = vrot.lane.b32.xlu0 %v1946, 127
  %v1953 = vpop.permute.xlu0 %1952
  %1954 = vrot.lane.b32.xlu0 %v1947, 127
  %v1955 = vpop.permute.xlu0 %1954
  %1956 = vrot.lane.b32.xlu0 %v1948, 127
  %v1957 = vpop.permute.xlu0 %1956
  %v1958 = vsel %vm130, %v1953, %v1955
  %v1959 = vsel %vm130, %v1955, %v1957
  %v1963 = vadd.f32 %v1943, %v1958
  %v1964 = vadd.f32 %v1944, %v1959
  %v1965 = vadd.f32 %v1945, %v1957
  %v1966 = vmul.f32 %v165, %v1902
  %v1967 = vmul.f32 %v165, %v1903
  %v1968 = vmul.f32 %v165, %v1904
  %1972 = vrot.lane.b32.xlu0 %v1966, 127
  %v1973 = vpop.permute.xlu0 %1972
  %1974 = vrot.lane.b32.xlu0 %v1967, 127
  %v1975 = vpop.permute.xlu0 %1974
  %1976 = vrot.lane.b32.xlu0 %v1968, 127
  %v1977 = vpop.permute.xlu0 %1976
  %v1978 = vsel %vm130, %v1973, %v1975
  %v1979 = vsel %vm130, %v1975, %v1977
  %v1983 = vadd.f32 %v1963, %v1978
  %v1984 = vadd.f32 %v1964, %v1979
  %v1985 = vadd.f32 %v1965, %v1977
  %v1986 = vmul.f32 %v189, %v1917
  %v1987 = vmul.f32 %v189, %v1918
  %v1988 = vmul.f32 %v189, %v1919
  %1992 = vrot.lane.b32.xlu0 %v1986, 127
  %v1993 = vpop.permute.xlu0 %1992
  %1994 = vrot.lane.b32.xlu0 %v1987, 127
  %v1995 = vpop.permute.xlu0 %1994
  %1996 = vrot.lane.b32.xlu0 %v1988, 127
  %v1997 = vpop.permute.xlu0 %1996
  %v1998 = vsel %vm130, %v1993, %v1995
  %v1999 = vsel %vm130, %v1995, %v1997
  %v2003 = vadd.f32 %v1983, %v1998
  %v2004 = vadd.f32 %v1984, %v1999
  %v2005 = vadd.f32 %v1985, %v1997
  %v2006 = vmul.f32 %v213, %v1872
  %v2007 = vmul.f32 %v213, %v1873
  %v2008 = vmul.f32 %v213, %v1874
  %2012 = vrot.lane.b32.xlu0 %v2006, 126
  %v2013 = vpop.permute.xlu0 %2012
  %2014 = vrot.lane.b32.xlu0 %v2007, 126
  %v2015 = vpop.permute.xlu0 %2014
  %2016 = vrot.lane.b32.xlu0 %v2008, 126
  %v2017 = vpop.permute.xlu0 %2016
  %v2018 = vsel %vm227, %v2013, %v2015
  %v2019 = vsel %vm227, %v2015, %v2017
  %v2023 = vadd.f32 %v2003, %v2018
  %v2024 = vadd.f32 %v2004, %v2019
  %v2025 = vadd.f32 %v2005, %v2017
  %v2026 = vmul.f32 %v238, %v1887
  %v2027 = vmul.f32 %v238, %v1888
  %v2028 = vmul.f32 %v238, %v1889
  %2032 = vrot.lane.b32.xlu0 %v2026, 126
  %v2033 = vpop.permute.xlu0 %2032
  %2034 = vrot.lane.b32.xlu0 %v2027, 126
  %v2035 = vpop.permute.xlu0 %2034
  %2036 = vrot.lane.b32.xlu0 %v2028, 126
  %v2037 = vpop.permute.xlu0 %2036
  %v2038 = vsel %vm227, %v2033, %v2035
  %v2039 = vsel %vm227, %v2035, %v2037
  %v2043 = vadd.f32 %v2023, %v2038
  %v2044 = vadd.f32 %v2024, %v2039
  %v2045 = vadd.f32 %v2025, %v2037
  %v2046 = vmul.f32 %v262, %v1902
  %v2047 = vmul.f32 %v262, %v1903
  %v2048 = vmul.f32 %v262, %v1904
  %2052 = vrot.lane.b32.xlu0 %v2046, 126
  %v2053 = vpop.permute.xlu0 %2052
  %2054 = vrot.lane.b32.xlu0 %v2047, 126
  %v2055 = vpop.permute.xlu0 %2054
  %2056 = vrot.lane.b32.xlu0 %v2048, 126
  %v2057 = vpop.permute.xlu0 %2056
  %v2058 = vsel %vm227, %v2053, %v2055
  %v2059 = vsel %vm227, %v2055, %v2057
  %v2063 = vadd.f32 %v2043, %v2058
  %v2064 = vadd.f32 %v2044, %v2059
  %v2065 = vadd.f32 %v2045, %v2057
  %v2066 = vmul.f32 %v286, %v1917
  %v2067 = vmul.f32 %v286, %v1918
  %v2068 = vmul.f32 %v286, %v1919
  %2072 = vrot.lane.b32.xlu0 %v2066, 126
  %v2073 = vpop.permute.xlu0 %2072
  %2074 = vrot.lane.b32.xlu0 %v2067, 126
  %v2075 = vpop.permute.xlu0 %2074
  %2076 = vrot.lane.b32.xlu0 %v2068, 126
  %v2077 = vpop.permute.xlu0 %2076
  %v2078 = vsel %vm227, %v2073, %v2075
  %v2079 = vsel %vm227, %v2075, %v2077
  %v2083 = vadd.f32 %v2063, %v2078
  %v2084 = vadd.f32 %v2064, %v2079
  %v2085 = vadd.f32 %v2065, %v2077
  %v2086 = vmul.f32 %v310, %v1872
  %v2087 = vmul.f32 %v310, %v1873
  %v2088 = vmul.f32 %v310, %v1874
  %2092 = vrot.lane.b32.xlu0 %v2086, 110
  %v2093 = vpop.permute.xlu0 %2092
  %2094 = vrot.lane.b32.xlu0 %v2087, 110
  %v2095 = vpop.permute.xlu0 %2094
  %2096 = vrot.lane.b32.xlu0 %v2088, 110
  %v2097 = vpop.permute.xlu0 %2096
  %v2098 = vsel %vm324, %v2093, %v2095
  %v2099 = vsel %vm324, %v2095, %v2097
  %v2103 = vadd.f32 %v2083, %v2098
  %v2104 = vadd.f32 %v2084, %v2099
  %v2105 = vadd.f32 %v2085, %v2097
  %v2106 = vmul.f32 %v335, %v1887
  %v2107 = vmul.f32 %v335, %v1888
  %v2108 = vmul.f32 %v335, %v1889
  %2112 = vrot.lane.b32.xlu0 %v2106, 110
  %v2113 = vpop.permute.xlu0 %2112
  %2114 = vrot.lane.b32.xlu0 %v2107, 110
  %v2115 = vpop.permute.xlu0 %2114
  %2116 = vrot.lane.b32.xlu0 %v2108, 110
  %v2117 = vpop.permute.xlu0 %2116
  %v2118 = vsel %vm324, %v2113, %v2115
  %v2119 = vsel %vm324, %v2115, %v2117
  %v2123 = vadd.f32 %v2103, %v2118
  %v2124 = vadd.f32 %v2104, %v2119
  %v2125 = vadd.f32 %v2105, %v2117
  %v2126 = vmul.f32 %v359, %v1902
  %v2127 = vmul.f32 %v359, %v1903
  %v2128 = vmul.f32 %v359, %v1904
  %2132 = vrot.lane.b32.xlu0 %v2126, 110
  %v2133 = vpop.permute.xlu0 %2132
  %2134 = vrot.lane.b32.xlu0 %v2127, 110
  %v2135 = vpop.permute.xlu0 %2134
  %2136 = vrot.lane.b32.xlu0 %v2128, 110
  %v2137 = vpop.permute.xlu0 %2136
  %v2138 = vsel %vm324, %v2133, %v2135
  %v2139 = vsel %vm324, %v2135, %v2137
  %v2143 = vadd.f32 %v2123, %v2138
  %v2144 = vadd.f32 %v2124, %v2139
  %v2145 = vadd.f32 %v2125, %v2137
  %v2146 = vmul.f32 %v383, %v1917
  %v2147 = vmul.f32 %v383, %v1918
  %v2148 = vmul.f32 %v383, %v1919
  %2152 = vrot.lane.b32.xlu0 %v2146, 110
  %v2153 = vpop.permute.xlu0 %2152
  %2154 = vrot.lane.b32.xlu0 %v2147, 110
  %v2155 = vpop.permute.xlu0 %2154
  %2156 = vrot.lane.b32.xlu0 %v2148, 110
  %v2157 = vpop.permute.xlu0 %2156
  %v2158 = vsel %vm324, %v2153, %v2155
  %v2159 = vsel %vm324, %v2155, %v2157
  %v2163 = vadd.f32 %v2143, %v2158
  %v2164 = vadd.f32 %v2144, %v2159
  %v2165 = vadd.f32 %v2145, %v2157
  %v2166 = vmul.f32 %v407, %v1872
  %v2167 = vmul.f32 %v407, %v1873
  %v2168 = vmul.f32 %v407, %v1874
  %2172 = vrot.lane.b32.xlu0 %v2166, 109
  %v2173 = vpop.permute.xlu0 %2172
  %2174 = vrot.lane.b32.xlu0 %v2167, 109
  %v2175 = vpop.permute.xlu0 %2174
  %2176 = vrot.lane.b32.xlu0 %v2168, 109
  %v2177 = vpop.permute.xlu0 %2176
  %v2178 = vsel %vm421, %v2173, %v2175
  %v2179 = vsel %vm421, %v2175, %v2177
  %v2183 = vadd.f32 %v2163, %v2178
  %v2184 = vadd.f32 %v2164, %v2179
  %v2185 = vadd.f32 %v2165, %v2177
  %v2186 = vmul.f32 %v432, %v1887
  %v2187 = vmul.f32 %v432, %v1888
  %v2188 = vmul.f32 %v432, %v1889
  %2192 = vrot.lane.b32.xlu0 %v2186, 109
  %v2193 = vpop.permute.xlu0 %2192
  %2194 = vrot.lane.b32.xlu0 %v2187, 109
  %v2195 = vpop.permute.xlu0 %2194
  %2196 = vrot.lane.b32.xlu0 %v2188, 109
  %v2197 = vpop.permute.xlu0 %2196
  %v2198 = vsel %vm421, %v2193, %v2195
  %v2199 = vsel %vm421, %v2195, %v2197
  %v2203 = vadd.f32 %v2183, %v2198
  %v2204 = vadd.f32 %v2184, %v2199
  %v2205 = vadd.f32 %v2185, %v2197
  %v2206 = vmul.f32 %v456, %v1902
  %v2207 = vmul.f32 %v456, %v1903
  %v2208 = vmul.f32 %v456, %v1904
  %2212 = vrot.lane.b32.xlu0 %v2206, 109
  %v2213 = vpop.permute.xlu0 %2212
  %2214 = vrot.lane.b32.xlu0 %v2207, 109
  %v2215 = vpop.permute.xlu0 %2214
  %2216 = vrot.lane.b32.xlu0 %v2208, 109
  %v2217 = vpop.permute.xlu0 %2216
  %v2218 = vsel %vm421, %v2213, %v2215
  %v2219 = vsel %vm421, %v2215, %v2217
  %v2223 = vadd.f32 %v2203, %v2218
  %v2224 = vadd.f32 %v2204, %v2219
  %v2225 = vadd.f32 %v2205, %v2217
  %v2226 = vmul.f32 %v480, %v1917
  %v2227 = vmul.f32 %v480, %v1918
  %v2228 = vmul.f32 %v480, %v1919
  %2232 = vrot.lane.b32.xlu0 %v2226, 109
  %v2233 = vpop.permute.xlu0 %2232
  %2234 = vrot.lane.b32.xlu0 %v2227, 109
  %v2235 = vpop.permute.xlu0 %2234
  %2236 = vrot.lane.b32.xlu0 %v2228, 109
  %v2237 = vpop.permute.xlu0 %2236
  %v2238 = vsel %vm421, %v2233, %v2235
  %v2239 = vsel %vm421, %v2235, %v2237
  %v2243 = vadd.f32 %v2223, %v2238
  %v2244 = vadd.f32 %v2224, %v2239
  %v2245 = vadd.f32 %v2225, %v2237
  %v2246 = vmul.f32 %v504, %v1872
  %v2247 = vmul.f32 %v504, %v1873
  %v2248 = vmul.f32 %v504, %v1874
  %2252 = vrot.lane.b32.xlu0 %v2246, 108
  %v2253 = vpop.permute.xlu0 %2252
  %2254 = vrot.lane.b32.xlu0 %v2247, 108
  %v2255 = vpop.permute.xlu0 %2254
  %2256 = vrot.lane.b32.xlu0 %v2248, 108
  %v2257 = vpop.permute.xlu0 %2256
  %v2258 = vsel %vm518, %v2253, %v2255
  %v2259 = vsel %vm518, %v2255, %v2257
  %v2263 = vadd.f32 %v2243, %v2258
  %v2264 = vadd.f32 %v2244, %v2259
  %v2265 = vadd.f32 %v2245, %v2257
  %v2266 = vmul.f32 %v529, %v1887
  %v2267 = vmul.f32 %v529, %v1888
  %v2268 = vmul.f32 %v529, %v1889
  %2272 = vrot.lane.b32.xlu0 %v2266, 108
  %v2273 = vpop.permute.xlu0 %2272
  %2274 = vrot.lane.b32.xlu0 %v2267, 108
  %v2275 = vpop.permute.xlu0 %2274
  %2276 = vrot.lane.b32.xlu0 %v2268, 108
  %v2277 = vpop.permute.xlu0 %2276
  %v2278 = vsel %vm518, %v2273, %v2275
  %v2279 = vsel %vm518, %v2275, %v2277
  %v2283 = vadd.f32 %v2263, %v2278
  %v2284 = vadd.f32 %v2264, %v2279
  %v2285 = vadd.f32 %v2265, %v2277
  %v2286 = vmul.f32 %v553, %v1902
  %v2287 = vmul.f32 %v553, %v1903
  %v2288 = vmul.f32 %v553, %v1904
  %2292 = vrot.lane.b32.xlu0 %v2286, 108
  %v2293 = vpop.permute.xlu0 %2292
  %2294 = vrot.lane.b32.xlu0 %v2287, 108
  %v2295 = vpop.permute.xlu0 %2294
  %2296 = vrot.lane.b32.xlu0 %v2288, 108
  %v2297 = vpop.permute.xlu0 %2296
  %v2298 = vsel %vm518, %v2293, %v2295
  %v2299 = vsel %vm518, %v2295, %v2297
  %v2303 = vadd.f32 %v2283, %v2298
  %v2304 = vadd.f32 %v2284, %v2299
  %v2305 = vadd.f32 %v2285, %v2297
  %v2306 = vmul.f32 %v577, %v1917
  %v2307 = vmul.f32 %v577, %v1918
  %v2308 = vmul.f32 %v577, %v1919
  %2312 = vrot.lane.b32.xlu0 %v2306, 108
  %v2313 = vpop.permute.xlu0 %2312
  %2314 = vrot.lane.b32.xlu0 %v2307, 108
  %v2315 = vpop.permute.xlu0 %2314
  %2316 = vrot.lane.b32.xlu0 %v2308, 108
  %v2317 = vpop.permute.xlu0 %2316
  %v2318 = vsel %vm518, %v2313, %v2315
  %v2319 = vsel %vm518, %v2315, %v2317
  %v2323 = vadd.f32 %v2303, %v2318
  %v2324 = vadd.f32 %v2304, %v2319
  %v2325 = vadd.f32 %v2305, %v2317
  %v2326 = vmul.f32 %v601, %v1872
  %v2327 = vmul.f32 %v601, %v1873
  %v2328 = vmul.f32 %v601, %v1874
  %2332 = vrot.lane.b32.xlu0 %v2326, 92
  %v2333 = vpop.permute.xlu0 %2332
  %2334 = vrot.lane.b32.xlu0 %v2327, 92
  %v2335 = vpop.permute.xlu0 %2334
  %2336 = vrot.lane.b32.xlu0 %v2328, 92
  %v2337 = vpop.permute.xlu0 %2336
  %v2338 = vsel %vm615, %v2333, %v2335
  %v2339 = vsel %vm615, %v2335, %v2337
  %v2343 = vadd.f32 %v2323, %v2338
  %v2344 = vadd.f32 %v2324, %v2339
  %v2345 = vadd.f32 %v2325, %v2337
  %v2346 = vmul.f32 %v626, %v1887
  %v2347 = vmul.f32 %v626, %v1888
  %v2348 = vmul.f32 %v626, %v1889
  %2352 = vrot.lane.b32.xlu0 %v2346, 92
  %v2353 = vpop.permute.xlu0 %2352
  %2354 = vrot.lane.b32.xlu0 %v2347, 92
  %v2355 = vpop.permute.xlu0 %2354
  %2356 = vrot.lane.b32.xlu0 %v2348, 92
  %v2357 = vpop.permute.xlu0 %2356
  %v2358 = vsel %vm615, %v2353, %v2355
  %v2359 = vsel %vm615, %v2355, %v2357
  %v2363 = vadd.f32 %v2343, %v2358
  %v2364 = vadd.f32 %v2344, %v2359
  %v2365 = vadd.f32 %v2345, %v2357
  %v2366 = vmul.f32 %v650, %v1902
  %v2367 = vmul.f32 %v650, %v1903
  %v2368 = vmul.f32 %v650, %v1904
  %2372 = vrot.lane.b32.xlu0 %v2366, 92
  %v2373 = vpop.permute.xlu0 %2372
  %2374 = vrot.lane.b32.xlu0 %v2367, 92
  %v2375 = vpop.permute.xlu0 %2374
  %2376 = vrot.lane.b32.xlu0 %v2368, 92
  %v2377 = vpop.permute.xlu0 %2376
  %v2378 = vsel %vm615, %v2373, %v2375
  %v2379 = vsel %vm615, %v2375, %v2377
  %v2383 = vadd.f32 %v2363, %v2378
  %v2384 = vadd.f32 %v2364, %v2379
  %v2385 = vadd.f32 %v2365, %v2377
  %v2386 = vmul.f32 %v674, %v1917
  %v2387 = vmul.f32 %v674, %v1918
  %v2388 = vmul.f32 %v674, %v1919
  %2392 = vrot.lane.b32.xlu0 %v2386, 92
  %v2393 = vpop.permute.xlu0 %2392
  %2394 = vrot.lane.b32.xlu0 %v2387, 92
  %v2395 = vpop.permute.xlu0 %2394
  %2396 = vrot.lane.b32.xlu0 %v2388, 92
  %v2397 = vpop.permute.xlu0 %2396
  %v2398 = vsel %vm615, %v2393, %v2395
  %v2399 = vsel %vm615, %v2395, %v2397
  %v2403 = vadd.f32 %v2383, %v2398
  %v2404 = vadd.f32 %v2384, %v2399
  %v2405 = vadd.f32 %v2385, %v2397
  %v2406 = vmul.f32 %v698, %v1872
  %v2407 = vmul.f32 %v698, %v1873
  %v2408 = vmul.f32 %v698, %v1874
  %2412 = vrot.lane.b32.xlu0 %v2406, 91
  %v2413 = vpop.permute.xlu0 %2412
  %2414 = vrot.lane.b32.xlu0 %v2407, 91
  %v2415 = vpop.permute.xlu0 %2414
  %2416 = vrot.lane.b32.xlu0 %v2408, 91
  %v2417 = vpop.permute.xlu0 %2416
  %v2418 = vsel %vm712, %v2413, %v2415
  %v2419 = vsel %vm712, %v2415, %v2417
  %v2423 = vadd.f32 %v2403, %v2418
  %v2424 = vadd.f32 %v2404, %v2419
  %v2425 = vadd.f32 %v2405, %v2417
  %v2426 = vmul.f32 %v723, %v1887
  %v2427 = vmul.f32 %v723, %v1888
  %v2428 = vmul.f32 %v723, %v1889
  %2432 = vrot.lane.b32.xlu0 %v2426, 91
  %v2433 = vpop.permute.xlu0 %2432
  %2434 = vrot.lane.b32.xlu0 %v2427, 91
  %v2435 = vpop.permute.xlu0 %2434
  %2436 = vrot.lane.b32.xlu0 %v2428, 91
  %v2437 = vpop.permute.xlu0 %2436
  %v2438 = vsel %vm712, %v2433, %v2435
  %v2439 = vsel %vm712, %v2435, %v2437
  %v2443 = vadd.f32 %v2423, %v2438
  %v2444 = vadd.f32 %v2424, %v2439
  %v2445 = vadd.f32 %v2425, %v2437
  %v2446 = vmul.f32 %v747, %v1902
  %v2447 = vmul.f32 %v747, %v1903
  %v2448 = vmul.f32 %v747, %v1904
  %2452 = vrot.lane.b32.xlu0 %v2446, 91
  %v2453 = vpop.permute.xlu0 %2452
  %2454 = vrot.lane.b32.xlu0 %v2447, 91
  %v2455 = vpop.permute.xlu0 %2454
  %2456 = vrot.lane.b32.xlu0 %v2448, 91
  %v2457 = vpop.permute.xlu0 %2456
  %v2458 = vsel %vm712, %v2453, %v2455
  %v2459 = vsel %vm712, %v2455, %v2457
  %v2463 = vadd.f32 %v2443, %v2458
  %v2464 = vadd.f32 %v2444, %v2459
  %v2465 = vadd.f32 %v2445, %v2457
  %v2466 = vmul.f32 %v771, %v1917
  %v2467 = vmul.f32 %v771, %v1918
  %v2468 = vmul.f32 %v771, %v1919
  %2472 = vrot.lane.b32.xlu0 %v2466, 91
  %v2473 = vpop.permute.xlu0 %2472
  %2474 = vrot.lane.b32.xlu0 %v2467, 91
  %v2475 = vpop.permute.xlu0 %2474
  %2476 = vrot.lane.b32.xlu0 %v2468, 91
  %v2477 = vpop.permute.xlu0 %2476
  %v2478 = vsel %vm712, %v2473, %v2475
  %v2479 = vsel %vm712, %v2475, %v2477
  %v2483 = vadd.f32 %v2463, %v2478
  %v2484 = vadd.f32 %v2464, %v2479
  %v2485 = vadd.f32 %v2465, %v2477
  %v2486 = vmul.f32 %v795, %v1872
  %v2487 = vmul.f32 %v795, %v1873
  %v2488 = vmul.f32 %v795, %v1874
  %2492 = vrot.lane.b32.xlu0 %v2486, 90
  %v2493 = vpop.permute.xlu0 %2492
  %2494 = vrot.lane.b32.xlu0 %v2487, 90
  %v2495 = vpop.permute.xlu0 %2494
  %2496 = vrot.lane.b32.xlu0 %v2488, 90
  %v2497 = vpop.permute.xlu0 %2496
  %v2498 = vsel %vm809, %v2493, %v2495
  %v2499 = vsel %vm809, %v2495, %v2497
  %v2503 = vadd.f32 %v2483, %v2498
  %v2504 = vadd.f32 %v2484, %v2499
  %v2505 = vadd.f32 %v2485, %v2497
  %v2506 = vmul.f32 %v820, %v1887
  %v2507 = vmul.f32 %v820, %v1888
  %v2508 = vmul.f32 %v820, %v1889
  %2512 = vrot.lane.b32.xlu0 %v2506, 90
  %v2513 = vpop.permute.xlu0 %2512
  %2514 = vrot.lane.b32.xlu0 %v2507, 90
  %v2515 = vpop.permute.xlu0 %2514
  %2516 = vrot.lane.b32.xlu0 %v2508, 90
  %v2517 = vpop.permute.xlu0 %2516
  %v2518 = vsel %vm809, %v2513, %v2515
  %v2519 = vsel %vm809, %v2515, %v2517
  %v2523 = vadd.f32 %v2503, %v2518
  %v2524 = vadd.f32 %v2504, %v2519
  %v2525 = vadd.f32 %v2505, %v2517
  %v2526 = vmul.f32 %v844, %v1902
  %v2527 = vmul.f32 %v844, %v1903
  %v2528 = vmul.f32 %v844, %v1904
  %2532 = vrot.lane.b32.xlu0 %v2526, 90
  %v2533 = vpop.permute.xlu0 %2532
  %2534 = vrot.lane.b32.xlu0 %v2527, 90
  %v2535 = vpop.permute.xlu0 %2534
  %2536 = vrot.lane.b32.xlu0 %v2528, 90
  %v2537 = vpop.permute.xlu0 %2536
  %v2538 = vsel %vm809, %v2533, %v2535
  %v2539 = vsel %vm809, %v2535, %v2537
  %v2543 = vadd.f32 %v2523, %v2538
  %v2544 = vadd.f32 %v2524, %v2539
  %v2545 = vadd.f32 %v2525, %v2537
  %v2546 = vmul.f32 %v868, %v1917
  %v2547 = vmul.f32 %v868, %v1918
  %v2548 = vmul.f32 %v868, %v1919
  %2552 = vrot.lane.b32.xlu0 %v2546, 90
  %v2553 = vpop.permute.xlu0 %2552
  %2554 = vrot.lane.b32.xlu0 %v2547, 90
  %v2555 = vpop.permute.xlu0 %2554
  %2556 = vrot.lane.b32.xlu0 %v2548, 90
  %v2557 = vpop.permute.xlu0 %2556
  %v2558 = vsel %vm809, %v2553, %v2555
  %v2559 = vsel %vm809, %v2555, %v2557
  %v2563 = vadd.f32 %v2543, %v2558
  %v2564 = vadd.f32 %v2544, %v2559
  %v2565 = vadd.f32 %v2545, %v2557
  %v2566 = vmul.f32 %v2563, %v891
  %v2567 = vmul.f32 %v2564, %v892
  %v2568 = vmul.f32 %v2565, %v893
  %v2569 = vsel %vm900, %v2566, 0.0
  %v2570 = vsel %vm900, %v2567, 0.0
  %v2571 = vadd.f32 %v2569, %v2570
  %v2572 = vsel %vm904, %v2568, 0.0
  %v2573 = vadd.f32 %v2571, %v2572
  %2574 = vadd.xlane.f32.xlu0 %v2573
  %v2575 = vpop.xlane.xlu0 %2574
  %v2576 = vmul.f32 %v2566, %v2566
  %v2577 = vmul.f32 %v2567, %v2567
  %v2578 = vmul.f32 %v2568, %v2568
  %v2579 = vsel %vm900, %v2576, 0.0
  %v2580 = vsel %vm900, %v2577, 0.0
  %v2581 = vadd.f32 %v2579, %v2580
  %v2582 = vsel %vm904, %v2578, 0.0
  %v2583 = vadd.f32 %v2581, %v2582
  %2584 = vadd.xlane.f32.xlu0 %v2583
  %v2585 = vpop.xlane.xlu0 %2584
  %v2586 = vmul.f32 %v2575, 0.00390625
  %v2587 = vmul.f32 %v2585, 0.00390625
  %v2588 = vmul.f32 %v2586, %v2586
  %v2589 = vsub.f32 %v2587, %v2588
  %v2590 = vsub.f32 %v2563, %v2586
  %v2591 = vsub.f32 %v2564, %v2586
  %v2592 = vsub.f32 %v2565, %v2586
  %v2593 = vadd.f32 %v2589, 1e-05
  %v2594 = vrsqrt.pop %v2593
  %v2595 = vmul.f32 %v2594, %v2593
  %v2596 = vmul.f32 %v2595, %v2594
  %v2597 = vmul.f32 0.5, %v2596
  %v2598 = vsub.f32 1.5, %v2597
  %v2599 = vmul.f32 %v2594, %v2598
  %vm2600 = vweird.f32 %v2593
  %vm2601 = vweird.f32 %v2594
  %vm2602 = vmor %vm2600, %vm2601
  %v2603 = vsel %vm2602, %v2594, %v2599
  %v2604 = vmul.f32 %v2590, %v2603
  %v2605 = vmul.f32 %v2591, %v2603
  %v2606 = vmul.f32 %v2592, %v2603
  %v2607 = vmax.f32 %v2604, 0.0
  %v2608 = vmax.f32 %v2605, 0.0
  %v2609 = vmax.f32 %v2606, 0.0
  %v2610 = vmul.f32 %v2607, %v891
  %v2611 = vmul.f32 %v2608, %v892
  %v2612 = vmul.f32 %v2609, %v893
  %2616 = vrot.lane.b32.xlu0 %v2610, 19
  %v2617 = vpop.permute.xlu0 %2616
  %2618 = vrot.lane.b32.xlu0 %v2611, 19
  %v2619 = vpop.permute.xlu0 %2618
  %2620 = vrot.lane.b32.xlu0 %v2612, 19
  %v2621 = vpop.permute.xlu0 %2620
  %v2622 = vsel %vm955, %v2617, %v2619
  %v2623 = vsel %vm955, %v2619, %v2621
  %v2627 = vsel %vm955, 0.0, %v2617
  %v2628 = vsel %vm962, %v2623, 0.0
  %v2629 = vperm.slane %v2627, 0
  %v2630 = vperm.slane %v2622, 0
  %v2631 = vperm.slane %v2628, 0
  %v2632 = vmul.f32 %v972, %v2629
  %v2633 = vmul.f32 %v972, %v2630
  %v2634 = vmul.f32 %v972, %v2631
  %v2635 = vadd.f32 %v967, %v2632
  %v2636 = vadd.f32 %v967, %v2633
  %v2637 = vadd.f32 %v967, %v2634
  %v2638 = vperm.slane %v2627, 1
  %v2639 = vperm.slane %v2622, 1
  %v2640 = vperm.slane %v2628, 1
  %v2641 = vmul.f32 %v985, %v2638
  %v2642 = vmul.f32 %v985, %v2639
  %v2643 = vmul.f32 %v985, %v2640
  %v2644 = vadd.f32 %v2635, %v2641
  %v2645 = vadd.f32 %v2636, %v2642
  %v2646 = vadd.f32 %v2637, %v2643
  %v2647 = vperm.slane %v2627, 2
  %v2648 = vperm.slane %v2622, 2
  %v2649 = vperm.slane %v2628, 2
  %v2650 = vmul.f32 %v998, %v2647
  %v2651 = vmul.f32 %v998, %v2648
  %v2652 = vmul.f32 %v998, %v2649
  %v2653 = vadd.f32 %v2644, %v2650
  %v2654 = vadd.f32 %v2645, %v2651
  %v2655 = vadd.f32 %v2646, %v2652
  %v2656 = vperm.slane %v2627, 3
  %v2657 = vperm.slane %v2622, 3
  %v2658 = vperm.slane %v2628, 3
  %v2659 = vmul.f32 %v1011, %v2656
  %v2660 = vmul.f32 %v1011, %v2657
  %v2661 = vmul.f32 %v1011, %v2658
  %v2662 = vadd.f32 %v2653, %v2659
  %v2663 = vadd.f32 %v2654, %v2660
  %v2664 = vadd.f32 %v2655, %v2661
  %v2665 = vmul.f32 %v1024, %v2629
  %v2666 = vmul.f32 %v1024, %v2630
  %v2667 = vmul.f32 %v1024, %v2631
  %2671 = vrot.lane.b32.xlu0 %v2665, 127
  %v2672 = vpop.permute.xlu0 %2671
  %2673 = vrot.lane.b32.xlu0 %v2666, 127
  %v2674 = vpop.permute.xlu0 %2673
  %2675 = vrot.lane.b32.xlu0 %v2667, 127
  %v2676 = vpop.permute.xlu0 %2675
  %v2677 = vsel %vm130, %v2672, %v2674
  %v2678 = vsel %vm130, %v2674, %v2676
  %v2682 = vadd.f32 %v2662, %v2677
  %v2683 = vadd.f32 %v2663, %v2678
  %v2684 = vadd.f32 %v2664, %v2676
  %v2685 = vmul.f32 %v1048, %v2638
  %v2686 = vmul.f32 %v1048, %v2639
  %v2687 = vmul.f32 %v1048, %v2640
  %2691 = vrot.lane.b32.xlu0 %v2685, 127
  %v2692 = vpop.permute.xlu0 %2691
  %2693 = vrot.lane.b32.xlu0 %v2686, 127
  %v2694 = vpop.permute.xlu0 %2693
  %2695 = vrot.lane.b32.xlu0 %v2687, 127
  %v2696 = vpop.permute.xlu0 %2695
  %v2697 = vsel %vm130, %v2692, %v2694
  %v2698 = vsel %vm130, %v2694, %v2696
  %v2702 = vadd.f32 %v2682, %v2697
  %v2703 = vadd.f32 %v2683, %v2698
  %v2704 = vadd.f32 %v2684, %v2696
  %v2705 = vmul.f32 %v1072, %v2647
  %v2706 = vmul.f32 %v1072, %v2648
  %v2707 = vmul.f32 %v1072, %v2649
  %2711 = vrot.lane.b32.xlu0 %v2705, 127
  %v2712 = vpop.permute.xlu0 %2711
  %2713 = vrot.lane.b32.xlu0 %v2706, 127
  %v2714 = vpop.permute.xlu0 %2713
  %2715 = vrot.lane.b32.xlu0 %v2707, 127
  %v2716 = vpop.permute.xlu0 %2715
  %v2717 = vsel %vm130, %v2712, %v2714
  %v2718 = vsel %vm130, %v2714, %v2716
  %v2722 = vadd.f32 %v2702, %v2717
  %v2723 = vadd.f32 %v2703, %v2718
  %v2724 = vadd.f32 %v2704, %v2716
  %v2725 = vmul.f32 %v1096, %v2656
  %v2726 = vmul.f32 %v1096, %v2657
  %v2727 = vmul.f32 %v1096, %v2658
  %2731 = vrot.lane.b32.xlu0 %v2725, 127
  %v2732 = vpop.permute.xlu0 %2731
  %2733 = vrot.lane.b32.xlu0 %v2726, 127
  %v2734 = vpop.permute.xlu0 %2733
  %2735 = vrot.lane.b32.xlu0 %v2727, 127
  %v2736 = vpop.permute.xlu0 %2735
  %v2737 = vsel %vm130, %v2732, %v2734
  %v2738 = vsel %vm130, %v2734, %v2736
  %v2742 = vadd.f32 %v2722, %v2737
  %v2743 = vadd.f32 %v2723, %v2738
  %v2744 = vadd.f32 %v2724, %v2736
  %v2745 = vmul.f32 %v1120, %v2629
  %v2746 = vmul.f32 %v1120, %v2630
  %v2747 = vmul.f32 %v1120, %v2631
  %2751 = vrot.lane.b32.xlu0 %v2745, 126
  %v2752 = vpop.permute.xlu0 %2751
  %2753 = vrot.lane.b32.xlu0 %v2746, 126
  %v2754 = vpop.permute.xlu0 %2753
  %2755 = vrot.lane.b32.xlu0 %v2747, 126
  %v2756 = vpop.permute.xlu0 %2755
  %v2757 = vsel %vm227, %v2752, %v2754
  %v2758 = vsel %vm227, %v2754, %v2756
  %v2762 = vadd.f32 %v2742, %v2757
  %v2763 = vadd.f32 %v2743, %v2758
  %v2764 = vadd.f32 %v2744, %v2756
  %v2765 = vmul.f32 %v1144, %v2638
  %v2766 = vmul.f32 %v1144, %v2639
  %v2767 = vmul.f32 %v1144, %v2640
  %2771 = vrot.lane.b32.xlu0 %v2765, 126
  %v2772 = vpop.permute.xlu0 %2771
  %2773 = vrot.lane.b32.xlu0 %v2766, 126
  %v2774 = vpop.permute.xlu0 %2773
  %2775 = vrot.lane.b32.xlu0 %v2767, 126
  %v2776 = vpop.permute.xlu0 %2775
  %v2777 = vsel %vm227, %v2772, %v2774
  %v2778 = vsel %vm227, %v2774, %v2776
  %v2782 = vadd.f32 %v2762, %v2777
  %v2783 = vadd.f32 %v2763, %v2778
  %v2784 = vadd.f32 %v2764, %v2776
  %v2785 = vmul.f32 %v1168, %v2647
  %v2786 = vmul.f32 %v1168, %v2648
  %v2787 = vmul.f32 %v1168, %v2649
  %2791 = vrot.lane.b32.xlu0 %v2785, 126
  %v2792 = vpop.permute.xlu0 %2791
  %2793 = vrot.lane.b32.xlu0 %v2786, 126
  %v2794 = vpop.permute.xlu0 %2793
  %2795 = vrot.lane.b32.xlu0 %v2787, 126
  %v2796 = vpop.permute.xlu0 %2795
  %v2797 = vsel %vm227, %v2792, %v2794
  %v2798 = vsel %vm227, %v2794, %v2796
  %v2802 = vadd.f32 %v2782, %v2797
  %v2803 = vadd.f32 %v2783, %v2798
  %v2804 = vadd.f32 %v2784, %v2796
  %v2805 = vmul.f32 %v1192, %v2656
  %v2806 = vmul.f32 %v1192, %v2657
  %v2807 = vmul.f32 %v1192, %v2658
  %2811 = vrot.lane.b32.xlu0 %v2805, 126
  %v2812 = vpop.permute.xlu0 %2811
  %2813 = vrot.lane.b32.xlu0 %v2806, 126
  %v2814 = vpop.permute.xlu0 %2813
  %2815 = vrot.lane.b32.xlu0 %v2807, 126
  %v2816 = vpop.permute.xlu0 %2815
  %v2817 = vsel %vm227, %v2812, %v2814
  %v2818 = vsel %vm227, %v2814, %v2816
  %v2822 = vadd.f32 %v2802, %v2817
  %v2823 = vadd.f32 %v2803, %v2818
  %v2824 = vadd.f32 %v2804, %v2816
  %v2825 = vmul.f32 %v1216, %v2629
  %v2826 = vmul.f32 %v1216, %v2630
  %v2827 = vmul.f32 %v1216, %v2631
  %2831 = vrot.lane.b32.xlu0 %v2825, 110
  %v2832 = vpop.permute.xlu0 %2831
  %2833 = vrot.lane.b32.xlu0 %v2826, 110
  %v2834 = vpop.permute.xlu0 %2833
  %2835 = vrot.lane.b32.xlu0 %v2827, 110
  %v2836 = vpop.permute.xlu0 %2835
  %v2837 = vsel %vm324, %v2832, %v2834
  %v2838 = vsel %vm324, %v2834, %v2836
  %v2842 = vadd.f32 %v2822, %v2837
  %v2843 = vadd.f32 %v2823, %v2838
  %v2844 = vadd.f32 %v2824, %v2836
  %v2845 = vmul.f32 %v1240, %v2638
  %v2846 = vmul.f32 %v1240, %v2639
  %v2847 = vmul.f32 %v1240, %v2640
  %2851 = vrot.lane.b32.xlu0 %v2845, 110
  %v2852 = vpop.permute.xlu0 %2851
  %2853 = vrot.lane.b32.xlu0 %v2846, 110
  %v2854 = vpop.permute.xlu0 %2853
  %2855 = vrot.lane.b32.xlu0 %v2847, 110
  %v2856 = vpop.permute.xlu0 %2855
  %v2857 = vsel %vm324, %v2852, %v2854
  %v2858 = vsel %vm324, %v2854, %v2856
  %v2862 = vadd.f32 %v2842, %v2857
  %v2863 = vadd.f32 %v2843, %v2858
  %v2864 = vadd.f32 %v2844, %v2856
  %v2865 = vmul.f32 %v1264, %v2647
  %v2866 = vmul.f32 %v1264, %v2648
  %v2867 = vmul.f32 %v1264, %v2649
  %2871 = vrot.lane.b32.xlu0 %v2865, 110
  %v2872 = vpop.permute.xlu0 %2871
  %2873 = vrot.lane.b32.xlu0 %v2866, 110
  %v2874 = vpop.permute.xlu0 %2873
  %2875 = vrot.lane.b32.xlu0 %v2867, 110
  %v2876 = vpop.permute.xlu0 %2875
  %v2877 = vsel %vm324, %v2872, %v2874
  %v2878 = vsel %vm324, %v2874, %v2876
  %v2882 = vadd.f32 %v2862, %v2877
  %v2883 = vadd.f32 %v2863, %v2878
  %v2884 = vadd.f32 %v2864, %v2876
  %v2885 = vmul.f32 %v1288, %v2656
  %v2886 = vmul.f32 %v1288, %v2657
  %v2887 = vmul.f32 %v1288, %v2658
  %2891 = vrot.lane.b32.xlu0 %v2885, 110
  %v2892 = vpop.permute.xlu0 %2891
  %2893 = vrot.lane.b32.xlu0 %v2886, 110
  %v2894 = vpop.permute.xlu0 %2893
  %2895 = vrot.lane.b32.xlu0 %v2887, 110
  %v2896 = vpop.permute.xlu0 %2895
  %v2897 = vsel %vm324, %v2892, %v2894
  %v2898 = vsel %vm324, %v2894, %v2896
  %v2902 = vadd.f32 %v2882, %v2897
  %v2903 = vadd.f32 %v2883, %v2898
  %v2904 = vadd.f32 %v2884, %v2896
  %v2905 = vmul.f32 %v1312, %v2629
  %v2906 = vmul.f32 %v1312, %v2630
  %v2907 = vmul.f32 %v1312, %v2631
  %2911 = vrot.lane.b32.xlu0 %v2905, 109
  %v2912 = vpop.permute.xlu0 %2911
  %2913 = vrot.lane.b32.xlu0 %v2906, 109
  %v2914 = vpop.permute.xlu0 %2913
  %2915 = vrot.lane.b32.xlu0 %v2907, 109
  %v2916 = vpop.permute.xlu0 %2915
  %v2917 = vsel %vm421, %v2912, %v2914
  %v2918 = vsel %vm421, %v2914, %v2916
  %v2922 = vadd.f32 %v2902, %v2917
  %v2923 = vadd.f32 %v2903, %v2918
  %v2924 = vadd.f32 %v2904, %v2916
  %v2925 = vmul.f32 %v1336, %v2638
  %v2926 = vmul.f32 %v1336, %v2639
  %v2927 = vmul.f32 %v1336, %v2640
  %2931 = vrot.lane.b32.xlu0 %v2925, 109
  %v2932 = vpop.permute.xlu0 %2931
  %2933 = vrot.lane.b32.xlu0 %v2926, 109
  %v2934 = vpop.permute.xlu0 %2933
  %2935 = vrot.lane.b32.xlu0 %v2927, 109
  %v2936 = vpop.permute.xlu0 %2935
  %v2937 = vsel %vm421, %v2932, %v2934
  %v2938 = vsel %vm421, %v2934, %v2936
  %v2942 = vadd.f32 %v2922, %v2937
  %v2943 = vadd.f32 %v2923, %v2938
  %v2944 = vadd.f32 %v2924, %v2936
  %v2945 = vmul.f32 %v1360, %v2647
  %v2946 = vmul.f32 %v1360, %v2648
  %v2947 = vmul.f32 %v1360, %v2649
  %2951 = vrot.lane.b32.xlu0 %v2945, 109
  %v2952 = vpop.permute.xlu0 %2951
  %2953 = vrot.lane.b32.xlu0 %v2946, 109
  %v2954 = vpop.permute.xlu0 %2953
  %2955 = vrot.lane.b32.xlu0 %v2947, 109
  %v2956 = vpop.permute.xlu0 %2955
  %v2957 = vsel %vm421, %v2952, %v2954
  %v2958 = vsel %vm421, %v2954, %v2956
  %v2962 = vadd.f32 %v2942, %v2957
  %v2963 = vadd.f32 %v2943, %v2958
  %v2964 = vadd.f32 %v2944, %v2956
  %v2965 = vmul.f32 %v1384, %v2656
  %v2966 = vmul.f32 %v1384, %v2657
  %v2967 = vmul.f32 %v1384, %v2658
  %2971 = vrot.lane.b32.xlu0 %v2965, 109
  %v2972 = vpop.permute.xlu0 %2971
  %2973 = vrot.lane.b32.xlu0 %v2966, 109
  %v2974 = vpop.permute.xlu0 %2973
  %2975 = vrot.lane.b32.xlu0 %v2967, 109
  %v2976 = vpop.permute.xlu0 %2975
  %v2977 = vsel %vm421, %v2972, %v2974
  %v2978 = vsel %vm421, %v2974, %v2976
  %v2982 = vadd.f32 %v2962, %v2977
  %v2983 = vadd.f32 %v2963, %v2978
  %v2984 = vadd.f32 %v2964, %v2976
  %v2985 = vmul.f32 %v1408, %v2629
  %v2986 = vmul.f32 %v1408, %v2630
  %v2987 = vmul.f32 %v1408, %v2631
  %2991 = vrot.lane.b32.xlu0 %v2985, 108
  %v2992 = vpop.permute.xlu0 %2991
  %2993 = vrot.lane.b32.xlu0 %v2986, 108
  %v2994 = vpop.permute.xlu0 %2993
  %2995 = vrot.lane.b32.xlu0 %v2987, 108
  %v2996 = vpop.permute.xlu0 %2995
  %v2997 = vsel %vm518, %v2992, %v2994
  %v2998 = vsel %vm518, %v2994, %v2996
  %v3002 = vadd.f32 %v2982, %v2997
  %v3003 = vadd.f32 %v2983, %v2998
  %v3004 = vadd.f32 %v2984, %v2996
  %v3005 = vmul.f32 %v1432, %v2638
  %v3006 = vmul.f32 %v1432, %v2639
  %v3007 = vmul.f32 %v1432, %v2640
  %3011 = vrot.lane.b32.xlu0 %v3005, 108
  %v3012 = vpop.permute.xlu0 %3011
  %3013 = vrot.lane.b32.xlu0 %v3006, 108
  %v3014 = vpop.permute.xlu0 %3013
  %3015 = vrot.lane.b32.xlu0 %v3007, 108
  %v3016 = vpop.permute.xlu0 %3015
  %v3017 = vsel %vm518, %v3012, %v3014
  %v3018 = vsel %vm518, %v3014, %v3016
  %v3022 = vadd.f32 %v3002, %v3017
  %v3023 = vadd.f32 %v3003, %v3018
  %v3024 = vadd.f32 %v3004, %v3016
  %v3025 = vmul.f32 %v1456, %v2647
  %v3026 = vmul.f32 %v1456, %v2648
  %v3027 = vmul.f32 %v1456, %v2649
  %3031 = vrot.lane.b32.xlu0 %v3025, 108
  %v3032 = vpop.permute.xlu0 %3031
  %3033 = vrot.lane.b32.xlu0 %v3026, 108
  %v3034 = vpop.permute.xlu0 %3033
  %3035 = vrot.lane.b32.xlu0 %v3027, 108
  %v3036 = vpop.permute.xlu0 %3035
  %v3037 = vsel %vm518, %v3032, %v3034
  %v3038 = vsel %vm518, %v3034, %v3036
  %v3042 = vadd.f32 %v3022, %v3037
  %v3043 = vadd.f32 %v3023, %v3038
  %v3044 = vadd.f32 %v3024, %v3036
  %v3045 = vmul.f32 %v1480, %v2656
  %v3046 = vmul.f32 %v1480, %v2657
  %v3047 = vmul.f32 %v1480, %v2658
  %3051 = vrot.lane.b32.xlu0 %v3045, 108
  %v3052 = vpop.permute.xlu0 %3051
  %3053 = vrot.lane.b32.xlu0 %v3046, 108
  %v3054 = vpop.permute.xlu0 %3053
  %3055 = vrot.lane.b32.xlu0 %v3047, 108
  %v3056 = vpop.permute.xlu0 %3055
  %v3057 = vsel %vm518, %v3052, %v3054
  %v3058 = vsel %vm518, %v3054, %v3056
  %v3062 = vadd.f32 %v3042, %v3057
  %v3063 = vadd.f32 %v3043, %v3058
  %v3064 = vadd.f32 %v3044, %v3056
  %v3065 = vmul.f32 %v1504, %v2629
  %v3066 = vmul.f32 %v1504, %v2630
  %v3067 = vmul.f32 %v1504, %v2631
  %3071 = vrot.lane.b32.xlu0 %v3065, 92
  %v3072 = vpop.permute.xlu0 %3071
  %3073 = vrot.lane.b32.xlu0 %v3066, 92
  %v3074 = vpop.permute.xlu0 %3073
  %3075 = vrot.lane.b32.xlu0 %v3067, 92
  %v3076 = vpop.permute.xlu0 %3075
  %v3077 = vsel %vm615, %v3072, %v3074
  %v3078 = vsel %vm615, %v3074, %v3076
  %v3082 = vadd.f32 %v3062, %v3077
  %v3083 = vadd.f32 %v3063, %v3078
  %v3084 = vadd.f32 %v3064, %v3076
  %v3085 = vmul.f32 %v1528, %v2638
  %v3086 = vmul.f32 %v1528, %v2639
  %v3087 = vmul.f32 %v1528, %v2640
  %3091 = vrot.lane.b32.xlu0 %v3085, 92
  %v3092 = vpop.permute.xlu0 %3091
  %3093 = vrot.lane.b32.xlu0 %v3086, 92
  %v3094 = vpop.permute.xlu0 %3093
  %3095 = vrot.lane.b32.xlu0 %v3087, 92
  %v3096 = vpop.permute.xlu0 %3095
  %v3097 = vsel %vm615, %v3092, %v3094
  %v3098 = vsel %vm615, %v3094, %v3096
  %v3102 = vadd.f32 %v3082, %v3097
  %v3103 = vadd.f32 %v3083, %v3098
  %v3104 = vadd.f32 %v3084, %v3096
  %v3105 = vmul.f32 %v1552, %v2647
  %v3106 = vmul.f32 %v1552, %v2648
  %v3107 = vmul.f32 %v1552, %v2649
  %3111 = vrot.lane.b32.xlu0 %v3105, 92
  %v3112 = vpop.permute.xlu0 %3111
  %3113 = vrot.lane.b32.xlu0 %v3106, 92
  %v3114 = vpop.permute.xlu0 %3113
  %3115 = vrot.lane.b32.xlu0 %v3107, 92
  %v3116 = vpop.permute.xlu0 %3115
  %v3117 = vsel %vm615, %v3112, %v3114
  %v3118 = vsel %vm615, %v3114, %v3116
  %v3122 = vadd.f32 %v3102, %v3117
  %v3123 = vadd.f32 %v3103, %v3118
  %v3124 = vadd.f32 %v3104, %v3116
  %v3125 = vmul.f32 %v1576, %v2656
  %v3126 = vmul.f32 %v1576, %v2657
  %v3127 = vmul.f32 %v1576, %v2658
  %3131 = vrot.lane.b32.xlu0 %v3125, 92
  %v3132 = vpop.permute.xlu0 %3131
  %3133 = vrot.lane.b32.xlu0 %v3126, 92
  %v3134 = vpop.permute.xlu0 %3133
  %3135 = vrot.lane.b32.xlu0 %v3127, 92
  %v3136 = vpop.permute.xlu0 %3135
  %v3137 = vsel %vm615, %v3132, %v3134
  %v3138 = vsel %vm615, %v3134, %v3136
  %v3142 = vadd.f32 %v3122, %v3137
  %v3143 = vadd.f32 %v3123, %v3138
  %v3144 = vadd.f32 %v3124, %v3136
  %v3145 = vmul.f32 %v1600, %v2629
  %v3146 = vmul.f32 %v1600, %v2630
  %v3147 = vmul.f32 %v1600, %v2631
  %3151 = vrot.lane.b32.xlu0 %v3145, 91
  %v3152 = vpop.permute.xlu0 %3151
  %3153 = vrot.lane.b32.xlu0 %v3146, 91
  %v3154 = vpop.permute.xlu0 %3153
  %3155 = vrot.lane.b32.xlu0 %v3147, 91
  %v3156 = vpop.permute.xlu0 %3155
  %v3157 = vsel %vm712, %v3152, %v3154
  %v3158 = vsel %vm712, %v3154, %v3156
  %v3162 = vadd.f32 %v3142, %v3157
  %v3163 = vadd.f32 %v3143, %v3158
  %v3164 = vadd.f32 %v3144, %v3156
  %v3165 = vmul.f32 %v1624, %v2638
  %v3166 = vmul.f32 %v1624, %v2639
  %v3167 = vmul.f32 %v1624, %v2640
  %3171 = vrot.lane.b32.xlu0 %v3165, 91
  %v3172 = vpop.permute.xlu0 %3171
  %3173 = vrot.lane.b32.xlu0 %v3166, 91
  %v3174 = vpop.permute.xlu0 %3173
  %3175 = vrot.lane.b32.xlu0 %v3167, 91
  %v3176 = vpop.permute.xlu0 %3175
  %v3177 = vsel %vm712, %v3172, %v3174
  %v3178 = vsel %vm712, %v3174, %v3176
  %v3182 = vadd.f32 %v3162, %v3177
  %v3183 = vadd.f32 %v3163, %v3178
  %v3184 = vadd.f32 %v3164, %v3176
  %v3185 = vmul.f32 %v1648, %v2647
  %v3186 = vmul.f32 %v1648, %v2648
  %v3187 = vmul.f32 %v1648, %v2649
  %3191 = vrot.lane.b32.xlu0 %v3185, 91
  %v3192 = vpop.permute.xlu0 %3191
  %3193 = vrot.lane.b32.xlu0 %v3186, 91
  %v3194 = vpop.permute.xlu0 %3193
  %3195 = vrot.lane.b32.xlu0 %v3187, 91
  %v3196 = vpop.permute.xlu0 %3195
  %v3197 = vsel %vm712, %v3192, %v3194
  %v3198 = vsel %vm712, %v3194, %v3196
  %v3202 = vadd.f32 %v3182, %v3197
  %v3203 = vadd.f32 %v3183, %v3198
  %v3204 = vadd.f32 %v3184, %v3196
  %v3205 = vmul.f32 %v1672, %v2656
  %v3206 = vmul.f32 %v1672, %v2657
  %v3207 = vmul.f32 %v1672, %v2658
  %3211 = vrot.lane.b32.xlu0 %v3205, 91
  %v3212 = vpop.permute.xlu0 %3211
  %3213 = vrot.lane.b32.xlu0 %v3206, 91
  %v3214 = vpop.permute.xlu0 %3213
  %3215 = vrot.lane.b32.xlu0 %v3207, 91
  %v3216 = vpop.permute.xlu0 %3215
  %v3217 = vsel %vm712, %v3212, %v3214
  %v3218 = vsel %vm712, %v3214, %v3216
  %v3222 = vadd.f32 %v3202, %v3217
  %v3223 = vadd.f32 %v3203, %v3218
  %v3224 = vadd.f32 %v3204, %v3216
  %v3225 = vmul.f32 %v1696, %v2629
  %v3226 = vmul.f32 %v1696, %v2630
  %v3227 = vmul.f32 %v1696, %v2631
  %3231 = vrot.lane.b32.xlu0 %v3225, 90
  %v3232 = vpop.permute.xlu0 %3231
  %3233 = vrot.lane.b32.xlu0 %v3226, 90
  %v3234 = vpop.permute.xlu0 %3233
  %3235 = vrot.lane.b32.xlu0 %v3227, 90
  %v3236 = vpop.permute.xlu0 %3235
  %v3237 = vsel %vm809, %v3232, %v3234
  %v3238 = vsel %vm809, %v3234, %v3236
  %v3242 = vadd.f32 %v3222, %v3237
  %v3243 = vadd.f32 %v3223, %v3238
  %v3244 = vadd.f32 %v3224, %v3236
  %v3245 = vmul.f32 %v1720, %v2638
  %v3246 = vmul.f32 %v1720, %v2639
  %v3247 = vmul.f32 %v1720, %v2640
  %3251 = vrot.lane.b32.xlu0 %v3245, 90
  %v3252 = vpop.permute.xlu0 %3251
  %3253 = vrot.lane.b32.xlu0 %v3246, 90
  %v3254 = vpop.permute.xlu0 %3253
  %3255 = vrot.lane.b32.xlu0 %v3247, 90
  %v3256 = vpop.permute.xlu0 %3255
  %v3257 = vsel %vm809, %v3252, %v3254
  %v3258 = vsel %vm809, %v3254, %v3256
  %v3262 = vadd.f32 %v3242, %v3257
  %v3263 = vadd.f32 %v3243, %v3258
  %v3264 = vadd.f32 %v3244, %v3256
  %v3265 = vmul.f32 %v1744, %v2647
  %v3266 = vmul.f32 %v1744, %v2648
  %v3267 = vmul.f32 %v1744, %v2649
  %3271 = vrot.lane.b32.xlu0 %v3265, 90
  %v3272 = vpop.permute.xlu0 %3271
  %3273 = vrot.lane.b32.xlu0 %v3266, 90
  %v3274 = vpop.permute.xlu0 %3273
  %3275 = vrot.lane.b32.xlu0 %v3267, 90
  %v3276 = vpop.permute.xlu0 %3275
  %v3277 = vsel %vm809, %v3272, %v3274
  %v3278 = vsel %vm809, %v3274, %v3276
  %v3282 = vadd.f32 %v3262, %v3277
  %v3283 = vadd.f32 %v3263, %v3278
  %v3284 = vadd.f32 %v3264, %v3276
  %v3285 = vmul.f32 %v1768, %v2656
  %v3286 = vmul.f32 %v1768, %v2657
  %v3287 = vmul.f32 %v1768, %v2658
  %3291 = vrot.lane.b32.xlu0 %v3285, 90
  %v3292 = vpop.permute.xlu0 %3291
  %3293 = vrot.lane.b32.xlu0 %v3286, 90
  %v3294 = vpop.permute.xlu0 %3293
  %3295 = vrot.lane.b32.xlu0 %v3287, 90
  %v3296 = vpop.permute.xlu0 %3295
  %v3297 = vsel %vm809, %v3292, %v3294
  %v3298 = vsel %vm809, %v3294, %v3296
  %v3302 = vadd.f32 %v3282, %v3297
  %v3303 = vadd.f32 %v3283, %v3298
  %v3304 = vadd.f32 %v3284, %v3296
  %v3305 = vmul.f32 %v3302, %v891
  %v3306 = vmul.f32 %v3303, %v892
  %v3307 = vmul.f32 %v3304, %v893
  %v3308 = vsel %vm900, %v3305, 0.0
  %v3309 = vsel %vm900, %v3306, 0.0
  %v3310 = vadd.f32 %v3308, %v3309
  %v3311 = vsel %vm904, %v3307, 0.0
  %v3312 = vadd.f32 %v3310, %v3311
  %3313 = vadd.xlane.f32.xlu0 %v3312
  %v3314 = vpop.xlane.xlu0 %3313
  %v3315 = vmul.f32 %v3305, %v3305
  %v3316 = vmul.f32 %v3306, %v3306
  %v3317 = vmul.f32 %v3307, %v3307
  %v3318 = vsel %vm900, %v3315, 0.0
  %v3319 = vsel %vm900, %v3316, 0.0
  %v3320 = vadd.f32 %v3318, %v3319
  %v3321 = vsel %vm904, %v3317, 0.0
  %v3322 = vadd.f32 %v3320, %v3321
  %3323 = vadd.xlane.f32.xlu0 %v3322
  %v3324 = vpop.xlane.xlu0 %3323
  %v3325 = vmul.f32 %v3314, 0.00390625
  %v3326 = vmul.f32 %v3324, 0.00390625
  %v3327 = vmul.f32 %v3325, %v3325
  %v3328 = vsub.f32 %v3326, %v3327
  %v3329 = vsub.f32 %v3302, %v3325
  %v3330 = vsub.f32 %v3303, %v3325
  %v3331 = vsub.f32 %v3304, %v3325
  %v3332 = vadd.f32 %v3328, 1e-05
  %v3333 = vrsqrt.pop %v3332
  %v3334 = vmul.f32 %v3333, %v3332
  %v3335 = vmul.f32 %v3334, %v3333
  %v3336 = vmul.f32 0.5, %v3335
  %v3337 = vsub.f32 1.5, %v3336
  %v3338 = vmul.f32 %v3333, %v3337
  %vm3339 = vweird.f32 %v3332
  %vm3340 = vweird.f32 %v3333
  %vm3341 = vmor %vm3339, %vm3340
  %v3342 = vsel %vm3341, %v3333, %v3338
  %v3343 = vmul.f32 %v3329, %v3342
  %v3344 = vmul.f32 %v3330, %v3342
  %v3345 = vmul.f32 %v3331, %v3342
  %v3349 = vrot.slane %v3344, 4
  %v3350 = vsel %vm900, %v3343, %v3349
  %3351 = vrot.lane.b32.xlu0 %v3350, 19
  %v3352 = vpop.permute.xlu0 %3351
  %3353 = vrot.lane.b32.xlu0 %v3345, 19
  %v3354 = vpop.permute.xlu0 %3353
  %v3355 = vrot.slane %v3352, 4
  %v3356 = vsel %vm955, %v3355, %v3352
  %v3357 = vsel %vm955, %v3355, %v3354
  %v3360 = vadd.f32 %v1862, %v3356
  %v3361 = vadd.f32 %v1863, %v3357
  %3364 = vrot.lane.b32.xlu0 %v3360, 109
  %v3365 = vpop.permute.xlu0 %3364
  %3366 = vrot.lane.b32.xlu0 %v3361, 109
  %v3367 = vpop.permute.xlu0 %3366
  %v3368 = vrot.slane %v3365, 4
  %v3369 = vrot.slane %v3367, 4
  %v3370 = vsel %vm900, %v3368, %v3369
  %v3371 = vsel %vm421, %v3365, %v3370
  %s3374 = scalar_lea.vmem %s6, 12
  %3375 = vst [vmem:[%s3374] sm:$0xff] %v3371
  %3376 = vst.msk [vmem:[%s3374 + $0x8] sm:$0xf] %vm904, %v3367
  // Predicated region
  $region26: #{resnet_block_pallas.1} parent=0 // pred_check
    _
  $region27: #{resnet_block_pallas.1} parent=0 // pred_check_branch
    %3378 = sbr.rel (0) target = $region29
  $region28: #{resnet_block_pallas.1} parent=0 // pred_region
    _
  $region29: #{resnet_block_pallas.1} parent=0 // pred_fallthru
    _
  // Predicated region
  $region30: #{resnet_block_pallas.1} parent=0 // pred_check
    _
  $region31: #{resnet_block_pallas.1} parent=0 // pred_check_branch
    %3380 = sbr.rel (0) target = $region33
  $region32: #{resnet_block_pallas.1} parent=0 // pred_region
    _
  $region33: #{resnet_block_pallas.1} parent=0 // pred_fallthru
    _

</llo_original>
